<compile_context>
chip_gen: v7x
topology: tpu7x:2x2x1
jax: 0.10.0
libtpu: 0.0.40
codegen_flags: <defaults>
</compile_context>

<pallas_src>
import functools

import jax
import jax.numpy as jnp
from jax.experimental import pallas as pl
from jax.experimental.pallas import tpu as pltpu

_TAPS = 9      # 3x3 conv taps
_XROWS = 8     # activation-channel rows in the flat scratch (7 used)
_PROWS = 64    # im2col rows: 7 channels * 9 taps = 63, padded to 64


def _round_up(x, m):
    return (x + m - 1) // m * m


def _fused_matting_kernel(*refs, H, W, use_ext_trimap):
    if use_ext_trimap:
        img_ref, tri_ref, mask_ref, *rest = refs
    else:
        img_ref, mask_ref, *rest = refs
        tri_ref = None
    (w1t_ref, b1t_ref, w2t_ref, b2t_ref,
     w1m_ref, b1m_ref, w2m_ref, b2m_ref,
     w1f_ref, b1f_ref, w2f_ref, b2f_ref,
     out_ref, xflat_ref, patch_ref) = rest

    W2 = W + 2                       # padded row length
    Pp = xflat_ref.shape[1]          # padded flat length (multiple of 128)
    # tap (dy, dx) -> lane shift inside the flattened padded grid
    shifts = [dy * W2 + dx for dy in range(3) for dx in range(3)]

    # ---- one-time scratch init (zero-pad border + padding lanes) ----------
    # Only the border / padding lanes rely on this: every per-step write below
    # is either interior-only (image / external trimap rows) or a full-width
    # masked store (trimap-softmax / matte_u rows), so the zeros persist.
    # Requires the batch grid axis to be "arbitrary" (sequential, one core).
    @pl.when(pl.program_id(0) == 0)
    def _():
        xflat_ref[...] = jnp.zeros_like(xflat_ref)

    def lanes_shift(v, s):
        """out[..., p] = v[..., (p + s) % Pp]  (lane-dense slice+concat;
        equivalent to a lane roll on the XLU)."""
        s = s % Pp
        if s == 0:
            return v
        return jnp.concatenate([v[:, s:], v[:, :s]], axis=1)

    def copy_rows_into_xflat(src_ref, c0):
        """Copy an NCHW (1, 3, H, W) block into the interior of flat padded
        rows [c0, c0+3).  Borders stay zero from the one-time init."""
        # TODO(synk): for large H turn this static row loop into a
        # lax.fori_loop / strip DMA.
        for y in range(H):
            base = (y + 1) * W2 + 1
            xflat_ref[c0:c0 + 3, base:base + W] = src_ref[0, :, y, :]

    def fill_patch(c0, c1):
        """Refresh im2col rows for channels [c0, c1); patch row = c*9 + t.
        One bf16 cast per channel, 9 full-width lane shifts, one (9, Pp)
        lane-dense store."""
        for c in range(c0, c1):
            row = xflat_ref[c:c + 1, :].astype(jnp.bfloat16)          # (1, Pp)
            taps = jnp.concatenate(
                [lanes_shift(row, s) for s in shifts], axis=0)        # (9, Pp)
            patch_ref[c * _TAPS:(c + 1) * _TAPS, :] = taps

    def head(k_rows, w1_ref, b1_ref, w2_ref, b2_ref):
        """conv3x3 (+bias, ReLU) as one K=k_rows MXU matmul, then the 1x1
        projection -- everything in (channels, Pp) lane-dense orientation."""
        p = patch_ref[0:k_rows, :]                                    # (K, Pp) bf16
        h = jnp.dot(w1_ref[...], p, preferred_element_type=jnp.float32)
        h = jnp.maximum(h + b1_ref[...], 0.0).astype(jnp.bfloat16)    # (Cmid, Pp)
        y = jnp.dot(w2_ref[...], h, preferred_element_type=jnp.float32)
        return y + b2_ref[...]                                        # (Cout, Pp)

    def sigmoid(y):
        return pl.reciprocal(1.0 + jnp.exp(-y), approx=True)

    def write_back(vals, row0):
        """Shift head outputs (output-lane coords) into padded-grid interior
        coords and store them as the next conv's input channels; the interior
        mask re-zeroes the border / padding lanes every step."""
        shifted = lanes_shift(vals, -(W2 + 1))
        n = vals.shape[0]
        xflat_ref[row0:row0 + n, :] = jnp.where(mask_ref[...] == 1.0, shifted, 0.0)

    # ------------------------------ tnet -----------------------------------
    copy_rows_into_xflat(img_ref, 0)
    fill_patch(0, 3)
    logits = head(3 * _TAPS, w1t_ref, b1t_ref, w2t_ref, b2t_ref)      # (3, Pp)
    out_ref[0, 0:3, :] = logits                                       # trimap logits

    if use_ext_trimap:
        copy_rows_into_xflat(tri_ref, 3)      # provided trimap; skip softmax
    else:
        mx = jnp.max(logits, axis=0, keepdims=True)
        e = jnp.exp(logits - mx)
        sm = e * pl.reciprocal(jnp.sum(e, axis=0, keepdims=True), approx=True)
        write_back(sm, 3)

    # ------------------------------ mnet -----------------------------------
    fill_patch(3, 6)                          # only the trimap channels changed
    matte_u = sigmoid(head(6 * _TAPS, w1m_ref, b1m_ref, w2m_ref, b2m_ref))
    out_ref[0, 3:4, :] = matte_u
    write_back(matte_u, 6)

    # ------------------------------ fnet -----------------------------------
    fill_patch(6, 7)                          # only the matte_u channel changed
    matte = sigmoid(head(7 * _TAPS, w1f_ref, b1f_ref, w2f_ref, b2f_ref))
    out_ref[0, 4:5, :] = matte


class MattingNetPallas:
    """Pallas TPU implementation of MattingNet.forward (fully fused)."""

    def __init__(self, key, hidden=128):
        kt, km, kf = jax.random.split(key, 3)
        self.hidden = hidden                      # keep 128: matches MXU width
        self.tnet = self._init_head(kt, 3, hidden, 3)  # img(3)        -> trimap logits(3)
        self.mnet = self._init_head(km, 6, hidden, 1)  # img+trimap(6) -> matte_u(1)
        self.fnet = self._init_head(kf, 7, hidden, 1)  # concat(7)     -> matte(1)

    @staticmethod
    def _init_head(key, cin, cmid, cout):
        k1, k2 = jax.random.split(key)
        w1 = jax.random.normal(k1, (cmid, cin, 3, 3), jnp.float32)
        w1 = w1 * (2.0 / (9 * cin)) ** 0.5
        w2 = jax.random.normal(k2, (cout, cmid), jnp.float32) * (2.0 / cmid) ** 0.5
        return dict(
            # column index = c*9 + dy*3 + dx : matches the kernel's patch rows
            w1=w1.reshape(cmid, cin * _TAPS).astype(jnp.bfloat16),     # (Cmid, K)
            b1=jnp.zeros((cmid, 1), jnp.float32),
            w2=w2.astype(jnp.bfloat16),                                # (Cout, Cmid)
            b2=jnp.zeros((cout, 1), jnp.float32))

    @staticmethod
    def _rep(shape):
        nd = len(shape)
        return pl.BlockSpec(shape, lambda n: (0,) * nd)

    def __call__(self, img_nchw, trimap_3=None):
        N, C, H, W = img_nchw.shape
        assert C == 3, "MattingNet expects a 3-channel image"
        W2 = W + 2
        P = (H + 2) * W2
        Pp = _round_up(P, 128)                 # lane-padded flat grid length
        use_ext = trimap_3 is not None

        # interior mask of the flattened padded grid (1.0 where a real pixel
        # of the padded (H+2, W+2) grid sits, 0.0 on borders / padding lanes)
        rr, qq = jnp.meshgrid(jnp.arange(H + 2), jnp.arange(W2), indexing="ij")
        interior = ((rr >= 1) & (rr <= H) & (qq >= 1) & (qq <= W)).astype(jnp.float32)
        mask = jnp.zeros((1, Pp), jnp.float32).at[0, :P].set(interior.reshape(-1))

        t, m, f = self.tnet, self.mnet, self.fnet
        weights = [t["w1"], t["b1"], t["w2"], t["b2"],
                   m["w1"], m["b1"], m["w2"], m["b2"],
                   f["w1"], f["b1"], f["w2"], f["b2"]]

        inputs = [img_nchw]                                     # NCHW, no transpose
        in_specs = [pl.BlockSpec((1, 3, H, W), lambda n: (n, 0, 0, 0))]
        if use_ext:
            inputs.append(trimap_3)
            in_specs.append(pl.BlockSpec((1, 3, H, W), lambda n: (n, 0, 0, 0)))
        inputs.append(mask)
        in_specs.append(self._rep((1, Pp)))
        inputs += weights
        in_specs += [self._rep(w.shape) for w in weights]

        kernel = functools.partial(_fused_matting_kernel, H=H, W=W,
                                   use_ext_trimap=use_ext)

        # Per-shape VMEM budget: scratch + double-buffered in/out blocks +
        # headroom for the (Cmid, Pp) hidden activations.  Clamped so small
        # shapes stay cheap and we leave room under v7x's 64 MiB physical VMEM.
        scratch_bytes = _XROWS * Pp * 4 + _PROWS * Pp * 2
        block_bytes = 2 * (3 * H * W * 4 * (2 if use_ext else 1)   # img (+trimap)
                           + 5 * Pp * 4                            # packed output
                           + Pp * 4)                               # mask
        act_bytes = 2 * self.hidden * Pp * 4
        vmem_limit = int(min(100 * 2 ** 20,
                             max(32 * 2 ** 20,
                                 2 * (scratch_bytes + block_bytes + act_bytes))))

        out = pl.pallas_call(
            kernel,
            out_shape=jax.ShapeDtypeStruct((N, 5, Pp), jnp.float32),
            grid_spec=pltpu.PrefetchScalarGridSpec(
                num_scalar_prefetch=0,
                grid=(N,),
                in_specs=in_specs,
                out_specs=pl.BlockSpec((1, 5, Pp), lambda n: (n, 0, 0)),
                scratch_shapes=[
                    pltpu.VMEM((_XROWS, Pp), jnp.float32),    # flat padded activations
                    pltpu.VMEM((_PROWS, Pp), jnp.bfloat16),   # im2col taps (c*9+t rows)
                ]),
            compiler_params=pltpu.CompilerParams(
                # "arbitrary": the batch loop runs sequentially on one core so
                # the zero-once border init of xflat persists across steps.
                # TODO(synk): with the row-strip grid axis, mark the strip axis
                # "parallel" for v7x dual-TC occupancy instead.
                dimension_semantics=("arbitrary",),
                vmem_limit_bytes=vmem_limit),
        )(*inputs)

        # Unpack: lane p = y*(W+2) + x holds pixel (y, x); free reshapes/slices.
        valid = out[:, :, :H * W2].reshape(N, 5, H, W2)[:, :, :, :W]
        pred_trimap_prob = valid[:, 0:3]
        pred_matte_u = valid[:, 3:4]
        pred_matte = valid[:, 4:5]
        return pred_matte, pred_trimap_prob, pred_matte_u


# --------------------------- pure-JAX reference -----------------------------
def _reference_forward(net, img, trimap_3=None):
    """Mirrors the kernel math (bf16 matmul operands, f32 accumulation,
    exact softmax/sigmoid) for a numerical check."""

    def conv_head(x, p):
        n, cin, h, w = x.shape
        xp = jnp.pad(x, ((0, 0), (0, 0), (1, 1), (1, 1)))
        cols = [xp[:, c, dy:dy + h, dx:dx + w]
                for c in range(cin) for dy in range(3) for dx in range(3)]
        patch = jnp.stack(cols, axis=1).reshape(n, cin * 9, h * w).astype(jnp.bfloat16)
        hid = jnp.einsum("ok,nkp->nop", p["w1"], patch,
                         preferred_element_type=jnp.float32)
        hid = jnp.maximum(hid + p["b1"][None], 0.0).astype(jnp.bfloat16)
        y = jnp.einsum("ok,nkp->nop", p["w2"], hid,
                       preferred_element_type=jnp.float32) + p["b2"][None]
        return y.reshape(n, -1, h, w)

    logits = conv_head(img, net.tnet)
    tri = jax.nn.softmax(logits, axis=1) if trimap_3 is None else trimap_3
    cat6 = jnp.concatenate([img, tri], axis=1)
    matte_u = jax.nn.sigmoid(conv_head(cat6, net.mnet))
    cat7 = jnp.concatenate([cat6, matte_u], axis=1)
    matte = jax.nn.sigmoid(conv_head(cat7, net.fnet))
    return matte, logits, matte_u


if __name__ == "__main__":
    key = jax.random.PRNGKey(0)
    kparams, kimg, ktri = jax.random.split(key, 3)

    net = MattingNetPallas(kparams, hidden=128)
    img = jax.random.uniform(kimg, (2, 3, 16, 16), jnp.float32)     # NCHW like torch

    forward = jax.jit(lambda x: net(x))
    pred_matte, pred_trimap_prob, pred_matte_u = forward(img)
    jax.block_until_ready((pred_matte, pred_trimap_prob, pred_matte_u))

    assert pred_matte.shape == (2, 1, 16, 16)
    assert pred_trimap_prob.shape == (2, 3, 16, 16)
    assert pred_matte_u.shape == (2, 1, 16, 16)
    for arr in (pred_matte, pred_trimap_prob, pred_matte_u):
        assert arr.dtype == jnp.float32
        assert bool(jnp.all(jnp.isfinite(arr)))

    # numerical check vs. the pure-JAX reference (bf16 matmuls + approx recip
    # in the kernel -> generous but bug-catching tolerance)
    r_matte, r_logits, r_mu = _reference_forward(net, img)
    assert float(jnp.max(jnp.abs(pred_matte - r_matte))) < 3e-2
    assert float(jnp.max(jnp.abs(pred_trimap_prob - r_logits))) < 3e-2
    assert float(jnp.max(jnp.abs(pred_matte_u - r_mu))) < 3e-2

    # external-trimap path
    ext_tri = jax.nn.softmax(
        jax.random.normal(ktri, (2, 3, 16, 16), jnp.float32), axis=1)
    fwd_tri = jax.jit(lambda x, tr: net(x, tr))
    matte2, logits2, mu2 = fwd_tri(img, ext_tri)
    jax.block_until_ready((matte2, logits2, mu2))
    r_matte2, _, r_mu2 = _reference_forward(net, img, ext_tri)
    assert float(jnp.max(jnp.abs(matte2 - r_matte2))) < 3e-2
    assert float(jnp.max(jnp.abs(mu2 - r_mu2))) < 3e-2

    print("KERNEL_OK")
</pallas_src>

<mosaic_0001>
module attributes {stable_mosaic.version = 11 : i64} {
  func.func @_fused_matting_kernel(%arg0: i32, %arg1: memref<1x3x16x16xf32, #tpu.memory_space<vmem>>, %arg2: memref<1x384xf32, #tpu.memory_space<vmem>>, %arg3: memref<128x27xbf16, #tpu.memory_space<vmem>>, %arg4: memref<128x1xf32, #tpu.memory_space<vmem>>, %arg5: memref<3x128xbf16, #tpu.memory_space<vmem>>, %arg6: memref<3x1xf32, #tpu.memory_space<vmem>>, %arg7: memref<128x54xbf16, #tpu.memory_space<vmem>>, %arg8: memref<128x1xf32, #tpu.memory_space<vmem>>, %arg9: memref<1x128xbf16, #tpu.memory_space<vmem>>, %arg10: memref<1x1xf32, #tpu.memory_space<vmem>>, %arg11: memref<128x63xbf16, #tpu.memory_space<vmem>>, %arg12: memref<128x1xf32, #tpu.memory_space<vmem>>, %arg13: memref<1x128xbf16, #tpu.memory_space<vmem>>, %arg14: memref<1x1xf32, #tpu.memory_space<vmem>>, %arg15: memref<1x5x384xf32, #tpu.memory_space<vmem>>, %arg16: memref<8x384xf32, #tpu.memory_space<vmem>>, %arg17: memref<64x384xbf16, #tpu.memory_space<vmem>>) attributes {dimension_semantics = [#tpu.dimension_semantics<arbitrary>], iteration_bounds = array<i64: 2>, scalar_prefetch = 0 : i64, scratch_operands = 2 : i64, tpu.core_type = #tpu.core_type<tc>, window_params = [{transform_indices = @transform_0, window_bounds = array<i64: 1, 3, 16, 16>}, {pipeline_mode = #tpu.pipeline_mode<synchronous>, transform_indices = @transform_1, window_bounds = array<i64: 1, 384>}, {pipeline_mode = #tpu.pipeline_mode<synchronous>, transform_indices = @transform_2, window_bounds = array<i64: 128, 27>}, {pipeline_mode = #tpu.pipeline_mode<synchronous>, transform_indices = @transform_3, window_bounds = array<i64: 128, 1>}, {pipeline_mode = #tpu.pipeline_mode<synchronous>, transform_indices = @transform_4, window_bounds = array<i64: 3, 128>}, {pipeline_mode = #tpu.pipeline_mode<synchronous>, transform_indices = @transform_5, window_bounds = array<i64: 3, 1>}, {pipeline_mode = #tpu.pipeline_mode<synchronous>, transform_indices = @transform_6, window_bounds = array<i64: 128, 54>}, {pipeline_mode = #tpu.pipeline_mode<synchronous>, transform_indices = @transform_7, window_bounds = array<i64: 128, 1>}, {pipeline_mode = #tpu.pipeline_mode<synchronous>, transform_indices = @transform_8, window_bounds = array<i64: 1, 128>}, {pipeline_mode = #tpu.pipeline_mode<synchronous>, transform_indices = @transform_9, window_bounds = array<i64: 1, 1>}, {pipeline_mode = #tpu.pipeline_mode<synchronous>, transform_indices = @transform_10, window_bounds = array<i64: 128, 63>}, {pipeline_mode = #tpu.pipeline_mode<synchronous>, transform_indices = @transform_11, window_bounds = array<i64: 128, 1>}, {pipeline_mode = #tpu.pipeline_mode<synchronous>, transform_indices = @transform_12, window_bounds = array<i64: 1, 128>}, {pipeline_mode = #tpu.pipeline_mode<synchronous>, transform_indices = @transform_13, window_bounds = array<i64: 1, 1>}, {transform_indices = @transform_14, window_bounds = array<i64: 1, 5, 384>}]} {
    %c0_i32 = arith.constant 0 : i32
    %0 = arith.cmpi eq, %arg0, %c0_i32 : i32
    %1 = arith.extui %0 : i1 to i32
    %c0_i32_0 = arith.constant 0 : i32
    %2 = arith.cmpi ne, %1, %c0_i32_0 : i32
    scf.if %2 {
      %cst_153 = arith.constant 0.000000e+00 : f32
      %340 = vector.broadcast %cst_153 : f32 to vector<8x384xf32>
      %c0_154 = arith.constant 0 : index
      %c0_155 = arith.constant 0 : index
      %341 = vector.load %arg16[%c0_154, %c0_155] : memref<8x384xf32, #tpu.memory_space<vmem>>, vector<8x384xf32>
      tpu.vector_store %arg16[%c0_154, %c0_155], %340 {strides = array<i32>} : memref<8x384xf32, #tpu.memory_space<vmem>>, vector<8x384xf32>,
    } else {
    }
    %c0 = arith.constant 0 : index
    %c0_1 = arith.constant 0 : index
    %c0_2 = arith.constant 0 : index
    %c0_3 = arith.constant 0 : index
    %3 = vector.load %arg1[%c0, %c0_1, %c0_2, %c0_3] : memref<1x3x16x16xf32, #tpu.memory_space<vmem>>, vector<1x3x1x16xf32>
    %4 = vector.shape_cast %3 : vector<1x3x1x16xf32> to vector<3x16xf32>
    %c0_4 = arith.constant 0 : index
    %c19 = arith.constant 19 : index
    %5 = vector.load %arg16[%c0_4, %c19] : memref<8x384xf32, #tpu.memory_space<vmem>>, vector<3x16xf32>
    tpu.vector_store %arg16[%c0_4, %c19], %4 {strides = array<i32>} : memref<8x384xf32, #tpu.memory_space<vmem>>, vector<3x16xf32>,
    %c0_5 = arith.constant 0 : index
    %c0_6 = arith.constant 0 : index
    %c1 = arith.constant 1 : index
    %c0_7 = arith.constant 0 : index
    %6 = vector.load %arg1[%c0_5, %c0_6, %c1, %c0_7] : memref<1x3x16x16xf32, #tpu.memory_space<vmem>>, vector<1x3x1x16xf32>
    %7 = vector.shape_cast %6 : vector<1x3x1x16xf32> to vector<3x16xf32>
    %c0_8 = arith.constant 0 : index
    %c37 = arith.constant 37 : index
    %8 = vector.load %arg16[%c0_8, %c37] : memref<8x384xf32, #tpu.memory_space<vmem>>, vector<3x16xf32>
    tpu.vector_store %arg16[%c0_8, %c37], %7 {strides = array<i32>} : memref<8x384xf32, #tpu.memory_space<vmem>>, vector<3x16xf32>,
    %c0_9 = arith.constant 0 : index
    %c0_10 = arith.constant 0 : index
    %c2 = arith.constant 2 : index
    %c0_11 = arith.constant 0 : index
    %9 = vector.load %arg1[%c0_9, %c0_10, %c2, %c0_11] : memref<1x3x16x16xf32, #tpu.memory_space<vmem>>, vector<1x3x1x16xf32>
    %10 = vector.shape_cast %9 : vector<1x3x1x16xf32> to vector<3x16xf32>
    %c0_12 = arith.constant 0 : index
    %c55 = arith.constant 55 : index
    %11 = vector.load %arg16[%c0_12, %c55] : memref<8x384xf32, #tpu.memory_space<vmem>>, vector<3x16xf32>
    tpu.vector_store %arg16[%c0_12, %c55], %10 {strides = array<i32>} : memref<8x384xf32, #tpu.memory_space<vmem>>, vector<3x16xf32>,
    %c0_13 = arith.constant 0 : index
    %c0_14 = arith.constant 0 : index
    %c3 = arith.constant 3 : index
    %c0_15 = arith.constant 0 : index
    %12 = vector.load %arg1[%c0_13, %c0_14, %c3, %c0_15] : memref<1x3x16x16xf32, #tpu.memory_space<vmem>>, vector<1x3x1x16xf32>
    %13 = vector.shape_cast %12 : vector<1x3x1x16xf32> to vector<3x16xf32>
    %c0_16 = arith.constant 0 : index
    %c73 = arith.constant 73 : index
    %14 = vector.load %arg16[%c0_16, %c73] : memref<8x384xf32, #tpu.memory_space<vmem>>, vector<3x16xf32>
    tpu.vector_store %arg16[%c0_16, %c73], %13 {strides = array<i32>} : memref<8x384xf32, #tpu.memory_space<vmem>>, vector<3x16xf32>,
    %c0_17 = arith.constant 0 : index
    %c0_18 = arith.constant 0 : index
    %c4 = arith.constant 4 : index
    %c0_19 = arith.constant 0 : index
    %15 = vector.load %arg1[%c0_17, %c0_18, %c4, %c0_19] : memref<1x3x16x16xf32, #tpu.memory_space<vmem>>, vector<1x3x1x16xf32>
    %16 = vector.shape_cast %15 : vector<1x3x1x16xf32> to vector<3x16xf32>
    %c0_20 = arith.constant 0 : index
    %c91 = arith.constant 91 : index
    %17 = vector.load %arg16[%c0_20, %c91] : memref<8x384xf32, #tpu.memory_space<vmem>>, vector<3x16xf32>
    tpu.vector_store %arg16[%c0_20, %c91], %16 {strides = array<i32>} : memref<8x384xf32, #tpu.memory_space<vmem>>, vector<3x16xf32>,
    %c0_21 = arith.constant 0 : index
    %c0_22 = arith.constant 0 : index
    %c5 = arith.constant 5 : index
    %c0_23 = arith.constant 0 : index
    %18 = vector.load %arg1[%c0_21, %c0_22, %c5, %c0_23] : memref<1x3x16x16xf32, #tpu.memory_space<vmem>>, vector<1x3x1x16xf32>
    %19 = vector.shape_cast %18 : vector<1x3x1x16xf32> to vector<3x16xf32>
    %c0_24 = arith.constant 0 : index
    %c109 = arith.constant 109 : index
    %20 = vector.load %arg16[%c0_24, %c109] : memref<8x384xf32, #tpu.memory_space<vmem>>, vector<3x16xf32>
    tpu.vector_store %arg16[%c0_24, %c109], %19 {strides = array<i32>} : memref<8x384xf32, #tpu.memory_space<vmem>>, vector<3x16xf32>,
    %c0_25 = arith.constant 0 : index
    %c0_26 = arith.constant 0 : index
    %c6 = arith.constant 6 : index
    %c0_27 = arith.constant 0 : index
    %21 = vector.load %arg1[%c0_25, %c0_26, %c6, %c0_27] : memref<1x3x16x16xf32, #tpu.memory_space<vmem>>, vector<1x3x1x16xf32>
    %22 = vector.shape_cast %21 : vector<1x3x1x16xf32> to vector<3x16xf32>
    %c0_28 = arith.constant 0 : index
    %c127 = arith.constant 127 : index
    %23 = vector.load %arg16[%c0_28, %c127] : memref<8x384xf32, #tpu.memory_space<vmem>>, vector<3x16xf32>
    tpu.vector_store %arg16[%c0_28, %c127], %22 {strides = array<i32>} : memref<8x384xf32, #tpu.memory_space<vmem>>, vector<3x16xf32>,
    %c0_29 = arith.constant 0 : index
    %c0_30 = arith.constant 0 : index
    %c7 = arith.constant 7 : index
    %c0_31 = arith.constant 0 : index
    %24 = vector.load %arg1[%c0_29, %c0_30, %c7, %c0_31] : memref<1x3x16x16xf32, #tpu.memory_space<vmem>>, vector<1x3x1x16xf32>
    %25 = vector.shape_cast %24 : vector<1x3x1x16xf32> to vector<3x16xf32>
    %c0_32 = arith.constant 0 : index
    %c145 = arith.constant 145 : index
    %26 = vector.load %arg16[%c0_32, %c145] : memref<8x384xf32, #tpu.memory_space<vmem>>, vector<3x16xf32>
    tpu.vector_store %arg16[%c0_32, %c145], %25 {strides = array<i32>} : memref<8x384xf32, #tpu.memory_space<vmem>>, vector<3x16xf32>,
    %c0_33 = arith.constant 0 : index
    %c0_34 = arith.constant 0 : index
    %c8 = arith.constant 8 : index
    %c0_35 = arith.constant 0 : index
    %27 = vector.load %arg1[%c0_33, %c0_34, %c8, %c0_35] : memref<1x3x16x16xf32, #tpu.memory_space<vmem>>, vector<1x3x1x16xf32>
    %28 = vector.shape_cast %27 : vector<1x3x1x16xf32> to vector<3x16xf32>
    %c0_36 = arith.constant 0 : index
    %c163 = arith.constant 163 : index
    %29 = vector.load %arg16[%c0_36, %c163] : memref<8x384xf32, #tpu.memory_space<vmem>>, vector<3x16xf32>
    tpu.vector_store %arg16[%c0_36, %c163], %28 {strides = array<i32>} : memref<8x384xf32, #tpu.memory_space<vmem>>, vector<3x16xf32>,
    %c0_37 = arith.constant 0 : index
    %c0_38 = arith.constant 0 : index
    %c9 = arith.constant 9 : index
    %c0_39 = arith.constant 0 : index
    %30 = vector.load %arg1[%c0_37, %c0_38, %c9, %c0_39] : memref<1x3x16x16xf32, #tpu.memory_space<vmem>>, vector<1x3x1x16xf32>
    %31 = vector.shape_cast %30 : vector<1x3x1x16xf32> to vector<3x16xf32>
    %c0_40 = arith.constant 0 : index
    %c181 = arith.constant 181 : index
    %32 = vector.load %arg16[%c0_40, %c181] : memref<8x384xf32, #tpu.memory_space<vmem>>, vector<3x16xf32>
    tpu.vector_store %arg16[%c0_40, %c181], %31 {strides = array<i32>} : memref<8x384xf32, #tpu.memory_space<vmem>>, vector<3x16xf32>,
    %c0_41 = arith.constant 0 : index
    %c0_42 = arith.constant 0 : index
    %c10 = arith.constant 10 : index
    %c0_43 = arith.constant 0 : index
    %33 = vector.load %arg1[%c0_41, %c0_42, %c10, %c0_43] : memref<1x3x16x16xf32, #tpu.memory_space<vmem>>, vector<1x3x1x16xf32>
    %34 = vector.shape_cast %33 : vector<1x3x1x16xf32> to vector<3x16xf32>
    %c0_44 = arith.constant 0 : index
    %c199 = arith.constant 199 : index
    %35 = vector.load %arg16[%c0_44, %c199] : memref<8x384xf32, #tpu.memory_space<vmem>>, vector<3x16xf32>
    tpu.vector_store %arg16[%c0_44, %c199], %34 {strides = array<i32>} : memref<8x384xf32, #tpu.memory_space<vmem>>, vector<3x16xf32>,
    %c0_45 = arith.constant 0 : index
    %c0_46 = arith.constant 0 : index
    %c11 = arith.constant 11 : index
    %c0_47 = arith.constant 0 : index
    %36 = vector.load %arg1[%c0_45, %c0_46, %c11, %c0_47] : memref<1x3x16x16xf32, #tpu.memory_space<vmem>>, vector<1x3x1x16xf32>
    %37 = vector.shape_cast %36 : vector<1x3x1x16xf32> to vector<3x16xf32>
    %c0_48 = arith.constant 0 : index
    %c217 = arith.constant 217 : index
    %38 = vector.load %arg16[%c0_48, %c217] : memref<8x384xf32, #tpu.memory_space<vmem>>, vector<3x16xf32>
    tpu.vector_store %arg16[%c0_48, %c217], %37 {strides = array<i32>} : memref<8x384xf32, #tpu.memory_space<vmem>>, vector<3x16xf32>,
    %c0_49 = arith.constant 0 : index
    %c0_50 = arith.constant 0 : index
    %c12 = arith.constant 12 : index
    %c0_51 = arith.constant 0 : index
    %39 = vector.load %arg1[%c0_49, %c0_50, %c12, %c0_51] : memref<1x3x16x16xf32, #tpu.memory_space<vmem>>, vector<1x3x1x16xf32>
    %40 = vector.shape_cast %39 : vector<1x3x1x16xf32> to vector<3x16xf32>
    %c0_52 = arith.constant 0 : index
    %c235 = arith.constant 235 : index
    %41 = vector.load %arg16[%c0_52, %c235] : memref<8x384xf32, #tpu.memory_space<vmem>>, vector<3x16xf32>
    tpu.vector_store %arg16[%c0_52, %c235], %40 {strides = array<i32>} : memref<8x384xf32, #tpu.memory_space<vmem>>, vector<3x16xf32>,
    %c0_53 = arith.constant 0 : index
    %c0_54 = arith.constant 0 : index
    %c13 = arith.constant 13 : index
    %c0_55 = arith.constant 0 : index
    %42 = vector.load %arg1[%c0_53, %c0_54, %c13, %c0_55] : memref<1x3x16x16xf32, #tpu.memory_space<vmem>>, vector<1x3x1x16xf32>
    %43 = vector.shape_cast %42 : vector<1x3x1x16xf32> to vector<3x16xf32>
    %c0_56 = arith.constant 0 : index
    %c253 = arith.constant 253 : index
    %44 = vector.load %arg16[%c0_56, %c253] : memref<8x384xf32, #tpu.memory_space<vmem>>, vector<3x16xf32>
    tpu.vector_store %arg16[%c0_56, %c253], %43 {strides = array<i32>} : memref<8x384xf32, #tpu.memory_space<vmem>>, vector<3x16xf32>,
    %c0_57 = arith.constant 0 : index
    %c0_58 = arith.constant 0 : index
    %c14 = arith.constant 14 : index
    %c0_59 = arith.constant 0 : index
    %45 = vector.load %arg1[%c0_57, %c0_58, %c14, %c0_59] : memref<1x3x16x16xf32, #tpu.memory_space<vmem>>, vector<1x3x1x16xf32>
    %46 = vector.shape_cast %45 : vector<1x3x1x16xf32> to vector<3x16xf32>
    %c0_60 = arith.constant 0 : index
    %c271 = arith.constant 271 : index
    %47 = vector.load %arg16[%c0_60, %c271] : memref<8x384xf32, #tpu.memory_space<vmem>>, vector<3x16xf32>
    tpu.vector_store %arg16[%c0_60, %c271], %46 {strides = array<i32>} : memref<8x384xf32, #tpu.memory_space<vmem>>, vector<3x16xf32>,
    %c0_61 = arith.constant 0 : index
    %c0_62 = arith.constant 0 : index
    %c15 = arith.constant 15 : index
    %c0_63 = arith.constant 0 : index
    %48 = vector.load %arg1[%c0_61, %c0_62, %c15, %c0_63] : memref<1x3x16x16xf32, #tpu.memory_space<vmem>>, vector<1x3x1x16xf32>
    %49 = vector.shape_cast %48 : vector<1x3x1x16xf32> to vector<3x16xf32>
    %c0_64 = arith.constant 0 : index
    %c289 = arith.constant 289 : index
    %50 = vector.load %arg16[%c0_64, %c289] : memref<8x384xf32, #tpu.memory_space<vmem>>, vector<3x16xf32>
    tpu.vector_store %arg16[%c0_64, %c289], %49 {strides = array<i32>} : memref<8x384xf32, #tpu.memory_space<vmem>>, vector<3x16xf32>,
    %c0_65 = arith.constant 0 : index
    %c0_66 = arith.constant 0 : index
    %51 = vector.load %arg16[%c0_65, %c0_66] : memref<8x384xf32, #tpu.memory_space<vmem>>, vector<1x384xf32>
    %52 = arith.truncf %51 : vector<1x384xf32> to vector<1x384xbf16>
    %53 = vector.extract_strided_slice %52 {offsets = [0, 1], sizes = [1, 383], strides = [1, 1]} : vector<1x384xbf16> to vector<1x383xbf16>
    %54 = vector.extract_strided_slice %52 {offsets = [0, 0], sizes = [1, 1], strides = [1, 1]} : vector<1x384xbf16> to vector<1x1xbf16>
    %55 = tpu.concatenate %53, %54 in 1 : vector<1x383xbf16>, vector<1x1xbf16> -> vector<1x384xbf16>
    %56 = vector.extract_strided_slice %52 {offsets = [0, 2], sizes = [1, 382], strides = [1, 1]} : vector<1x384xbf16> to vector<1x382xbf16>
    %57 = vector.extract_strided_slice %52 {offsets = [0, 0], sizes = [1, 2], strides = [1, 1]} : vector<1x384xbf16> to vector<1x2xbf16>
    %58 = tpu.concatenate %56, %57 in 1 : vector<1x382xbf16>, vector<1x2xbf16> -> vector<1x384xbf16>
    %59 = vector.extract_strided_slice %52 {offsets = [0, 18], sizes = [1, 366], strides = [1, 1]} : vector<1x384xbf16> to vector<1x366xbf16>
    %60 = vector.extract_strided_slice %52 {offsets = [0, 0], sizes = [1, 18], strides = [1, 1]} : vector<1x384xbf16> to vector<1x18xbf16>
    %61 = tpu.concatenate %59, %60 in 1 : vector<1x366xbf16>, vector<1x18xbf16> -> vector<1x384xbf16>
    %62 = vector.extract_strided_slice %52 {offsets = [0, 19], sizes = [1, 365], strides = [1, 1]} : vector<1x384xbf16> to vector<1x365xbf16>
    %63 = vector.extract_strided_slice %52 {offsets = [0, 0], sizes = [1, 19], strides = [1, 1]} : vector<1x384xbf16> to vector<1x19xbf16>
    %64 = tpu.concatenate %62, %63 in 1 : vector<1x365xbf16>, vector<1x19xbf16> -> vector<1x384xbf16>
    %65 = vector.extract_strided_slice %52 {offsets = [0, 20], sizes = [1, 364], strides = [1, 1]} : vector<1x384xbf16> to vector<1x364xbf16>
    %66 = vector.extract_strided_slice %52 {offsets = [0, 0], sizes = [1, 20], strides = [1, 1]} : vector<1x384xbf16> to vector<1x20xbf16>
    %67 = tpu.concatenate %65, %66 in 1 : vector<1x364xbf16>, vector<1x20xbf16> -> vector<1x384xbf16>
    %68 = vector.extract_strided_slice %52 {offsets = [0, 36], sizes = [1, 348], strides = [1, 1]} : vector<1x384xbf16> to vector<1x348xbf16>
    %69 = vector.extract_strided_slice %52 {offsets = [0, 0], sizes = [1, 36], strides = [1, 1]} : vector<1x384xbf16> to vector<1x36xbf16>
    %70 = tpu.concatenate %68, %69 in 1 : vector<1x348xbf16>, vector<1x36xbf16> -> vector<1x384xbf16>
    %71 = vector.extract_strided_slice %52 {offsets = [0, 37], sizes = [1, 347], strides = [1, 1]} : vector<1x384xbf16> to vector<1x347xbf16>
    %72 = vector.extract_strided_slice %52 {offsets = [0, 0], sizes = [1, 37], strides = [1, 1]} : vector<1x384xbf16> to vector<1x37xbf16>
    %73 = tpu.concatenate %71, %72 in 1 : vector<1x347xbf16>, vector<1x37xbf16> -> vector<1x384xbf16>
    %74 = vector.extract_strided_slice %52 {offsets = [0, 38], sizes = [1, 346], strides = [1, 1]} : vector<1x384xbf16> to vector<1x346xbf16>
    %75 = vector.extract_strided_slice %52 {offsets = [0, 0], sizes = [1, 38], strides = [1, 1]} : vector<1x384xbf16> to vector<1x38xbf16>
    %76 = tpu.concatenate %74, %75 in 1 : vector<1x346xbf16>, vector<1x38xbf16> -> vector<1x384xbf16>
    %77 = tpu.concatenate %52, %55, %58, %61, %64, %67, %70, %73, %76 in 0 : vector<1x384xbf16>, vector<1x384xbf16>, vector<1x384xbf16>, vector<1x384xbf16>, vector<1x384xbf16>, vector<1x384xbf16>, vector<1x384xbf16>, vector<1x384xbf16>, vector<1x384xbf16> -> vector<9x384xbf16>
    %c0_67 = arith.constant 0 : index
    %c0_68 = arith.constant 0 : index
    %78 = vector.load %arg17[%c0_67, %c0_68] : memref<64x384xbf16, #tpu.memory_space<vmem>>, vector<9x384xbf16>
    tpu.vector_store %arg17[%c0_67, %c0_68], %77 {strides = array<i32>} : memref<64x384xbf16, #tpu.memory_space<vmem>>, vector<9x384xbf16>,
    %c1_69 = arith.constant 1 : index
    %c0_70 = arith.constant 0 : index
    %79 = vector.load %arg16[%c1_69, %c0_70] : memref<8x384xf32, #tpu.memory_space<vmem>>, vector<1x384xf32>
    %80 = arith.truncf %79 : vector<1x384xf32> to vector<1x384xbf16>
    %81 = vector.extract_strided_slice %80 {offsets = [0, 1], sizes = [1, 383], strides = [1, 1]} : vector<1x384xbf16> to vector<1x383xbf16>
    %82 = vector.extract_strided_slice %80 {offsets = [0, 0], sizes = [1, 1], strides = [1, 1]} : vector<1x384xbf16> to vector<1x1xbf16>
    %83 = tpu.concatenate %81, %82 in 1 : vector<1x383xbf16>, vector<1x1xbf16> -> vector<1x384xbf16>
    %84 = vector.extract_strided_slice %80 {offsets = [0, 2], sizes = [1, 382], strides = [1, 1]} : vector<1x384xbf16> to vector<1x382xbf16>
    %85 = vector.extract_strided_slice %80 {offsets = [0, 0], sizes = [1, 2], strides = [1, 1]} : vector<1x384xbf16> to vector<1x2xbf16>
    %86 = tpu.concatenate %84, %85 in 1 : vector<1x382xbf16>, vector<1x2xbf16> -> vector<1x384xbf16>
    %87 = vector.extract_strided_slice %80 {offsets = [0, 18], sizes = [1, 366], strides = [1, 1]} : vector<1x384xbf16> to vector<1x366xbf16>
    %88 = vector.extract_strided_slice %80 {offsets = [0, 0], sizes = [1, 18], strides = [1, 1]} : vector<1x384xbf16> to vector<1x18xbf16>
    %89 = tpu.concatenate %87, %88 in 1 : vector<1x366xbf16>, vector<1x18xbf16> -> vector<1x384xbf16>
    %90 = vector.extract_strided_slice %80 {offsets = [0, 19], sizes = [1, 365], strides = [1, 1]} : vector<1x384xbf16> to vector<1x365xbf16>
    %91 = vector.extract_strided_slice %80 {offsets = [0, 0], sizes = [1, 19], strides = [1, 1]} : vector<1x384xbf16> to vector<1x19xbf16>
    %92 = tpu.concatenate %90, %91 in 1 : vector<1x365xbf16>, vector<1x19xbf16> -> vector<1x384xbf16>
    %93 = vector.extract_strided_slice %80 {offsets = [0, 20], sizes = [1, 364], strides = [1, 1]} : vector<1x384xbf16> to vector<1x364xbf16>
    %94 = vector.extract_strided_slice %80 {offsets = [0, 0], sizes = [1, 20], strides = [1, 1]} : vector<1x384xbf16> to vector<1x20xbf16>
    %95 = tpu.concatenate %93, %94 in 1 : vector<1x364xbf16>, vector<1x20xbf16> -> vector<1x384xbf16>
    %96 = vector.extract_strided_slice %80 {offsets = [0, 36], sizes = [1, 348], strides = [1, 1]} : vector<1x384xbf16> to vector<1x348xbf16>
    %97 = vector.extract_strided_slice %80 {offsets = [0, 0], sizes = [1, 36], strides = [1, 1]} : vector<1x384xbf16> to vector<1x36xbf16>
    %98 = tpu.concatenate %96, %97 in 1 : vector<1x348xbf16>, vector<1x36xbf16> -> vector<1x384xbf16>
    %99 = vector.extract_strided_slice %80 {offsets = [0, 37], sizes = [1, 347], strides = [1, 1]} : vector<1x384xbf16> to vector<1x347xbf16>
    %100 = vector.extract_strided_slice %80 {offsets = [0, 0], sizes = [1, 37], strides = [1, 1]} : vector<1x384xbf16> to vector<1x37xbf16>
    %101 = tpu.concatenate %99, %100 in 1 : vector<1x347xbf16>, vector<1x37xbf16> -> vector<1x384xbf16>
    %102 = vector.extract_strided_slice %80 {offsets = [0, 38], sizes = [1, 346], strides = [1, 1]} : vector<1x384xbf16> to vector<1x346xbf16>
    %103 = vector.extract_strided_slice %80 {offsets = [0, 0], sizes = [1, 38], strides = [1, 1]} : vector<1x384xbf16> to vector<1x38xbf16>
    %104 = tpu.concatenate %102, %103 in 1 : vector<1x346xbf16>, vector<1x38xbf16> -> vector<1x384xbf16>
    %105 = tpu.concatenate %80, %83, %86, %89, %92, %95, %98, %101, %104 in 0 : vector<1x384xbf16>, vector<1x384xbf16>, vector<1x384xbf16>, vector<1x384xbf16>, vector<1x384xbf16>, vector<1x384xbf16>, vector<1x384xbf16>, vector<1x384xbf16>, vector<1x384xbf16> -> vector<9x384xbf16>
    %c9_71 = arith.constant 9 : index
    %c0_72 = arith.constant 0 : index
    %106 = vector.load %arg17[%c9_71, %c0_72] : memref<64x384xbf16, #tpu.memory_space<vmem>>, vector<9x384xbf16>
    tpu.vector_store %arg17[%c9_71, %c0_72], %105 {strides = array<i32>} : memref<64x384xbf16, #tpu.memory_space<vmem>>, vector<9x384xbf16>,
    %c2_73 = arith.constant 2 : index
    %c0_74 = arith.constant 0 : index
    %107 = vector.load %arg16[%c2_73, %c0_74] : memref<8x384xf32, #tpu.memory_space<vmem>>, vector<1x384xf32>
    %108 = arith.truncf %107 : vector<1x384xf32> to vector<1x384xbf16>
    %109 = vector.extract_strided_slice %108 {offsets = [0, 1], sizes = [1, 383], strides = [1, 1]} : vector<1x384xbf16> to vector<1x383xbf16>
    %110 = vector.extract_strided_slice %108 {offsets = [0, 0], sizes = [1, 1], strides = [1, 1]} : vector<1x384xbf16> to vector<1x1xbf16>
    %111 = tpu.concatenate %109, %110 in 1 : vector<1x383xbf16>, vector<1x1xbf16> -> vector<1x384xbf16>
    %112 = vector.extract_strided_slice %108 {offsets = [0, 2], sizes = [1, 382], strides = [1, 1]} : vector<1x384xbf16> to vector<1x382xbf16>
    %113 = vector.extract_strided_slice %108 {offsets = [0, 0], sizes = [1, 2], strides = [1, 1]} : vector<1x384xbf16> to vector<1x2xbf16>
    %114 = tpu.concatenate %112, %113 in 1 : vector<1x382xbf16>, vector<1x2xbf16> -> vector<1x384xbf16>
    %115 = vector.extract_strided_slice %108 {offsets = [0, 18], sizes = [1, 366], strides = [1, 1]} : vector<1x384xbf16> to vector<1x366xbf16>
    %116 = vector.extract_strided_slice %108 {offsets = [0, 0], sizes = [1, 18], strides = [1, 1]} : vector<1x384xbf16> to vector<1x18xbf16>
    %117 = tpu.concatenate %115, %116 in 1 : vector<1x366xbf16>, vector<1x18xbf16> -> vector<1x384xbf16>
    %118 = vector.extract_strided_slice %108 {offsets = [0, 19], sizes = [1, 365], strides = [1, 1]} : vector<1x384xbf16> to vector<1x365xbf16>
    %119 = vector.extract_strided_slice %108 {offsets = [0, 0], sizes = [1, 19], strides = [1, 1]} : vector<1x384xbf16> to vector<1x19xbf16>
    %120 = tpu.concatenate %118, %119 in 1 : vector<1x365xbf16>, vector<1x19xbf16> -> vector<1x384xbf16>
    %121 = vector.extract_strided_slice %108 {offsets = [0, 20], sizes = [1, 364], strides = [1, 1]} : vector<1x384xbf16> to vector<1x364xbf16>
    %122 = vector.extract_strided_slice %108 {offsets = [0, 0], sizes = [1, 20], strides = [1, 1]} : vector<1x384xbf16> to vector<1x20xbf16>
    %123 = tpu.concatenate %121, %122 in 1 : vector<1x364xbf16>, vector<1x20xbf16> -> vector<1x384xbf16>
    %124 = vector.extract_strided_slice %108 {offsets = [0, 36], sizes = [1, 348], strides = [1, 1]} : vector<1x384xbf16> to vector<1x348xbf16>
    %125 = vector.extract_strided_slice %108 {offsets = [0, 0], sizes = [1, 36], strides = [1, 1]} : vector<1x384xbf16> to vector<1x36xbf16>
    %126 = tpu.concatenate %124, %125 in 1 : vector<1x348xbf16>, vector<1x36xbf16> -> vector<1x384xbf16>
    %127 = vector.extract_strided_slice %108 {offsets = [0, 37], sizes = [1, 347], strides = [1, 1]} : vector<1x384xbf16> to vector<1x347xbf16>
    %128 = vector.extract_strided_slice %108 {offsets = [0, 0], sizes = [1, 37], strides = [1, 1]} : vector<1x384xbf16> to vector<1x37xbf16>
    %129 = tpu.concatenate %127, %128 in 1 : vector<1x347xbf16>, vector<1x37xbf16> -> vector<1x384xbf16>
    %130 = vector.extract_strided_slice %108 {offsets = [0, 38], sizes = [1, 346], strides = [1, 1]} : vector<1x384xbf16> to vector<1x346xbf16>
    %131 = vector.extract_strided_slice %108 {offsets = [0, 0], sizes = [1, 38], strides = [1, 1]} : vector<1x384xbf16> to vector<1x38xbf16>
    %132 = tpu.concatenate %130, %131 in 1 : vector<1x346xbf16>, vector<1x38xbf16> -> vector<1x384xbf16>
    %133 = tpu.concatenate %108, %111, %114, %117, %120, %123, %126, %129, %132 in 0 : vector<1x384xbf16>, vector<1x384xbf16>, vector<1x384xbf16>, vector<1x384xbf16>, vector<1x384xbf16>, vector<1x384xbf16>, vector<1x384xbf16>, vector<1x384xbf16>, vector<1x384xbf16> -> vector<9x384xbf16>
    %c18 = arith.constant 18 : index
    %c0_75 = arith.constant 0 : index
    %134 = vector.load %arg17[%c18, %c0_75] : memref<64x384xbf16, #tpu.memory_space<vmem>>, vector<9x384xbf16>
    tpu.vector_store %arg17[%c18, %c0_75], %133 {strides = array<i32>} : memref<64x384xbf16, #tpu.memory_space<vmem>>, vector<9x384xbf16>,
    %c0_76 = arith.constant 0 : index
    %c0_77 = arith.constant 0 : index
    %135 = vector.load %arg17[%c0_76, %c0_77] : memref<64x384xbf16, #tpu.memory_space<vmem>>, vector<27x384xbf16>
    %c0_78 = arith.constant 0 : index
    %c0_79 = arith.constant 0 : index
    %136 = vector.load %arg3[%c0_78, %c0_79] : memref<128x27xbf16, #tpu.memory_space<vmem>>, vector<128x27xbf16>
    %cst = arith.constant dense<0.000000e+00> : vector<128x384xf32>
    %137 = tpu.matmul %136, %135, %cst {dimension_numbers = #tpu.dot_dimension_numbers<[1], [0], [0], [1], [0, 0, 1, 1], [], []>} : vector<128x27xbf16>, vector<27x384xbf16>, vector<128x384xf32> -> vector<128x384xf32>
    %c0_80 = arith.constant 0 : index
    %c0_81 = arith.constant 0 : index
    %138 = vector.load %arg4[%c0_80, %c0_81] : memref<128x1xf32, #tpu.memory_space<vmem>>, vector<128x1xf32>
    %139 = vector.broadcast %138 : vector<128x1xf32> to vector<128x384xf32>
    %140 = arith.addf %137, %139 : vector<128x384xf32>
    %cst_82 = arith.constant 0.000000e+00 : f32
    %141 = vector.broadcast %cst_82 : f32 to vector<128x384xf32>
    %142 = arith.maximumf %140, %141 : vector<128x384xf32>
    %143 = arith.truncf %142 : vector<128x384xf32> to vector<128x384xbf16>
    %c0_83 = arith.constant 0 : index
    %c0_84 = arith.constant 0 : index
    %144 = vector.load %arg5[%c0_83, %c0_84] : memref<3x128xbf16, #tpu.memory_space<vmem>>, vector<3x128xbf16>
    %cst_85 = arith.constant dense<0.000000e+00> : vector<3x384xf32>
    %145 = tpu.matmul %144, %143, %cst_85 {dimension_numbers = #tpu.dot_dimension_numbers<[1], [0], [0], [1], [0, 0, 1, 1], [], []>} : vector<3x128xbf16>, vector<128x384xbf16>, vector<3x384xf32> -> vector<3x384xf32>
    %c0_86 = arith.constant 0 : index
    %c0_87 = arith.constant 0 : index
    %146 = vector.load %arg6[%c0_86, %c0_87] : memref<3x1xf32, #tpu.memory_space<vmem>>, vector<3x1xf32>
    %147 = vector.broadcast %146 : vector<3x1xf32> to vector<3x384xf32>
    %148 = arith.addf %145, %147 : vector<3x384xf32>
    %c0_88 = arith.constant 0 : index
    %c0_89 = arith.constant 0 : index
    %c0_90 = arith.constant 0 : index
    %149 = vector.load %arg15[%c0_88, %c0_89, %c0_90] : memref<1x5x384xf32, #tpu.memory_space<vmem>>, vector<1x3x384xf32>
    %150 = vector.shape_cast %149 : vector<1x3x384xf32> to vector<3x384xf32>
    %151 = vector.shape_cast %148 : vector<3x384xf32> to vector<1x3x384xf32>
    tpu.vector_store %arg15[%c0_88, %c0_89, %c0_90], %151 {strides = array<i32>} : memref<1x5x384xf32, #tpu.memory_space<vmem>>, vector<1x3x384xf32>,
    %cst_91 = arith.constant dense<0xFF800000> : vector<384xf32>
    %152 = vector.multi_reduction <maximumf>, %148, %cst_91 [0] : vector<3x384xf32> to vector<384xf32>
    %153 = vector.shape_cast %152 : vector<384xf32> to vector<1x384xf32>
    %154 = vector.broadcast %153 : vector<1x384xf32> to vector<3x384xf32>
    %155 = arith.subf %148, %154 : vector<3x384xf32>
    %156 = math.exp %155 : vector<3x384xf32>
    %cst_92 = arith.constant dense<0.000000e+00> : vector<384xf32>
    %157 = vector.multi_reduction <add>, %156, %cst_92 [0] : vector<3x384xf32> to vector<384xf32>
    %158 = vector.shape_cast %157 : vector<384xf32> to vector<1x384xf32>
    %159 = tpu.reciprocal %158 {approx = true} : vector<1x384xf32> -> vector<1x384xf32>
    %160 = vector.broadcast %159 : vector<1x384xf32> to vector<3x384xf32>
    %161 = arith.mulf %156, %160 : vector<3x384xf32>
    %162 = vector.extract_strided_slice %161 {offsets = [0, 365], sizes = [3, 19], strides = [1, 1]} : vector<3x384xf32> to vector<3x19xf32>
    %163 = vector.extract_strided_slice %161 {offsets = [0, 0], sizes = [3, 365], strides = [1, 1]} : vector<3x384xf32> to vector<3x365xf32>
    %164 = tpu.concatenate %162, %163 in 1 : vector<3x19xf32>, vector<3x365xf32> -> vector<3x384xf32>
    %c0_93 = arith.constant 0 : index
    %c0_94 = arith.constant 0 : index
    %165 = vector.load %arg2[%c0_93, %c0_94] : memref<1x384xf32, #tpu.memory_space<vmem>>, vector<1x384xf32>
    %cst_95 = arith.constant 1.000000e+00 : f32
    %166 = vector.broadcast %cst_95 : f32 to vector<1x384xf32>
    %167 = arith.cmpf oeq, %165, %166 : vector<1x384xf32>
    %cst_96 = arith.constant 0.000000e+00 : f32
    %168 = vector.shape_cast %167 : vector<1x384xi1> to vector<1x384xi1>
    %169 = vector.broadcast %168 : vector<1x384xi1> to vector<3x384xi1>
    %170 = vector.broadcast %cst_96 : f32 to vector<3x384xf32>
    %171 = arith.select %169, %164, %170 : vector<3x384xi1>, vector<3x384xf32>
    %c3_97 = arith.constant 3 : index
    %c0_98 = arith.constant 0 : index
    %172 = vector.load %arg16[%c3_97, %c0_98] : memref<8x384xf32, #tpu.memory_space<vmem>>, vector<3x384xf32>
    tpu.vector_store %arg16[%c3_97, %c0_98], %171 {strides = array<i32>} : memref<8x384xf32, #tpu.memory_space<vmem>>, vector<3x384xf32>,
    %c3_99 = arith.constant 3 : index
    %c0_100 = arith.constant 0 : index
    %173 = vector.load %arg16[%c3_99, %c0_100] : memref<8x384xf32, #tpu.memory_space<vmem>>, vector<1x384xf32>
    %174 = arith.truncf %173 : vector<1x384xf32> to vector<1x384xbf16>
    %175 = vector.extract_strided_slice %174 {offsets = [0, 1], sizes = [1, 383], strides = [1, 1]} : vector<1x384xbf16> to vector<1x383xbf16>
    %176 = vector.extract_strided_slice %174 {offsets = [0, 0], sizes = [1, 1], strides = [1, 1]} : vector<1x384xbf16> to vector<1x1xbf16>
    %177 = tpu.concatenate %175, %176 in 1 : vector<1x383xbf16>, vector<1x1xbf16> -> vector<1x384xbf16>
    %178 = vector.extract_strided_slice %174 {offsets = [0, 2], sizes = [1, 382], strides = [1, 1]} : vector<1x384xbf16> to vector<1x382xbf16>
    %179 = vector.extract_strided_slice %174 {offsets = [0, 0], sizes = [1, 2], strides = [1, 1]} : vector<1x384xbf16> to vector<1x2xbf16>
    %180 = tpu.concatenate %178, %179 in 1 : vector<1x382xbf16>, vector<1x2xbf16> -> vector<1x384xbf16>
    %181 = vector.extract_strided_slice %174 {offsets = [0, 18], sizes = [1, 366], strides = [1, 1]} : vector<1x384xbf16> to vector<1x366xbf16>
    %182 = vector.extract_strided_slice %174 {offsets = [0, 0], sizes = [1, 18], strides = [1, 1]} : vector<1x384xbf16> to vector<1x18xbf16>
    %183 = tpu.concatenate %181, %182 in 1 : vector<1x366xbf16>, vector<1x18xbf16> -> vector<1x384xbf16>
    %184 = vector.extract_strided_slice %174 {offsets = [0, 19], sizes = [1, 365], strides = [1, 1]} : vector<1x384xbf16> to vector<1x365xbf16>
    %185 = vector.extract_strided_slice %174 {offsets = [0, 0], sizes = [1, 19], strides = [1, 1]} : vector<1x384xbf16> to vector<1x19xbf16>
    %186 = tpu.concatenate %184, %185 in 1 : vector<1x365xbf16>, vector<1x19xbf16> -> vector<1x384xbf16>
    %187 = vector.extract_strided_slice %174 {offsets = [0, 20], sizes = [1, 364], strides = [1, 1]} : vector<1x384xbf16> to vector<1x364xbf16>
    %188 = vector.extract_strided_slice %174 {offsets = [0, 0], sizes = [1, 20], strides = [1, 1]} : vector<1x384xbf16> to vector<1x20xbf16>
    %189 = tpu.concatenate %187, %188 in 1 : vector<1x364xbf16>, vector<1x20xbf16> -> vector<1x384xbf16>
    %190 = vector.extract_strided_slice %174 {offsets = [0, 36], sizes = [1, 348], strides = [1, 1]} : vector<1x384xbf16> to vector<1x348xbf16>
    %191 = vector.extract_strided_slice %174 {offsets = [0, 0], sizes = [1, 36], strides = [1, 1]} : vector<1x384xbf16> to vector<1x36xbf16>
    %192 = tpu.concatenate %190, %191 in 1 : vector<1x348xbf16>, vector<1x36xbf16> -> vector<1x384xbf16>
    %193 = vector.extract_strided_slice %174 {offsets = [0, 37], sizes = [1, 347], strides = [1, 1]} : vector<1x384xbf16> to vector<1x347xbf16>
    %194 = vector.extract_strided_slice %174 {offsets = [0, 0], sizes = [1, 37], strides = [1, 1]} : vector<1x384xbf16> to vector<1x37xbf16>
    %195 = tpu.concatenate %193, %194 in 1 : vector<1x347xbf16>, vector<1x37xbf16> -> vector<1x384xbf16>
    %196 = vector.extract_strided_slice %174 {offsets = [0, 38], sizes = [1, 346], strides = [1, 1]} : vector<1x384xbf16> to vector<1x346xbf16>
    %197 = vector.extract_strided_slice %174 {offsets = [0, 0], sizes = [1, 38], strides = [1, 1]} : vector<1x384xbf16> to vector<1x38xbf16>
    %198 = tpu.concatenate %196, %197 in 1 : vector<1x346xbf16>, vector<1x38xbf16> -> vector<1x384xbf16>
    %199 = tpu.concatenate %174, %177, %180, %183, %186, %189, %192, %195, %198 in 0 : vector<1x384xbf16>, vector<1x384xbf16>, vector<1x384xbf16>, vector<1x384xbf16>, vector<1x384xbf16>, vector<1x384xbf16>, vector<1x384xbf16>, vector<1x384xbf16>, vector<1x384xbf16> -> vector<9x384xbf16>
    %c27 = arith.constant 27 : index
    %c0_101 = arith.constant 0 : index
    %200 = vector.load %arg17[%c27, %c0_101] : memref<64x384xbf16, #tpu.memory_space<vmem>>, vector<9x384xbf16>
    tpu.vector_store %arg17[%c27, %c0_101], %199 {strides = array<i32>} : memref<64x384xbf16, #tpu.memory_space<vmem>>, vector<9x384xbf16>,
    %c4_102 = arith.constant 4 : index
    %c0_103 = arith.constant 0 : index
    %201 = vector.load %arg16[%c4_102, %c0_103] : memref<8x384xf32, #tpu.memory_space<vmem>>, vector<1x384xf32>
    %202 = arith.truncf %201 : vector<1x384xf32> to vector<1x384xbf16>
    %203 = vector.extract_strided_slice %202 {offsets = [0, 1], sizes = [1, 383], strides = [1, 1]} : vector<1x384xbf16> to vector<1x383xbf16>
    %204 = vector.extract_strided_slice %202 {offsets = [0, 0], sizes = [1, 1], strides = [1, 1]} : vector<1x384xbf16> to vector<1x1xbf16>
    %205 = tpu.concatenate %203, %204 in 1 : vector<1x383xbf16>, vector<1x1xbf16> -> vector<1x384xbf16>
    %206 = vector.extract_strided_slice %202 {offsets = [0, 2], sizes = [1, 382], strides = [1, 1]} : vector<1x384xbf16> to vector<1x382xbf16>
    %207 = vector.extract_strided_slice %202 {offsets = [0, 0], sizes = [1, 2], strides = [1, 1]} : vector<1x384xbf16> to vector<1x2xbf16>
    %208 = tpu.concatenate %206, %207 in 1 : vector<1x382xbf16>, vector<1x2xbf16> -> vector<1x384xbf16>
    %209 = vector.extract_strided_slice %202 {offsets = [0, 18], sizes = [1, 366], strides = [1, 1]} : vector<1x384xbf16> to vector<1x366xbf16>
    %210 = vector.extract_strided_slice %202 {offsets = [0, 0], sizes = [1, 18], strides = [1, 1]} : vector<1x384xbf16> to vector<1x18xbf16>
    %211 = tpu.concatenate %209, %210 in 1 : vector<1x366xbf16>, vector<1x18xbf16> -> vector<1x384xbf16>
    %212 = vector.extract_strided_slice %202 {offsets = [0, 19], sizes = [1, 365], strides = [1, 1]} : vector<1x384xbf16> to vector<1x365xbf16>
    %213 = vector.extract_strided_slice %202 {offsets = [0, 0], sizes = [1, 19], strides = [1, 1]} : vector<1x384xbf16> to vector<1x19xbf16>
    %214 = tpu.concatenate %212, %213 in 1 : vector<1x365xbf16>, vector<1x19xbf16> -> vector<1x384xbf16>
    %215 = vector.extract_strided_slice %202 {offsets = [0, 20], sizes = [1, 364], strides = [1, 1]} : vector<1x384xbf16> to vector<1x364xbf16>
    %216 = vector.extract_strided_slice %202 {offsets = [0, 0], sizes = [1, 20], strides = [1, 1]} : vector<1x384xbf16> to vector<1x20xbf16>
    %217 = tpu.concatenate %215, %216 in 1 : vector<1x364xbf16>, vector<1x20xbf16> -> vector<1x384xbf16>
    %218 = vector.extract_strided_slice %202 {offsets = [0, 36], sizes = [1, 348], strides = [1, 1]} : vector<1x384xbf16> to vector<1x348xbf16>
    %219 = vector.extract_strided_slice %202 {offsets = [0, 0], sizes = [1, 36], strides = [1, 1]} : vector<1x384xbf16> to vector<1x36xbf16>
    %220 = tpu.concatenate %218, %219 in 1 : vector<1x348xbf16>, vector<1x36xbf16> -> vector<1x384xbf16>
    %221 = vector.extract_strided_slice %202 {offsets = [0, 37], sizes = [1, 347], strides = [1, 1]} : vector<1x384xbf16> to vector<1x347xbf16>
    %222 = vector.extract_strided_slice %202 {offsets = [0, 0], sizes = [1, 37], strides = [1, 1]} : vector<1x384xbf16> to vector<1x37xbf16>
    %223 = tpu.concatenate %221, %222 in 1 : vector<1x347xbf16>, vector<1x37xbf16> -> vector<1x384xbf16>
    %224 = vector.extract_strided_slice %202 {offsets = [0, 38], sizes = [1, 346], strides = [1, 1]} : vector<1x384xbf16> to vector<1x346xbf16>
    %225 = vector.extract_strided_slice %202 {offsets = [0, 0], sizes = [1, 38], strides = [1, 1]} : vector<1x384xbf16> to vector<1x38xbf16>
    %226 = tpu.concatenate %224, %225 in 1 : vector<1x346xbf16>, vector<1x38xbf16> -> vector<1x384xbf16>
    %227 = tpu.concatenate %202, %205, %208, %211, %214, %217, %220, %223, %226 in 0 : vector<1x384xbf16>, vector<1x384xbf16>, vector<1x384xbf16>, vector<1x384xbf16>, vector<1x384xbf16>, vector<1x384xbf16>, vector<1x384xbf16>, vector<1x384xbf16>, vector<1x384xbf16> -> vector<9x384xbf16>
    %c36 = arith.constant 36 : index
    %c0_104 = arith.constant 0 : index
    %228 = vector.load %arg17[%c36, %c0_104] : memref<64x384xbf16, #tpu.memory_space<vmem>>, vector<9x384xbf16>
    tpu.vector_store %arg17[%c36, %c0_104], %227 {strides = array<i32>} : memref<64x384xbf16, #tpu.memory_space<vmem>>, vector<9x384xbf16>,
    %c5_105 = arith.constant 5 : index
    %c0_106 = arith.constant 0 : index
    %229 = vector.load %arg16[%c5_105, %c0_106] : memref<8x384xf32, #tpu.memory_space<vmem>>, vector<1x384xf32>
    %230 = arith.truncf %229 : vector<1x384xf32> to vector<1x384xbf16>
    %231 = vector.extract_strided_slice %230 {offsets = [0, 1], sizes = [1, 383], strides = [1, 1]} : vector<1x384xbf16> to vector<1x383xbf16>
    %232 = vector.extract_strided_slice %230 {offsets = [0, 0], sizes = [1, 1], strides = [1, 1]} : vector<1x384xbf16> to vector<1x1xbf16>
    %233 = tpu.concatenate %231, %232 in 1 : vector<1x383xbf16>, vector<1x1xbf16> -> vector<1x384xbf16>
    %234 = vector.extract_strided_slice %230 {offsets = [0, 2], sizes = [1, 382], strides = [1, 1]} : vector<1x384xbf16> to vector<1x382xbf16>
    %235 = vector.extract_strided_slice %230 {offsets = [0, 0], sizes = [1, 2], strides = [1, 1]} : vector<1x384xbf16> to vector<1x2xbf16>
    %236 = tpu.concatenate %234, %235 in 1 : vector<1x382xbf16>, vector<1x2xbf16> -> vector<1x384xbf16>
    %237 = vector.extract_strided_slice %230 {offsets = [0, 18], sizes = [1, 366], strides = [1, 1]} : vector<1x384xbf16> to vector<1x366xbf16>
    %238 = vector.extract_strided_slice %230 {offsets = [0, 0], sizes = [1, 18], strides = [1, 1]} : vector<1x384xbf16> to vector<1x18xbf16>
    %239 = tpu.concatenate %237, %238 in 1 : vector<1x366xbf16>, vector<1x18xbf16> -> vector<1x384xbf16>
    %240 = vector.extract_strided_slice %230 {offsets = [0, 19], sizes = [1, 365], strides = [1, 1]} : vector<1x384xbf16> to vector<1x365xbf16>
    %241 = vector.extract_strided_slice %230 {offsets = [0, 0], sizes = [1, 19], strides = [1, 1]} : vector<1x384xbf16> to vector<1x19xbf16>
    %242 = tpu.concatenate %240, %241 in 1 : vector<1x365xbf16>, vector<1x19xbf16> -> vector<1x384xbf16>
    %243 = vector.extract_strided_slice %230 {offsets = [0, 20], sizes = [1, 364], strides = [1, 1]} : vector<1x384xbf16> to vector<1x364xbf16>
    %244 = vector.extract_strided_slice %230 {offsets = [0, 0], sizes = [1, 20], strides = [1, 1]} : vector<1x384xbf16> to vector<1x20xbf16>
    %245 = tpu.concatenate %243, %244 in 1 : vector<1x364xbf16>, vector<1x20xbf16> -> vector<1x384xbf16>
    %246 = vector.extract_strided_slice %230 {offsets = [0, 36], sizes = [1, 348], strides = [1, 1]} : vector<1x384xbf16> to vector<1x348xbf16>
    %247 = vector.extract_strided_slice %230 {offsets = [0, 0], sizes = [1, 36], strides = [1, 1]} : vector<1x384xbf16> to vector<1x36xbf16>
    %248 = tpu.concatenate %246, %247 in 1 : vector<1x348xbf16>, vector<1x36xbf16> -> vector<1x384xbf16>
    %249 = vector.extract_strided_slice %230 {offsets = [0, 37], sizes = [1, 347], strides = [1, 1]} : vector<1x384xbf16> to vector<1x347xbf16>
    %250 = vector.extract_strided_slice %230 {offsets = [0, 0], sizes = [1, 37], strides = [1, 1]} : vector<1x384xbf16> to vector<1x37xbf16>
    %251 = tpu.concatenate %249, %250 in 1 : vector<1x347xbf16>, vector<1x37xbf16> -> vector<1x384xbf16>
    %252 = vector.extract_strided_slice %230 {offsets = [0, 38], sizes = [1, 346], strides = [1, 1]} : vector<1x384xbf16> to vector<1x346xbf16>
    %253 = vector.extract_strided_slice %230 {offsets = [0, 0], sizes = [1, 38], strides = [1, 1]} : vector<1x384xbf16> to vector<1x38xbf16>
    %254 = tpu.concatenate %252, %253 in 1 : vector<1x346xbf16>, vector<1x38xbf16> -> vector<1x384xbf16>
    %255 = tpu.concatenate %230, %233, %236, %239, %242, %245, %248, %251, %254 in 0 : vector<1x384xbf16>, vector<1x384xbf16>, vector<1x384xbf16>, vector<1x384xbf16>, vector<1x384xbf16>, vector<1x384xbf16>, vector<1x384xbf16>, vector<1x384xbf16>, vector<1x384xbf16> -> vector<9x384xbf16>
    %c45 = arith.constant 45 : index
    %c0_107 = arith.constant 0 : index
    %256 = vector.load %arg17[%c45, %c0_107] : memref<64x384xbf16, #tpu.memory_space<vmem>>, vector<9x384xbf16>
    tpu.vector_store %arg17[%c45, %c0_107], %255 {strides = array<i32>} : memref<64x384xbf16, #tpu.memory_space<vmem>>, vector<9x384xbf16>,
    %c0_108 = arith.constant 0 : index
    %c0_109 = arith.constant 0 : index
    %257 = vector.load %arg17[%c0_108, %c0_109] : memref<64x384xbf16, #tpu.memory_space<vmem>>, vector<54x384xbf16>
    %c0_110 = arith.constant 0 : index
    %c0_111 = arith.constant 0 : index
    %258 = vector.load %arg7[%c0_110, %c0_111] : memref<128x54xbf16, #tpu.memory_space<vmem>>, vector<128x54xbf16>
    %cst_112 = arith.constant dense<0.000000e+00> : vector<128x384xf32>
    %259 = tpu.matmul %258, %257, %cst_112 {dimension_numbers = #tpu.dot_dimension_numbers<[1], [0], [0], [1], [0, 0, 1, 1], [], []>} : vector<128x54xbf16>, vector<54x384xbf16>, vector<128x384xf32> -> vector<128x384xf32>
    %c0_113 = arith.constant 0 : index
    %c0_114 = arith.constant 0 : index
    %260 = vector.load %arg8[%c0_113, %c0_114] : memref<128x1xf32, #tpu.memory_space<vmem>>, vector<128x1xf32>
    %261 = vector.broadcast %260 : vector<128x1xf32> to vector<128x384xf32>
    %262 = arith.addf %259, %261 : vector<128x384xf32>
    %cst_115 = arith.constant 0.000000e+00 : f32
    %263 = vector.broadcast %cst_115 : f32 to vector<128x384xf32>
    %264 = arith.maximumf %262, %263 : vector<128x384xf32>
    %265 = arith.truncf %264 : vector<128x384xf32> to vector<128x384xbf16>
    %c0_116 = arith.constant 0 : index
    %c0_117 = arith.constant 0 : index
    %266 = vector.load %arg9[%c0_116, %c0_117] : memref<1x128xbf16, #tpu.memory_space<vmem>>, vector<1x128xbf16>
    %cst_118 = arith.constant dense<0.000000e+00> : vector<1x384xf32>
    %267 = tpu.matmul %266, %265, %cst_118 {dimension_numbers = #tpu.dot_dimension_numbers<[1], [0], [0], [1], [0, 0, 1, 1], [], []>} : vector<1x128xbf16>, vector<128x384xbf16>, vector<1x384xf32> -> vector<1x384xf32>
    %c0_119 = arith.constant 0 : index
    %c0_120 = arith.constant 0 : index
    %268 = vector.load %arg10[%c0_119, %c0_120] : memref<1x1xf32, #tpu.memory_space<vmem>>, vector<1x1xf32>
    %269 = vector.broadcast %268 : vector<1x1xf32> to vector<1x384xf32>
    %270 = arith.addf %267, %269 : vector<1x384xf32>
    %cst_121 = arith.constant 0.000000e+00 : f32
    %271 = vector.broadcast %cst_121 : f32 to vector<1x384xf32>
    %272 = arith.subf %271, %270 : vector<1x384xf32>
    %273 = math.exp %272 : vector<1x384xf32>
    %cst_122 = arith.constant 1.000000e+00 : f32
    %274 = vector.broadcast %cst_122 : f32 to vector<1x384xf32>
    %275 = arith.addf %274, %273 : vector<1x384xf32>
    %276 = tpu.reciprocal %275 {approx = true} : vector<1x384xf32> -> vector<1x384xf32>
    %c0_123 = arith.constant 0 : index
    %c3_124 = arith.constant 3 : index
    %c0_125 = arith.constant 0 : index
    %277 = vector.load %arg15[%c0_123, %c3_124, %c0_125] : memref<1x5x384xf32, #tpu.memory_space<vmem>>, vector<1x1x384xf32>
    %278 = vector.shape_cast %277 : vector<1x1x384xf32> to vector<1x384xf32>
    %279 = vector.shape_cast %276 : vector<1x384xf32> to vector<1x1x384xf32>
    tpu.vector_store %arg15[%c0_123, %c3_124, %c0_125], %279 {strides = array<i32>} : memref<1x5x384xf32, #tpu.memory_space<vmem>>, vector<1x1x384xf32>,
    %280 = vector.extract_strided_slice %276 {offsets = [0, 365], sizes = [1, 19], strides = [1, 1]} : vector<1x384xf32> to vector<1x19xf32>
    %281 = vector.extract_strided_slice %276 {offsets = [0, 0], sizes = [1, 365], strides = [1, 1]} : vector<1x384xf32> to vector<1x365xf32>
    %282 = tpu.concatenate %280, %281 in 1 : vector<1x19xf32>, vector<1x365xf32> -> vector<1x384xf32>
    %c0_126 = arith.constant 0 : index
    %c0_127 = arith.constant 0 : index
    %283 = vector.load %arg2[%c0_126, %c0_127] : memref<1x384xf32, #tpu.memory_space<vmem>>, vector<1x384xf32>
    %cst_128 = arith.constant 1.000000e+00 : f32
    %284 = vector.broadcast %cst_128 : f32 to vector<1x384xf32>
    %285 = arith.cmpf oeq, %283, %284 : vector<1x384xf32>
    %cst_129 = arith.constant 0.000000e+00 : f32
    %286 = vector.broadcast %cst_129 : f32 to vector<1x384xf32>
    %287 = arith.select %285, %282, %286 : vector<1x384xi1>, vector<1x384xf32>
    %c6_130 = arith.constant 6 : index
    %c0_131 = arith.constant 0 : index
    %288 = vector.load %arg16[%c6_130, %c0_131] : memref<8x384xf32, #tpu.memory_space<vmem>>, vector<1x384xf32>
    tpu.vector_store %arg16[%c6_130, %c0_131], %287 {strides = array<i32>} : memref<8x384xf32, #tpu.memory_space<vmem>>, vector<1x384xf32>,
    %c6_132 = arith.constant 6 : index
    %c0_133 = arith.constant 0 : index
    %289 = vector.load %arg16[%c6_132, %c0_133] : memref<8x384xf32, #tpu.memory_space<vmem>>, vector<1x384xf32>
    %290 = arith.truncf %289 : vector<1x384xf32> to vector<1x384xbf16>
    %291 = vector.extract_strided_slice %290 {offsets = [0, 1], sizes = [1, 383], strides = [1, 1]} : vector<1x384xbf16> to vector<1x383xbf16>
    %292 = vector.extract_strided_slice %290 {offsets = [0, 0], sizes = [1, 1], strides = [1, 1]} : vector<1x384xbf16> to vector<1x1xbf16>
    %293 = tpu.concatenate %291, %292 in 1 : vector<1x383xbf16>, vector<1x1xbf16> -> vector<1x384xbf16>
    %294 = vector.extract_strided_slice %290 {offsets = [0, 2], sizes = [1, 382], strides = [1, 1]} : vector<1x384xbf16> to vector<1x382xbf16>
    %295 = vector.extract_strided_slice %290 {offsets = [0, 0], sizes = [1, 2], strides = [1, 1]} : vector<1x384xbf16> to vector<1x2xbf16>
    %296 = tpu.concatenate %294, %295 in 1 : vector<1x382xbf16>, vector<1x2xbf16> -> vector<1x384xbf16>
    %297 = vector.extract_strided_slice %290 {offsets = [0, 18], sizes = [1, 366], strides = [1, 1]} : vector<1x384xbf16> to vector<1x366xbf16>
    %298 = vector.extract_strided_slice %290 {offsets = [0, 0], sizes = [1, 18], strides = [1, 1]} : vector<1x384xbf16> to vector<1x18xbf16>
    %299 = tpu.concatenate %297, %298 in 1 : vector<1x366xbf16>, vector<1x18xbf16> -> vector<1x384xbf16>
    %300 = vector.extract_strided_slice %290 {offsets = [0, 19], sizes = [1, 365], strides = [1, 1]} : vector<1x384xbf16> to vector<1x365xbf16>
    %301 = vector.extract_strided_slice %290 {offsets = [0, 0], sizes = [1, 19], strides = [1, 1]} : vector<1x384xbf16> to vector<1x19xbf16>
    %302 = tpu.concatenate %300, %301 in 1 : vector<1x365xbf16>, vector<1x19xbf16> -> vector<1x384xbf16>
    %303 = vector.extract_strided_slice %290 {offsets = [0, 20], sizes = [1, 364], strides = [1, 1]} : vector<1x384xbf16> to vector<1x364xbf16>
    %304 = vector.extract_strided_slice %290 {offsets = [0, 0], sizes = [1, 20], strides = [1, 1]} : vector<1x384xbf16> to vector<1x20xbf16>
    %305 = tpu.concatenate %303, %304 in 1 : vector<1x364xbf16>, vector<1x20xbf16> -> vector<1x384xbf16>
    %306 = vector.extract_strided_slice %290 {offsets = [0, 36], sizes = [1, 348], strides = [1, 1]} : vector<1x384xbf16> to vector<1x348xbf16>
    %307 = vector.extract_strided_slice %290 {offsets = [0, 0], sizes = [1, 36], strides = [1, 1]} : vector<1x384xbf16> to vector<1x36xbf16>
    %308 = tpu.concatenate %306, %307 in 1 : vector<1x348xbf16>, vector<1x36xbf16> -> vector<1x384xbf16>
    %309 = vector.extract_strided_slice %290 {offsets = [0, 37], sizes = [1, 347], strides = [1, 1]} : vector<1x384xbf16> to vector<1x347xbf16>
    %310 = vector.extract_strided_slice %290 {offsets = [0, 0], sizes = [1, 37], strides = [1, 1]} : vector<1x384xbf16> to vector<1x37xbf16>
    %311 = tpu.concatenate %309, %310 in 1 : vector<1x347xbf16>, vector<1x37xbf16> -> vector<1x384xbf16>
    %312 = vector.extract_strided_slice %290 {offsets = [0, 38], sizes = [1, 346], strides = [1, 1]} : vector<1x384xbf16> to vector<1x346xbf16>
    %313 = vector.extract_strided_slice %290 {offsets = [0, 0], sizes = [1, 38], strides = [1, 1]} : vector<1x384xbf16> to vector<1x38xbf16>
    %314 = tpu.concatenate %312, %313 in 1 : vector<1x346xbf16>, vector<1x38xbf16> -> vector<1x384xbf16>
    %315 = tpu.concatenate %290, %293, %296, %299, %302, %305, %308, %311, %314 in 0 : vector<1x384xbf16>, vector<1x384xbf16>, vector<1x384xbf16>, vector<1x384xbf16>, vector<1x384xbf16>, vector<1x384xbf16>, vector<1x384xbf16>, vector<1x384xbf16>, vector<1x384xbf16> -> vector<9x384xbf16>
    %c54 = arith.constant 54 : index
    %c0_134 = arith.constant 0 : index
    %316 = vector.load %arg17[%c54, %c0_134] : memref<64x384xbf16, #tpu.memory_space<vmem>>, vector<9x384xbf16>
    tpu.vector_store %arg17[%c54, %c0_134], %315 {strides = array<i32>} : memref<64x384xbf16, #tpu.memory_space<vmem>>, vector<9x384xbf16>,
    %c0_135 = arith.constant 0 : index
    %c0_136 = arith.constant 0 : index
    %317 = vector.load %arg17[%c0_135, %c0_136] : memref<64x384xbf16, #tpu.memory_space<vmem>>, vector<63x384xbf16>
    %c0_137 = arith.constant 0 : index
    %c0_138 = arith.constant 0 : index
    %318 = vector.load %arg11[%c0_137, %c0_138] : memref<128x63xbf16, #tpu.memory_space<vmem>>, vector<128x63xbf16>
    %cst_139 = arith.constant dense<0.000000e+00> : vector<128x384xf32>
    %319 = tpu.matmul %318, %317, %cst_139 {dimension_numbers = #tpu.dot_dimension_numbers<[1], [0], [0], [1], [0, 0, 1, 1], [], []>} : vector<128x63xbf16>, vector<63x384xbf16>, vector<128x384xf32> -> vector<128x384xf32>
    %c0_140 = arith.constant 0 : index
    %c0_141 = arith.constant 0 : index
    %320 = vector.load %arg12[%c0_140, %c0_141] : memref<128x1xf32, #tpu.memory_space<vmem>>, vector<128x1xf32>
    %321 = vector.broadcast %320 : vector<128x1xf32> to vector<128x384xf32>
    %322 = arith.addf %319, %321 : vector<128x384xf32>
    %cst_142 = arith.constant 0.000000e+00 : f32
    %323 = vector.broadcast %cst_142 : f32 to vector<128x384xf32>
    %324 = arith.maximumf %322, %323 : vector<128x384xf32>
    %325 = arith.truncf %324 : vector<128x384xf32> to vector<128x384xbf16>
    %c0_143 = arith.constant 0 : index
    %c0_144 = arith.constant 0 : index
    %326 = vector.load %arg13[%c0_143, %c0_144] : memref<1x128xbf16, #tpu.memory_space<vmem>>, vector<1x128xbf16>
    %cst_145 = arith.constant dense<0.000000e+00> : vector<1x384xf32>
    %327 = tpu.matmul %326, %325, %cst_145 {dimension_numbers = #tpu.dot_dimension_numbers<[1], [0], [0], [1], [0, 0, 1, 1], [], []>} : vector<1x128xbf16>, vector<128x384xbf16>, vector<1x384xf32> -> vector<1x384xf32>
    %c0_146 = arith.constant 0 : index
    %c0_147 = arith.constant 0 : index
    %328 = vector.load %arg14[%c0_146, %c0_147] : memref<1x1xf32, #tpu.memory_space<vmem>>, vector<1x1xf32>
    %329 = vector.broadcast %328 : vector<1x1xf32> to vector<1x384xf32>
    %330 = arith.addf %327, %329 : vector<1x384xf32>
    %cst_148 = arith.constant 0.000000e+00 : f32
    %331 = vector.broadcast %cst_148 : f32 to vector<1x384xf32>
    %332 = arith.subf %331, %330 : vector<1x384xf32>
    %333 = math.exp %332 : vector<1x384xf32>
    %cst_149 = arith.constant 1.000000e+00 : f32
    %334 = vector.broadcast %cst_149 : f32 to vector<1x384xf32>
    %335 = arith.addf %334, %333 : vector<1x384xf32>
    %336 = tpu.reciprocal %335 {approx = true} : vector<1x384xf32> -> vector<1x384xf32>
    %c0_150 = arith.constant 0 : index
    %c4_151 = arith.constant 4 : index
    %c0_152 = arith.constant 0 : index
    %337 = vector.load %arg15[%c0_150, %c4_151, %c0_152] : memref<1x5x384xf32, #tpu.memory_space<vmem>>, vector<1x1x384xf32>
    %338 = vector.shape_cast %337 : vector<1x1x384xf32> to vector<1x384xf32>
    %339 = vector.shape_cast %336 : vector<1x384xf32> to vector<1x1x384xf32>
    tpu.vector_store %arg15[%c0_150, %c4_151, %c0_152], %339 {strides = array<i32>} : memref<1x5x384xf32, #tpu.memory_space<vmem>>, vector<1x1x384xf32>,
    return
  }
  func.func @transform_0(%arg0: i32) -> (i32, i32, i32, i32) {
    %c0_i32 = arith.constant 0 : i32
    %c0_i32_0 = arith.constant 0 : i32
    %c0_i32_1 = arith.constant 0 : i32
    %c0_i32_2 = arith.constant 0 : i32
    return %arg0, %c0_i32, %c0_i32_0, %c0_i32_1 : i32, i32, i32, i32
  }
  func.func @transform_1(%arg0: i32) -> (i32, i32) {
    %c0_i32 = arith.constant 0 : i32
    %c0_i32_0 = arith.constant 0 : i32
    %c0_i32_1 = arith.constant 0 : i32
    return %c0_i32, %c0_i32_0 : i32, i32
  }
  func.func @transform_2(%arg0: i32) -> (i32, i32) {
    %c0_i32 = arith.constant 0 : i32
    %c0_i32_0 = arith.constant 0 : i32
    %c0_i32_1 = arith.constant 0 : i32
    return %c0_i32, %c0_i32_0 : i32, i32
  }
  func.func @transform_3(%arg0: i32) -> (i32, i32) {
    %c0_i32 = arith.constant 0 : i32
    %c0_i32_0 = arith.constant 0 : i32
    %c0_i32_1 = arith.constant 0 : i32
    return %c0_i32, %c0_i32_0 : i32, i32
  }
  func.func @transform_4(%arg0: i32) -> (i32, i32) {
    %c0_i32 = arith.constant 0 : i32
    %c0_i32_0 = arith.constant 0 : i32
    %c0_i32_1 = arith.constant 0 : i32
    return %c0_i32, %c0_i32_0 : i32, i32
  }
  func.func @transform_5(%arg0: i32) -> (i32, i32) {
    %c0_i32 = arith.constant 0 : i32
    %c0_i32_0 = arith.constant 0 : i32
    %c0_i32_1 = arith.constant 0 : i32
    return %c0_i32, %c0_i32_0 : i32, i32
  }
  func.func @transform_6(%arg0: i32) -> (i32, i32) {
    %c0_i32 = arith.constant 0 : i32
    %c0_i32_0 = arith.constant 0 : i32
    %c0_i32_1 = arith.constant 0 : i32
    return %c0_i32, %c0_i32_0 : i32, i32
  }
  func.func @transform_7(%arg0: i32) -> (i32, i32) {
    %c0_i32 = arith.constant 0 : i32
    %c0_i32_0 = arith.constant 0 : i32
    %c0_i32_1 = arith.constant 0 : i32
    return %c0_i32, %c0_i32_0 : i32, i32
  }
  func.func @transform_8(%arg0: i32) -> (i32, i32) {
    %c0_i32 = arith.constant 0 : i32
    %c0_i32_0 = arith.constant 0 : i32
    %c0_i32_1 = arith.constant 0 : i32
    return %c0_i32, %c0_i32_0 : i32, i32
  }
  func.func @transform_9(%arg0: i32) -> (i32, i32) {
    %c0_i32 = arith.constant 0 : i32
    %c0_i32_0 = arith.constant 0 : i32
    %c0_i32_1 = arith.constant 0 : i32
    return %c0_i32, %c0_i32_0 : i32, i32
  }
  func.func @transform_10(%arg0: i32) -> (i32, i32) {
    %c0_i32 = arith.constant 0 : i32
    %c0_i32_0 = arith.constant 0 : i32
    %c0_i32_1 = arith.constant 0 : i32
    return %c0_i32, %c0_i32_0 : i32, i32
  }
  func.func @transform_11(%arg0: i32) -> (i32, i32) {
    %c0_i32 = arith.constant 0 : i32
    %c0_i32_0 = arith.constant 0 : i32
    %c0_i32_1 = arith.constant 0 : i32
    return %c0_i32, %c0_i32_0 : i32, i32
  }
  func.func @transform_12(%arg0: i32) -> (i32, i32) {
    %c0_i32 = arith.constant 0 : i32
    %c0_i32_0 = arith.constant 0 : i32
    %c0_i32_1 = arith.constant 0 : i32
    return %c0_i32, %c0_i32_0 : i32, i32
  }
  func.func @transform_13(%arg0: i32) -> (i32, i32) {
    %c0_i32 = arith.constant 0 : i32
    %c0_i32_0 = arith.constant 0 : i32
    %c0_i32_1 = arith.constant 0 : i32
    return %c0_i32, %c0_i32_0 : i32, i32
  }
  func.func @transform_14(%arg0: i32) -> (i32, i32, i32) {
    %c0_i32 = arith.constant 0 : i32
    %c0_i32_0 = arith.constant 0 : i32
    %c0_i32_1 = arith.constant 0 : i32
    return %arg0, %c0_i32, %c0_i32_0 : i32, i32, i32
  }
}

</mosaic_0001>

<llo_original>
// kernel: _lambda_.1
$region0: #{_lambda_.1}
  #allocation0 [shape = 'u32[]', space=smem, size = 0x4, offset = 0x4, fixed_abs, tag = 'smem constant byte address 0x4 - core index']
  #allocation1 [shape = 'u32[144,128]{1,0:T(1,128)}', space=vmem, size = 0x12000, scoped, tag = 'internal scratch']
  #allocation2 [shape = 'f32[8,384]{1,0:T(8,128)}', space=vmem, size = 0x3000, scoped, tag = 'scratch operand']
  #allocation3 [shape = 'bf16[64,384]{1,0:T(16,128)(2,1)}', space=vmem, size = 0xc000, scoped, tag = 'scratch operand']
  #allocation4 [shape = 'f32[1,1]{1,0:T(1,128)S(1)}', space=vmem, size = 0x200, scoped, tag = 'scoped memory for _lambda_.1']
  #allocation5 [shape = 'f32[1,1]{1,0:T(1,128)S(1)}', space=vmem, size = 0x200, scoped, tag = 'scoped memory for _lambda_.1']
  %s0 = inlined_call_operand.vmem [shape: f32[2,3,16,16], index: 0, kind: input, shape index: {}]
  %s1 = inlined_call_operand.vmem [shape: f32[1,384], index: 1, kind: input, shape index: {}]
  %s2 = inlined_call_operand.vmem [shape: bf16[128,27], index: 2, kind: input, shape index: {}]
  %s3 = inlined_call_operand.vmem [shape: f32[128,1], index: 3, kind: input, shape index: {}, may-alias: {3,7,11}]
  %s4 = inlined_call_operand.vmem [shape: bf16[3,128], index: 4, kind: input, shape index: {}]
  %s5 = inlined_call_operand.vmem [shape: f32[3,1], index: 5, kind: input, shape index: {}]
  %s6 = inlined_call_operand.vmem [shape: bf16[128,54], index: 6, kind: input, shape index: {}]
  %s7 = inlined_call_operand.vmem [shape: f32[128,1], index: 7, kind: input, shape index: {}, may-alias: {3,7,11}]
  %s8 = inlined_call_operand.vmem [shape: bf16[1,128], index: 8, kind: input, shape index: {}]
  %s9 = inlined_call_operand.<no memory space> [shape: f32[1,1], index: 9, kind: input, shape index: {}, may-alias: {9,13}]
  %s10 = inlined_call_operand.hbm [shape: bf16[128,63], index: 10, kind: input, shape index: {}]
  %s11 = inlined_call_operand.vmem [shape: f32[128,1], index: 11, kind: input, shape index: {}, may-alias: {3,7,11}]
  %s12 = inlined_call_operand.vmem [shape: bf16[1,128], index: 12, kind: input, shape index: {}]
  %s13 = inlined_call_operand.<no memory space> [shape: f32[1,1], index: 13, kind: input, shape index: {}, may-alias: {9,13}]
  %s14 = inlined_call_operand.vmem [shape: f32[2,5,384], index: 14, kind: output, shape index: {}]
  %s15 = sld [smem:[#allocation0]]
  $region97: #{_lambda_.1} parent=0
    _
  %s17 = ssub.s32 1, %s15
  %s18 = scalar_select 0, %s17, %s15
  %v19 = vstv %s9
  %20 = vst [vmem:[#allocation4] sm:$0x1] %v19
  %v21 = vstv %s13
  %22 = vst [vmem:[#allocation5] sm:$0x1] %v21
  $region1: #{_lambda_.1} parent=0
    #allocation6 [shape = 'u8[32768]{0}', space=vmem, size = 0x8000, scoped, tag = 'input window, operand 10, single buffered']
    #allocation7 [shape = 's32[2]{0}', space=sflag, size = 0x8, scoped, tag = 'scoped memory for _lambda_.1']
    %23 = vsyncpa [#allocation7], 0
    loop: start=0, step=1, limit=4
    $region2: #{_lambda_.1} parent=1 // loop_pre_header
      _
    $region3: #{_lambda_.1} parent=1 // loop_header
      %s25 = sphi 0, %s29
      %p26 = scmp.ge.s32.totalorder %s25, 4
      %s35 = sphi 0, %s37
      %s38 = sphi 0, %s35
      %s39 = sphi 0, %s38
      %s55 = sphi 0, %s39
      %s59 = sphi 0, %s59
      %s61 = sphi 0, %s59
      %s62 = sphi 0, %s61
      %s76 = sphi 0, %s62
      %s80 = sphi 0, %s80
      %s82 = sphi 0, %s80
      %s83 = sphi 0, %s82
      %s97 = sphi 0, %s83
      %s101 = sphi 0, %s101
      %s103 = sphi 0, %s101
      %s104 = sphi 0, %s103
      %s118 = sphi 0, %s104
      %s122 = sphi 0, %s122
      %s124 = sphi 0, %s122
      %s125 = sphi 0, %s124
      %s139 = sphi 0, %s125
      %s143 = sphi 0, %s143
      %s145 = sphi 0, %s143
      %s146 = sphi 0, %s145
      %s160 = sphi 0, %s146
      %s164 = sphi 0, %s164
      %s166 = sphi 0, %s164
      %s167 = sphi 0, %s166
      %s181 = sphi 0, %s167
      %s185 = sphi 0, %s185
      %s187 = sphi 0, %s185
      %s188 = sphi 0, %s187
      %s202 = sphi 0, %s188
      %s206 = sphi 0, %s206
      %s208 = sphi 0, %s206
      %s209 = sphi 0, %s208
      %s223 = sphi 0, %s209
      %s227 = sphi 0, %s227
      %s229 = sphi 0, %s227
      %s230 = sphi 0, %s229
      %s244 = sphi 0, %s230
      %s248 = sphi 0, %s248
      %s250 = sphi 0, %s248
      %s251 = sphi 0, %s250
      %s265 = sphi 0, %s251
      %s269 = sphi 0, %s269
      %s271 = sphi 0, %s269
      %s272 = sphi 0, %s271
      %s286 = sphi 0, %s272
      %s290 = sphi 0, %s290
      %s292 = sphi 0, %s290
      %s293 = sphi 0, %s292
      %s307 = sphi 0, %s293
      %s311 = sphi 0, %s311
      %s313 = sphi 0, %s311
      %s314 = sphi 0, %s313
      %s328 = sphi 0, %s314
      %s334 = sphi 0, %s336
      %s337 = sphi 0, %s334
      %s338 = sphi 0, %s337
      %s354 = sphi 0, %s338
    $region4: #{_lambda_.1} parent=1 // loop_header_branch
      %28 = sbr.rel (%p26) target = $region8
    $region5: #{_lambda_.1} parent=1 // loop_body
      %s30 = ssub.s32 %s25, 1
      %s31 = ssub.s32 %s25, 2
      %s32 = sadd.s32 %s25, 1
      %s33 = ssub.s32 %s25, %s32
      %p34 = scmp.eq.s32.totalorder %s33, 0
      %s36 = sadd.s32 %s35, 1
      %s37 = scalar_select %p34, %s35, %s36
      %p40 = pneg %p34
      %p41 = scmp.eq.s32.totalorder %s25, 1
      %p42 = por %p40, %p41
      %p43 = scmp.ne.s32.totalorder %s35, %s38
      %p44 = scmp.eq.s32.totalorder %s25, 0
      %p45 = por %p43, %p44
      %p46 = scmp.ne.s32.totalorder %s35, %s38
      %p47 = scmp.eq.s32.totalorder %s30, 1
      %p48 = por %p46, %p47
      %p49 = scmp.ne.s32.totalorder %s38, %s39
      %p50 = scmp.eq.s32.totalorder %s30, 0
      %p51 = por %p49, %p50
      %p52 = scmp.ne.s32.totalorder %s38, %s39
      %p53 = scmp.eq.s32.totalorder %s31, 1
      %p54 = por %p52, %p53
      %p56 = scmp.ne.s32.totalorder %s39, %s55
      %p57 = scmp.eq.s32.totalorder %s31, 0
      %p58 = por %p56, %p57
      %s60 = sadd.s32 %s59, 1
      %p63 = scmp.eq.s32.totalorder %s25, 1
      %p64 = scmp.ne.s32.totalorder %s59, %s61
      %p65 = scmp.eq.s32.totalorder %s25, 0
      %p66 = por %p64, %p65
      %p67 = scmp.ne.s32.totalorder %s59, %s61
      %p68 = scmp.eq.s32.totalorder %s30, 1
      %p69 = por %p67, %p68
      %p70 = scmp.ne.s32.totalorder %s61, %s62
      %p71 = scmp.eq.s32.totalorder %s30, 0
      %p72 = por %p70, %p71
      %p73 = scmp.ne.s32.totalorder %s61, %s62
      %p74 = scmp.eq.s32.totalorder %s31, 1
      %p75 = por %p73, %p74
      %p77 = scmp.ne.s32.totalorder %s62, %s76
      %p78 = scmp.eq.s32.totalorder %s31, 0
      %p79 = por %p77, %p78
      %s81 = sadd.s32 %s80, 1
      %p84 = scmp.eq.s32.totalorder %s25, 1
      %p85 = scmp.ne.s32.totalorder %s80, %s82
      %p86 = scmp.eq.s32.totalorder %s25, 0
      %p87 = por %p85, %p86
      %p88 = scmp.ne.s32.totalorder %s80, %s82
      %p89 = scmp.eq.s32.totalorder %s30, 1
      %p90 = por %p88, %p89
      %p91 = scmp.ne.s32.totalorder %s82, %s83
      %p92 = scmp.eq.s32.totalorder %s30, 0
      %p93 = por %p91, %p92
      %p94 = scmp.ne.s32.totalorder %s82, %s83
      %p95 = scmp.eq.s32.totalorder %s31, 1
      %p96 = por %p94, %p95
      %p98 = scmp.ne.s32.totalorder %s83, %s97
      %p99 = scmp.eq.s32.totalorder %s31, 0
      %p100 = por %p98, %p99
      %s102 = sadd.s32 %s101, 1
      %p105 = scmp.eq.s32.totalorder %s25, 1
      %p106 = scmp.ne.s32.totalorder %s101, %s103
      %p107 = scmp.eq.s32.totalorder %s25, 0
      %p108 = por %p106, %p107
      %p109 = scmp.ne.s32.totalorder %s101, %s103
      %p110 = scmp.eq.s32.totalorder %s30, 1
      %p111 = por %p109, %p110
      %p112 = scmp.ne.s32.totalorder %s103, %s104
      %p113 = scmp.eq.s32.totalorder %s30, 0
      %p114 = por %p112, %p113
      %p115 = scmp.ne.s32.totalorder %s103, %s104
      %p116 = scmp.eq.s32.totalorder %s31, 1
      %p117 = por %p115, %p116
      %p119 = scmp.ne.s32.totalorder %s104, %s118
      %p120 = scmp.eq.s32.totalorder %s31, 0
      %p121 = por %p119, %p120
      %s123 = sadd.s32 %s122, 1
      %p126 = scmp.eq.s32.totalorder %s25, 1
      %p127 = scmp.ne.s32.totalorder %s122, %s124
      %p128 = scmp.eq.s32.totalorder %s25, 0
      %p129 = por %p127, %p128
      %p130 = scmp.ne.s32.totalorder %s122, %s124
      %p131 = scmp.eq.s32.totalorder %s30, 1
      %p132 = por %p130, %p131
      %p133 = scmp.ne.s32.totalorder %s124, %s125
      %p134 = scmp.eq.s32.totalorder %s30, 0
      %p135 = por %p133, %p134
      %p136 = scmp.ne.s32.totalorder %s124, %s125
      %p137 = scmp.eq.s32.totalorder %s31, 1
      %p138 = por %p136, %p137
      %p140 = scmp.ne.s32.totalorder %s125, %s139
      %p141 = scmp.eq.s32.totalorder %s31, 0
      %p142 = por %p140, %p141
      %s144 = sadd.s32 %s143, 1
      %p147 = scmp.eq.s32.totalorder %s25, 1
      %p148 = scmp.ne.s32.totalorder %s143, %s145
      %p149 = scmp.eq.s32.totalorder %s25, 0
      %p150 = por %p148, %p149
      %p151 = scmp.ne.s32.totalorder %s143, %s145
      %p152 = scmp.eq.s32.totalorder %s30, 1
      %p153 = por %p151, %p152
      %p154 = scmp.ne.s32.totalorder %s145, %s146
      %p155 = scmp.eq.s32.totalorder %s30, 0
      %p156 = por %p154, %p155
      %p157 = scmp.ne.s32.totalorder %s145, %s146
      %p158 = scmp.eq.s32.totalorder %s31, 1
      %p159 = por %p157, %p158
      %p161 = scmp.ne.s32.totalorder %s146, %s160
      %p162 = scmp.eq.s32.totalorder %s31, 0
      %p163 = por %p161, %p162
      %s165 = sadd.s32 %s164, 1
      %p168 = scmp.eq.s32.totalorder %s25, 1
      %p169 = scmp.ne.s32.totalorder %s164, %s166
      %p170 = scmp.eq.s32.totalorder %s25, 0
      %p171 = por %p169, %p170
      %p172 = scmp.ne.s32.totalorder %s164, %s166
      %p173 = scmp.eq.s32.totalorder %s30, 1
      %p174 = por %p172, %p173
      %p175 = scmp.ne.s32.totalorder %s166, %s167
      %p176 = scmp.eq.s32.totalorder %s30, 0
      %p177 = por %p175, %p176
      %p178 = scmp.ne.s32.totalorder %s166, %s167
      %p179 = scmp.eq.s32.totalorder %s31, 1
      %p180 = por %p178, %p179
      %p182 = scmp.ne.s32.totalorder %s167, %s181
      %p183 = scmp.eq.s32.totalorder %s31, 0
      %p184 = por %p182, %p183
      %s186 = sadd.s32 %s185, 1
      %p189 = scmp.eq.s32.totalorder %s25, 1
      %p190 = scmp.ne.s32.totalorder %s185, %s187
      %p191 = scmp.eq.s32.totalorder %s25, 0
      %p192 = por %p190, %p191
      %p193 = scmp.ne.s32.totalorder %s185, %s187
      %p194 = scmp.eq.s32.totalorder %s30, 1
      %p195 = por %p193, %p194
      %p196 = scmp.ne.s32.totalorder %s187, %s188
      %p197 = scmp.eq.s32.totalorder %s30, 0
      %p198 = por %p196, %p197
      %p199 = scmp.ne.s32.totalorder %s187, %s188
      %p200 = scmp.eq.s32.totalorder %s31, 1
      %p201 = por %p199, %p200
      %p203 = scmp.ne.s32.totalorder %s188, %s202
      %p204 = scmp.eq.s32.totalorder %s31, 0
      %p205 = por %p203, %p204
      %s207 = sadd.s32 %s206, 1
      %p210 = scmp.eq.s32.totalorder %s25, 1
      %p211 = scmp.ne.s32.totalorder %s206, %s208
      %p212 = scmp.eq.s32.totalorder %s25, 0
      %p213 = por %p211, %p212
      %p214 = scmp.ne.s32.totalorder %s206, %s208
      %p215 = scmp.eq.s32.totalorder %s30, 1
      %p216 = por %p214, %p215
      %p217 = scmp.ne.s32.totalorder %s208, %s209
      %p218 = scmp.eq.s32.totalorder %s30, 0
      %p219 = por %p217, %p218
      %p220 = scmp.ne.s32.totalorder %s208, %s209
      %p221 = scmp.eq.s32.totalorder %s31, 1
      %p222 = por %p220, %p221
      %p224 = scmp.ne.s32.totalorder %s209, %s223
      %p225 = scmp.eq.s32.totalorder %s31, 0
      %p226 = por %p224, %p225
      %s228 = sadd.s32 %s227, 1
      %p231 = scmp.eq.s32.totalorder %s25, 1
      %p232 = scmp.ne.s32.totalorder %s227, %s229
      %p233 = scmp.eq.s32.totalorder %s25, 0
      %p234 = por %p232, %p233
      %p235 = scmp.ne.s32.totalorder %s227, %s229
      %p236 = scmp.eq.s32.totalorder %s30, 1
      %p237 = por %p235, %p236
      %p238 = scmp.ne.s32.totalorder %s229, %s230
      %p239 = scmp.eq.s32.totalorder %s30, 0
      %p240 = por %p238, %p239
      %p241 = scmp.ne.s32.totalorder %s229, %s230
      %p242 = scmp.eq.s32.totalorder %s31, 1
      %p243 = por %p241, %p242
      %p245 = scmp.ne.s32.totalorder %s230, %s244
      %p246 = scmp.eq.s32.totalorder %s31, 0
      %p247 = por %p245, %p246
      %s249 = sadd.s32 %s248, 1
      %p252 = scmp.eq.s32.totalorder %s25, 1
      %p253 = scmp.ne.s32.totalorder %s248, %s250
      %p254 = scmp.eq.s32.totalorder %s25, 0
      %p255 = por %p253, %p254
      %p256 = scmp.ne.s32.totalorder %s248, %s250
      %p257 = scmp.eq.s32.totalorder %s30, 1
      %p258 = por %p256, %p257
      %p259 = scmp.ne.s32.totalorder %s250, %s251
      %p260 = scmp.eq.s32.totalorder %s30, 0
      %p261 = por %p259, %p260
      %p262 = scmp.ne.s32.totalorder %s250, %s251
      %p263 = scmp.eq.s32.totalorder %s31, 1
      %p264 = por %p262, %p263
      %p266 = scmp.ne.s32.totalorder %s251, %s265
      %p267 = scmp.eq.s32.totalorder %s31, 0
      %p268 = por %p266, %p267
      %s270 = sadd.s32 %s269, 1
      %p273 = scmp.eq.s32.totalorder %s25, 1
      %p274 = scmp.ne.s32.totalorder %s269, %s271
      %p275 = scmp.eq.s32.totalorder %s25, 0
      %p276 = por %p274, %p275
      %p277 = scmp.ne.s32.totalorder %s269, %s271
      %p278 = scmp.eq.s32.totalorder %s30, 1
      %p279 = por %p277, %p278
      %p280 = scmp.ne.s32.totalorder %s271, %s272
      %p281 = scmp.eq.s32.totalorder %s30, 0
      %p282 = por %p280, %p281
      %p283 = scmp.ne.s32.totalorder %s271, %s272
      %p284 = scmp.eq.s32.totalorder %s31, 1
      %p285 = por %p283, %p284
      %p287 = scmp.ne.s32.totalorder %s272, %s286
      %p288 = scmp.eq.s32.totalorder %s31, 0
      %p289 = por %p287, %p288
      %s291 = sadd.s32 %s290, 1
      %p294 = scmp.eq.s32.totalorder %s25, 1
      %p295 = scmp.ne.s32.totalorder %s290, %s292
      %p296 = scmp.eq.s32.totalorder %s25, 0
      %p297 = por %p295, %p296
      %p298 = scmp.ne.s32.totalorder %s290, %s292
      %p299 = scmp.eq.s32.totalorder %s30, 1
      %p300 = por %p298, %p299
      %p301 = scmp.ne.s32.totalorder %s292, %s293
      %p302 = scmp.eq.s32.totalorder %s30, 0
      %p303 = por %p301, %p302
      %p304 = scmp.ne.s32.totalorder %s292, %s293
      %p305 = scmp.eq.s32.totalorder %s31, 1
      %p306 = por %p304, %p305
      %p308 = scmp.ne.s32.totalorder %s293, %s307
      %p309 = scmp.eq.s32.totalorder %s31, 0
      %p310 = por %p308, %p309
      %s312 = sadd.s32 %s311, 1
      %p315 = scmp.eq.s32.totalorder %s25, 1
      %p316 = scmp.ne.s32.totalorder %s311, %s313
      %p317 = scmp.eq.s32.totalorder %s25, 0
      %p318 = por %p316, %p317
      %p319 = scmp.ne.s32.totalorder %s311, %s313
      %p320 = scmp.eq.s32.totalorder %s30, 1
      %p321 = por %p319, %p320
      %p322 = scmp.ne.s32.totalorder %s313, %s314
      %p323 = scmp.eq.s32.totalorder %s30, 0
      %p324 = por %p322, %p323
      %p325 = scmp.ne.s32.totalorder %s313, %s314
      %p326 = scmp.eq.s32.totalorder %s31, 1
      %p327 = por %p325, %p326
      %p329 = scmp.ne.s32.totalorder %s314, %s328
      %p330 = scmp.eq.s32.totalorder %s31, 0
      %p331 = por %p329, %p330
      %s332 = ssub.s32 %s25, %s32
      %p333 = scmp.eq.s32.totalorder %s332, 0
      %s335 = sadd.s32 %s334, 1
      %s336 = scalar_select %p333, %s334, %s335
      %p339 = pneg %p333
      %p340 = scmp.eq.s32.totalorder %s25, 1
      %p341 = por %p339, %p340
      %p342 = scmp.ne.s32.totalorder %s334, %s337
      %p343 = scmp.eq.s32.totalorder %s25, 0
      %p344 = por %p342, %p343
      %p345 = scmp.ne.s32.totalorder %s334, %s337
      %p346 = scmp.eq.s32.totalorder %s30, 1
      %p347 = por %p345, %p346
      %p348 = scmp.ne.s32.totalorder %s337, %s338
      %p349 = scmp.eq.s32.totalorder %s30, 0
      %p350 = por %p348, %p349
      %p351 = scmp.ne.s32.totalorder %s337, %s338
      %p352 = scmp.eq.s32.totalorder %s31, 1
      %p353 = por %p351, %p352
      %p355 = scmp.ne.s32.totalorder %s338, %s354
      %p356 = scmp.eq.s32.totalorder %s31, 0
      %p357 = por %p355, %p356
      %p358 = scmp.le.s32.totalorder 1, %s25
      %p359 = scmp.lt.s32.totalorder %s25, 3
      %p360 = pnand %p358, %p359
      %p361 = pneg %p360
      // Predicated region
      $region9: #{_lambda_.1} parent=5 // pred_check
        _
      $region10: #{_lambda_.1} parent=5 // pred_check_branch
        %363 = sbr.rel (%p360) target = $region12
      $region11: #{_lambda_.1} parent=5 // pred_region
        %s364 = ssub.s32 %s25, 1
        // Predicated region
        $region13: #{_lambda_.1} parent=11 // pred_check
          %p365 = pneg %p72
        $region14: #{_lambda_.1} parent=11 // pred_check_branch
          %367 = sbr.rel (%p365) target = $region16
        $region15: #{_lambda_.1} parent=11 // pred_region
          _
        $region16: #{_lambda_.1} parent=11 // pred_fallthru
          _
        // Predicated region
        $region17: #{_lambda_.1} parent=11 // pred_check
          %p368 = pneg %p93
        $region18: #{_lambda_.1} parent=11 // pred_check_branch
          %370 = sbr.rel (%p368) target = $region20
        $region19: #{_lambda_.1} parent=11 // pred_region
          _
        $region20: #{_lambda_.1} parent=11 // pred_fallthru
          _
        // Predicated region
        $region21: #{_lambda_.1} parent=11 // pred_check
          %p371 = pneg %p114
        $region22: #{_lambda_.1} parent=11 // pred_check_branch
          %373 = sbr.rel (%p371) target = $region24
        $region23: #{_lambda_.1} parent=11 // pred_region
          _
        $region24: #{_lambda_.1} parent=11 // pred_fallthru
          _
        // Predicated region
        $region25: #{_lambda_.1} parent=11 // pred_check
          %p374 = pneg %p135
        $region26: #{_lambda_.1} parent=11 // pred_check_branch
          %376 = sbr.rel (%p374) target = $region28
        $region27: #{_lambda_.1} parent=11 // pred_region
          _
        $region28: #{_lambda_.1} parent=11 // pred_fallthru
          _
        // Predicated region
        $region29: #{_lambda_.1} parent=11 // pred_check
          %p377 = pneg %p156
        $region30: #{_lambda_.1} parent=11 // pred_check_branch
          %379 = sbr.rel (%p377) target = $region32
        $region31: #{_lambda_.1} parent=11 // pred_region
          _
        $region32: #{_lambda_.1} parent=11 // pred_fallthru
          _
        // Predicated region
        $region33: #{_lambda_.1} parent=11 // pred_check
          %p380 = pneg %p177
        $region34: #{_lambda_.1} parent=11 // pred_check_branch
          %382 = sbr.rel (%p380) target = $region36
        $region35: #{_lambda_.1} parent=11 // pred_region
          _
        $region36: #{_lambda_.1} parent=11 // pred_fallthru
          _
        // Predicated region
        $region37: #{_lambda_.1} parent=11 // pred_check
          %p383 = pneg %p198
        $region38: #{_lambda_.1} parent=11 // pred_check_branch
          %385 = sbr.rel (%p383) target = $region40
        $region39: #{_lambda_.1} parent=11 // pred_region
          _
        $region40: #{_lambda_.1} parent=11 // pred_fallthru
          _
        // Predicated region
        $region41: #{_lambda_.1} parent=11 // pred_check
          %p386 = pneg %p219
        $region42: #{_lambda_.1} parent=11 // pred_check_branch
          %388 = sbr.rel (%p386) target = $region44
        $region43: #{_lambda_.1} parent=11 // pred_region
          _
        $region44: #{_lambda_.1} parent=11 // pred_fallthru
          _
        // Predicated region
        $region45: #{_lambda_.1} parent=11 // pred_check
          %p389 = pneg %p240
        $region46: #{_lambda_.1} parent=11 // pred_check_branch
          %391 = sbr.rel (%p389) target = $region48
        $region47: #{_lambda_.1} parent=11 // pred_region
          _
        $region48: #{_lambda_.1} parent=11 // pred_fallthru
          _
        // Predicated region
        $region49: #{_lambda_.1} parent=11 // pred_check
          %p392 = pneg %p261
        $region50: #{_lambda_.1} parent=11 // pred_check_branch
          %394 = sbr.rel (%p392) target = $region52
        $region51: #{_lambda_.1} parent=11 // pred_region
          %s396 = ssub.s32 1024, 1024
          %397 = vsyncadd [#allocation7], %s396
          %s398 = sshll.u32 [#allocation6], 4
          %s399 = int_to_ptr.vmem [resolvable:$true] %s398
          %404 = dma.hbm_to_vmem [thread:$0]  %s10, 1024, %s399, [#allocation7], 64, 64, 4
        $region52: #{_lambda_.1} parent=11 // pred_fallthru
          _
        // Predicated region
        $region53: #{_lambda_.1} parent=11 // pred_check
          %p405 = pneg %p282
        $region54: #{_lambda_.1} parent=11 // pred_check_branch
          %407 = sbr.rel (%p405) target = $region56
        $region55: #{_lambda_.1} parent=11 // pred_region
          _
        $region56: #{_lambda_.1} parent=11 // pred_fallthru
          _
        // Predicated region
        $region57: #{_lambda_.1} parent=11 // pred_check
          %p408 = pneg %p303
        $region58: #{_lambda_.1} parent=11 // pred_check_branch
          %410 = sbr.rel (%p408) target = $region60
        $region59: #{_lambda_.1} parent=11 // pred_region
          _
        $region60: #{_lambda_.1} parent=11 // pred_fallthru
          _
        // Predicated region
        $region61: #{_lambda_.1} parent=11 // pred_check
          %p411 = pneg %p324
        $region62: #{_lambda_.1} parent=11 // pred_check_branch
          %413 = sbr.rel (%p411) target = $region64
        $region63: #{_lambda_.1} parent=11 // pred_region
          _
        $region64: #{_lambda_.1} parent=11 // pred_fallthru
          _
      $region12: #{_lambda_.1} parent=5 // pred_fallthru
        _
      %p414 = scmp.lt.s32.totalorder %s25, 2
      // Predicated region
      $region65: #{_lambda_.1} parent=5 // pred_check
        %p415 = pneg %p414
      $region66: #{_lambda_.1} parent=5 // pred_check_branch
        %417 = sbr.rel (%p415) target = $region68
      $region67: #{_lambda_.1} parent=5 // pred_region
        // Predicated region
        $region69: #{_lambda_.1} parent=67 // pred_check
          %p418 = pneg %p45
        $region70: #{_lambda_.1} parent=67 // pred_check_branch
          %420 = sbr.rel (%p418) target = $region72
        $region71: #{_lambda_.1} parent=67 // pred_region
          %p421 = scmp.lt.s32.totalorder %s25, 1
          %s422 = scalar_select %p421, %s25, 1
          %s423 = smul.addr %s422, 6
          %s424 = smul.addr %s423, 8
          %s425 = scalar_lea.vmem %s0, %s424
        $region72: #{_lambda_.1} parent=67 // pred_fallthru
          _
      $region68: #{_lambda_.1} parent=5 // pred_fallthru
        _
      %p426 = scmp.le.s32.totalorder 1, %s25
      %p427 = scmp.lt.s32.totalorder %s25, 3
      %p428 = pnand %p426, %p427
      %p429 = pneg %p428
      // Predicated region
      $region73: #{_lambda_.1} parent=5 // pred_check
        _
      $region74: #{_lambda_.1} parent=5 // pred_check_branch
        %431 = sbr.rel (%p428) target = $region76
      $region75: #{_lambda_.1} parent=5 // pred_region
        %s432 = ssub.s32 %s25, 1
        // Predicated region
        $region77: #{_lambda_.1} parent=75 // pred_check
          %p433 = pneg %p261
        $region78: #{_lambda_.1} parent=75 // pred_check_branch
          %435 = sbr.rel (%p433) target = $region80
        $region79: #{_lambda_.1} parent=75 // pred_region
          %436 = dma.done [#allocation7], 1024
        $region80: #{_lambda_.1} parent=75 // pred_fallthru
          _
        %p437 = scmp.lt.s32.totalorder %s30, 1
        %s438 = scalar_select %p437, %s30, 1
        %s439 = smul.addr %s438, 6
        %s440 = smul.addr %s439, 8
        %s441 = scalar_lea.vmem %s0, %s440
        %p442 = pneg %p51
        %p443 = pneg %p48
        %p444 = pneg %p72
        %p445 = pneg %p69
        %p446 = pneg %p93
        %p447 = pneg %p90
        %p448 = pneg %p114
        %p449 = pneg %p111
        %p450 = pneg %p135
        %p451 = pneg %p132
        %p452 = pneg %p156
        %p453 = pneg %p153
        %p454 = pneg %p177
        %p455 = pneg %p174
        %p456 = pneg %p198
        %p457 = pneg %p195
        %p458 = pneg %p219
        %p459 = pneg %p216
        %p460 = pneg %p240
        %p461 = pneg %p237
        %p462 = pneg %p261
        %p463 = pneg %p258
        %p464 = pneg %p282
        %p465 = pneg %p279
        %p466 = pneg %p303
        %p467 = pneg %p300
        %p468 = pneg %p324
        %p469 = pneg %p321
        %p470 = pneg %p350
        %p471 = pneg %p347
        %p472 = scmp.lt.s32.totalorder %s30, 1
        %s473 = scalar_select %p472, %s30, 1
        %s474 = smul.addr %s473, 3
        %s475 = smul.addr %s474, 8
        %s476 = scalar_lea.vmem %s14, %s475
        %p477 = scmp.lt.s32.totalorder %s30, 1
        %s478 = scalar_select %p477, %s30, 1
        %s479 = smul.addr %s478, 6
        %s480 = smul.addr %s479, 8
        %s481 = scalar_lea.vmem %s0, %s480
        %p482 = scmp.lt.s32.totalorder %s30, 1
        %s483 = scalar_select %p482, %s30, 1
        %s484 = smul.addr %s483, 3
        %s485 = smul.addr %s484, 8
        %s486 = scalar_lea.vmem %s14, %s485
        %p488 = scmp.eq.s32.totalorder %s30, 0
        // Predicated region
        $region81: #{_lambda_.1} parent=75 // pred_check
          %p489 = pneg %p488
        $region82: #{_lambda_.1} parent=75 // pred_check_branch
          %491 = sbr.rel (%p489) target = $region84
        $region83: #{_lambda_.1} parent=75 // pred_region
          %492 = vst [vmem:[#allocation2] sm:$0xff] 0.0
          %493 = vst [vmem:[#allocation2 + $0x8] sm:$0xff] 0.0
          %494 = vst [vmem:[#allocation2 + $0x10] sm:$0xff] 0.0
        $region84: #{_lambda_.1} parent=75 // pred_fallthru
          _
        %v495 = vld [vmem:[%s481] sm:$0x1]
        %v496 = vld [vmem:[%s481 + $0x10] sm:$0x1]
        %v497 = vld [vmem:[%s481 + $0x20] sm:$0x1]
        %v501 = vrot.slane %v496, 7
        %vm502 = vcmask 1041409
        %v503 = vsel %vm502, %v501, %v495
        %v504 = vrot.slane %v497, 6
        %vm505 = vcmask 1042434
        %v506 = vsel %vm505, %v504, %v503
        %507 = vrot.lane.b32.xlu0 %v506, 19
        %v508 = vpop.permute.xlu0 %507
        %vm510 = vcmask 280728
        %511 = vst.msk [vmem:[#allocation2] sm:$0x7] %vm510, %v508
        %v512 = vld [vmem:[%s481 + $0x1] sm:$0x1]
        %v513 = vld [vmem:[%s481 + $0x11] sm:$0x1]
        %v514 = vld [vmem:[%s481 + $0x21] sm:$0x1]
        %v518 = vrot.slane %v513, 7
        %v519 = vsel %vm502, %v518, %v512
        %v520 = vrot.slane %v514, 6
        %v521 = vsel %vm505, %v520, %v519
        %522 = vrot.lane.b32.xlu0 %v521, 37
        %v523 = vpop.permute.xlu0 %522
        %vm525 = vcmask 428328
        %526 = vst.msk [vmem:[#allocation2] sm:$0x7] %vm525, %v523
        %v527 = vld [vmem:[%s481 + $0x2] sm:$0x1]
        %v528 = vld [vmem:[%s481 + $0x12] sm:$0x1]
        %v529 = vld [vmem:[%s481 + $0x22] sm:$0x1]
        %v533 = vrot.slane %v528, 7
        %v534 = vsel %vm502, %v533, %v527
        %v535 = vrot.slane %v529, 6
        %v536 = vsel %vm505, %v535, %v534
        %537 = vrot.lane.b32.xlu0 %v536, 55
        %v538 = vpop.permute.xlu0 %537
        %vm540 = vcmask 575928
        %541 = vst.msk [vmem:[#allocation2] sm:$0x7] %vm540, %v538
        %v542 = vld [vmem:[%s481 + $0x3] sm:$0x1]
        %v543 = vld [vmem:[%s481 + $0x13] sm:$0x1]
        %v544 = vld [vmem:[%s481 + $0x23] sm:$0x1]
        %v548 = vrot.slane %v543, 7
        %v549 = vsel %vm502, %v548, %v542
        %v550 = vrot.slane %v544, 6
        %v551 = vsel %vm505, %v550, %v549
        %552 = vrot.lane.b32.xlu0 %v551, 73
        %v553 = vpop.permute.xlu0 %552
        %vm555 = vcmask 723528
        %556 = vst.msk [vmem:[#allocation2] sm:$0x7] %vm555, %v553
        %v557 = vld [vmem:[%s481 + $0x4] sm:$0x1]
        %v558 = vld [vmem:[%s481 + $0x14] sm:$0x1]
        %v559 = vld [vmem:[%s481 + $0x24] sm:$0x1]
        %v563 = vrot.slane %v558, 7
        %v564 = vsel %vm502, %v563, %v557
        %v565 = vrot.slane %v559, 6
        %v566 = vsel %vm505, %v565, %v564
        %567 = vrot.lane.b32.xlu0 %v566, 91
        %v568 = vpop.permute.xlu0 %567
        %vm570 = vcmask 871128
        %571 = vst.msk [vmem:[#allocation2] sm:$0x7] %vm570, %v568
        %v572 = vld [vmem:[%s481 + $0x5] sm:$0x1]
        %v573 = vld [vmem:[%s481 + $0x15] sm:$0x1]
        %v574 = vld [vmem:[%s481 + $0x25] sm:$0x1]
        %v578 = vrot.slane %v573, 7
        %v579 = vsel %vm502, %v578, %v572
        %v580 = vrot.slane %v574, 6
        %v581 = vsel %vm505, %v580, %v579
        %582 = vrot.lane.b32.xlu0 %v581, 109
        %v583 = vpop.permute.xlu0 %582
        %vm585 = vcmask 1018728
        %586 = vst.msk [vmem:[#allocation2] sm:$0x7] %vm585, %v583
        %v587 = vld [vmem:[%s481 + $0x6] sm:$0x1]
        %v588 = vld [vmem:[%s481 + $0x16] sm:$0x1]
        %v589 = vld [vmem:[%s481 + $0x26] sm:$0x1]
        %v593 = vrot.slane %v588, 7
        %v594 = vsel %vm502, %v593, %v587
        %v595 = vrot.slane %v589, 6
        %v596 = vsel %vm505, %v595, %v594
        %597 = vrot.lane.b32.xlu0 %v596, 127
        %v598 = vpop.permute.xlu0 %597
        %vm600 = vcmask 1043448
        %601 = vst.msk [vmem:[#allocation2] sm:$0x7] %vm600, %v598
        %vm602 = vcmask 116736
        %603 = vst.msk [vmem:[#allocation2 + $0x8] sm:$0x7] %vm602, %v598
        %v604 = vld [vmem:[%s481 + $0x7] sm:$0x1]
        %v605 = vld [vmem:[%s481 + $0x17] sm:$0x1]
        %v606 = vld [vmem:[%s481 + $0x27] sm:$0x1]
        %v610 = vrot.slane %v605, 7
        %v611 = vsel %vm502, %v610, %v604
        %v612 = vrot.slane %v606, 6
        %v613 = vsel %vm505, %v612, %v611
        %614 = vrot.lane.b32.xlu0 %v613, 17
        %v615 = vpop.permute.xlu0 %614
        %vm617 = vcmask 264328
        %618 = vst.msk [vmem:[#allocation2 + $0x8] sm:$0x7] %vm617, %v615
        %v619 = vld [vmem:[%s481 + $0x8] sm:$0x1]
        %v620 = vld [vmem:[%s481 + $0x18] sm:$0x1]
        %v621 = vld [vmem:[%s481 + $0x28] sm:$0x1]
        %v625 = vrot.slane %v620, 7
        %v626 = vsel %vm502, %v625, %v619
        %v627 = vrot.slane %v621, 6
        %v628 = vsel %vm505, %v627, %v626
        %629 = vrot.lane.b32.xlu0 %v628, 35
        %v630 = vpop.permute.xlu0 %629
        %vm632 = vcmask 411928
        %633 = vst.msk [vmem:[#allocation2 + $0x8] sm:$0x7] %vm632, %v630
        %v634 = vld [vmem:[%s481 + $0x9] sm:$0x1]
        %v635 = vld [vmem:[%s481 + $0x19] sm:$0x1]
        %v636 = vld [vmem:[%s481 + $0x29] sm:$0x1]
        %v640 = vrot.slane %v635, 7
        %v641 = vsel %vm502, %v640, %v634
        %v642 = vrot.slane %v636, 6
        %v643 = vsel %vm505, %v642, %v641
        %644 = vrot.lane.b32.xlu0 %v643, 53
        %v645 = vpop.permute.xlu0 %644
        %vm647 = vcmask 559528
        %648 = vst.msk [vmem:[#allocation2 + $0x8] sm:$0x7] %vm647, %v645
        %v649 = vld [vmem:[%s481 + $0xa] sm:$0x1]
        %v650 = vld [vmem:[%s481 + $0x1a] sm:$0x1]
        %v651 = vld [vmem:[%s481 + $0x2a] sm:$0x1]
        %v655 = vrot.slane %v650, 7
        %v656 = vsel %vm502, %v655, %v649
        %v657 = vrot.slane %v651, 6
        %v658 = vsel %vm505, %v657, %v656
        %659 = vrot.lane.b32.xlu0 %v658, 71
        %v660 = vpop.permute.xlu0 %659
        %vm662 = vcmask 707128
        %663 = vst.msk [vmem:[#allocation2 + $0x8] sm:$0x7] %vm662, %v660
        %v664 = vld [vmem:[%s481 + $0xb] sm:$0x1]
        %v665 = vld [vmem:[%s481 + $0x1b] sm:$0x1]
        %v666 = vld [vmem:[%s481 + $0x2b] sm:$0x1]
        %v670 = vrot.slane %v665, 7
        %v671 = vsel %vm502, %v670, %v664
        %v672 = vrot.slane %v666, 6
        %v673 = vsel %vm505, %v672, %v671
        %674 = vrot.lane.b32.xlu0 %v673, 89
        %v675 = vpop.permute.xlu0 %674
        %vm677 = vcmask 854728
        %678 = vst.msk [vmem:[#allocation2 + $0x8] sm:$0x7] %vm677, %v675
        %v679 = vld [vmem:[%s481 + $0xc] sm:$0x1]
        %v680 = vld [vmem:[%s481 + $0x1c] sm:$0x1]
        %v681 = vld [vmem:[%s481 + $0x2c] sm:$0x1]
        %v685 = vrot.slane %v680, 7
        %v686 = vsel %vm502, %v685, %v679
        %v687 = vrot.slane %v681, 6
        %v688 = vsel %vm505, %v687, %v686
        %689 = vrot.lane.b32.xlu0 %v688, 107
        %v690 = vpop.permute.xlu0 %689
        %vm692 = vcmask 1002328
        %693 = vst.msk [vmem:[#allocation2 + $0x8] sm:$0x7] %vm692, %v690
        %v694 = vld [vmem:[%s481 + $0xd] sm:$0x1]
        %v695 = vld [vmem:[%s481 + $0x1d] sm:$0x1]
        %v696 = vld [vmem:[%s481 + $0x2d] sm:$0x1]
        %v700 = vrot.slane %v695, 7
        %v701 = vsel %vm502, %v700, %v694
        %v702 = vrot.slane %v696, 6
        %v703 = vsel %vm505, %v702, %v701
        %704 = vrot.lane.b32.xlu0 %v703, 125
        %v705 = vpop.permute.xlu0 %704
        %vm707 = vcmask 1043432
        %708 = vst.msk [vmem:[#allocation2 + $0x8] sm:$0x7] %vm707, %v705
        %vm709 = vcmask 100352
        %710 = vst.msk [vmem:[#allocation2 + $0x10] sm:$0x7] %vm709, %v705
        %v711 = vld [vmem:[%s481 + $0xe] sm:$0x1]
        %v712 = vld [vmem:[%s481 + $0x1e] sm:$0x1]
        %v713 = vld [vmem:[%s481 + $0x2e] sm:$0x1]
        %v717 = vrot.slane %v712, 7
        %v718 = vsel %vm502, %v717, %v711
        %v719 = vrot.slane %v713, 6
        %v720 = vsel %vm505, %v719, %v718
        %721 = vrot.lane.b32.xlu0 %v720, 15
        %v722 = vpop.permute.xlu0 %721
        %vm724 = vcmask 247928
        %725 = vst.msk [vmem:[#allocation2 + $0x10] sm:$0x7] %vm724, %v722
        %v726 = vld [vmem:[%s481 + $0xf] sm:$0x1]
        %v727 = vld [vmem:[%s481 + $0x1f] sm:$0x1]
        %v728 = vld [vmem:[%s481 + $0x2f] sm:$0x1]
        %v732 = vrot.slane %v727, 7
        %v733 = vsel %vm502, %v732, %v726
        %v734 = vrot.slane %v728, 6
        %v735 = vsel %vm505, %v734, %v733
        %736 = vrot.lane.b32.xlu0 %v735, 33
        %v737 = vpop.permute.xlu0 %736
        %vm739 = vcmask 395528
        %740 = vst.msk [vmem:[#allocation2 + $0x10] sm:$0x7] %vm739, %v737
        %v741 = vld [vmem:[#allocation2] ss:$8 sm:$0x7]
        %v743 = vlaneseq
        %v744 = vshrl.u32 %v743, 7
        %v745 = vsub.s32 0, %v744
        %v746 = vrot.slane %v741, %v745
        %v747 = vlaneseq
        %v748 = vshrl.u32 %v747, 7
        %v749 = vsub.s32 1, %v748
        %v750 = vrot.slane %v741, %v749
        %v751 = vlaneseq
        %v752 = vshrl.u32 %v751, 7
        %v753 = vsub.s32 2, %v752
        %v754 = vrot.slane %v741, %v753
        %v758 = vpack.c.bf16 %v746, %v746
        %v759 = vpack.c.bf16 %v750, %v750
        %v760 = vpack.c.bf16 %v754, %v754
        %764 = vrot.lane.b32.xlu0 %v758, 127
        %v765 = vpop.permute.xlu0 %764
        %766 = vrot.lane.b32.xlu0 %v759, 127
        %v767 = vpop.permute.xlu0 %766
        %768 = vrot.lane.b32.xlu0 %v760, 127
        %v769 = vpop.permute.xlu0 %768
        %vm770 = vcmask 1039360
        %v771 = vsel %vm770, %v765, %v767
        %v772 = vsel %vm770, %v767, %v769
        %vm773 = vcmask 1039360
        %v776 = vsel %vm773, %v769, %v765
        %777 = vrot.lane.b32.xlu0 %v758, 126
        %v778 = vpop.permute.xlu0 %777
        %779 = vrot.lane.b32.xlu0 %v759, 126
        %v780 = vpop.permute.xlu0 %779
        %781 = vrot.lane.b32.xlu0 %v760, 126
        %v782 = vpop.permute.xlu0 %781
        %vm783 = vcmask 1031168
        %v784 = vsel %vm783, %v778, %v780
        %v785 = vsel %vm783, %v780, %v782
        %vm786 = vcmask 1031168
        %v789 = vsel %vm786, %v782, %v778
        %790 = vrot.lane.b32.xlu0 %v758, 110
        %v791 = vpop.permute.xlu0 %790
        %792 = vrot.lane.b32.xlu0 %v759, 110
        %v793 = vpop.permute.xlu0 %792
        %794 = vrot.lane.b32.xlu0 %v760, 110
        %v795 = vpop.permute.xlu0 %794
        %vm796 = vcmask 900096
        %v797 = vsel %vm796, %v791, %v793
        %v798 = vsel %vm796, %v793, %v795
        %vm799 = vcmask 900096
        %v802 = vsel %vm799, %v795, %v791
        %803 = vrot.lane.b32.xlu0 %v758, 109
        %v804 = vpop.permute.xlu0 %803
        %805 = vrot.lane.b32.xlu0 %v759, 109
        %v806 = vpop.permute.xlu0 %805
        %807 = vrot.lane.b32.xlu0 %v760, 109
        %v808 = vpop.permute.xlu0 %807
        %vm809 = vcmask 891904
        %v810 = vsel %vm809, %v804, %v806
        %v811 = vsel %vm809, %v806, %v808
        %vm812 = vcmask 891904
        %v815 = vsel %vm812, %v808, %v804
        %816 = vrot.lane.b32.xlu0 %v758, 108
        %v817 = vpop.permute.xlu0 %816
        %818 = vrot.lane.b32.xlu0 %v759, 108
        %v819 = vpop.permute.xlu0 %818
        %820 = vrot.lane.b32.xlu0 %v760, 108
        %v821 = vpop.permute.xlu0 %820
        %vm822 = vcmask 883712
        %v823 = vsel %vm822, %v817, %v819
        %v824 = vsel %vm822, %v819, %v821
        %vm825 = vcmask 883712
        %v828 = vsel %vm825, %v821, %v817
        %829 = vrot.lane.b32.xlu0 %v758, 92
        %v830 = vpop.permute.xlu0 %829
        %831 = vrot.lane.b32.xlu0 %v759, 92
        %v832 = vpop.permute.xlu0 %831
        %833 = vrot.lane.b32.xlu0 %v760, 92
        %v834 = vpop.permute.xlu0 %833
        %vm835 = vcmask 752640
        %v836 = vsel %vm835, %v830, %v832
        %v837 = vsel %vm835, %v832, %v834
        %vm838 = vcmask 752640
        %v841 = vsel %vm838, %v834, %v830
        %842 = vrot.lane.b32.xlu0 %v758, 91
        %v843 = vpop.permute.xlu0 %842
        %844 = vrot.lane.b32.xlu0 %v759, 91
        %v845 = vpop.permute.xlu0 %844
        %846 = vrot.lane.b32.xlu0 %v760, 91
        %v847 = vpop.permute.xlu0 %846
        %vm848 = vcmask 744448
        %v849 = vsel %vm848, %v843, %v845
        %v850 = vsel %vm848, %v845, %v847
        %vm851 = vcmask 744448
        %v854 = vsel %vm851, %v847, %v843
        %855 = vrot.lane.b32.xlu0 %v758, 90
        %v856 = vpop.permute.xlu0 %855
        %857 = vrot.lane.b32.xlu0 %v759, 90
        %v858 = vpop.permute.xlu0 %857
        %859 = vrot.lane.b32.xlu0 %v760, 90
        %v860 = vpop.permute.xlu0 %859
        %vm861 = vcmask 736256
        %v862 = vsel %vm861, %v856, %v858
        %v863 = vsel %vm861, %v858, %v860
        %vm864 = vcmask 736256
        %v867 = vsel %vm864, %v860, %v856
        %v869 = vshll.u32 %v771, 16
        %v872 = vshll.u32 %v772, 16
        %v874 = vshll.u32 %v776, 16
        %v880 = vrot.slane %v784, 7
        %v881 = vrot.slane %v785, 7
        %v882 = vrot.slane %v789, 7
        %v884 = vshll.u32 %v797, 16
        %v886 = vrot.slane %v884, 7
        %v888 = vshll.u32 %v798, 16
        %v890 = vrot.slane %v888, 7
        %v891 = vshll.u32 %v802, 16
        %v893 = vrot.slane %v891, 7
        %v898 = vrot.slane %v810, 6
        %v899 = vrot.slane %v811, 6
        %v900 = vrot.slane %v815, 6
        %v902 = vshll.u32 %v823, 16
        %v904 = vrot.slane %v902, 6
        %v906 = vshll.u32 %v824, 16
        %v908 = vrot.slane %v906, 6
        %v909 = vshll.u32 %v828, 16
        %v911 = vrot.slane %v909, 6
        %v916 = vrot.slane %v836, 5
        %v917 = vrot.slane %v837, 5
        %v918 = vrot.slane %v841, 5
        %v920 = vshll.u32 %v849, 16
        %v922 = vrot.slane %v920, 5
        %v924 = vshll.u32 %v850, 16
        %v926 = vrot.slane %v924, 5
        %v927 = vshll.u32 %v854, 16
        %v929 = vrot.slane %v927, 5
        %v934 = vrot.slane %v862, 4
        %v935 = vrot.slane %v863, 4
        %v936 = vrot.slane %v867, 4
        %vm937 = vcmask 1040384
        %vm938 = vsmask.f32 256
        %vm939 = vmand %vm937, %vm938
        %v940 = vsel %vm939, %v758, %v869
        %v941 = vsel %vm939, %v759, %v872
        %v942 = vsel %vm939, %v760, %v874
        %vm943 = vcmask 1040384
        %v946 = vsel %vm943, %v940, %v880
        %v950 = vsel %vm943, %v941, %v881
        %v954 = vsel %vm943, %v942, %v882
        %vm956 = vcmask 1041408
        %vm957 = vsmask.f32 1280
        %vm958 = vmand %vm956, %vm957
        %v959 = vsel %vm958, %v946, %v886
        %v960 = vsel %vm958, %v950, %v890
        %v961 = vsel %vm958, %v954, %v893
        %vm962 = vcmask 1041408
        %v965 = vsel %vm962, %v959, %v898
        %v969 = vsel %vm962, %v960, %v899
        %v973 = vsel %vm962, %v961, %v900
        %vm975 = vcmask 1042432
        %vm976 = vsmask.f32 2304
        %vm977 = vmand %vm975, %vm976
        %v978 = vsel %vm977, %v965, %v904
        %v979 = vsel %vm977, %v969, %v908
        %v980 = vsel %vm977, %v973, %v911
        %vm981 = vcmask 1042432
        %v984 = vsel %vm981, %v978, %v916
        %v988 = vsel %vm981, %v979, %v917
        %v992 = vsel %vm981, %v980, %v918
        %vm994 = vcmask 1043456
        %vm995 = vsmask.f32 3328
        %vm996 = vmand %vm994, %vm995
        %v997 = vsel %vm996, %v984, %v922
        %v998 = vsel %vm996, %v988, %v926
        %v999 = vsel %vm996, %v992, %v929
        %vm1000 = vcmask 1043456
        %v1003 = vsel %vm1000, %v997, %v934
        %v1007 = vsel %vm1000, %v998, %v935
        %v1011 = vsel %vm1000, %v999, %v936
        %vm1013 = vcmask 1044480
        %vm1014 = vsmask.f32 4352
        %vm1015 = vmand %vm1013, %vm1014
        %v1016 = vld [vmem:[#allocation3] sm:$0x1f]
        %v1017 = vsel %vm1015, %v1003, %v1016
        %1018 = vst [vmem:[#allocation3] sm:$0x1f] %v1017
        %v1019 = vld [vmem:[#allocation3 + $0x8] sm:$0x1f]
        %v1020 = vsel %vm1015, %v1007, %v1019
        %1021 = vst [vmem:[#allocation3 + $0x8] sm:$0x1f] %v1020
        %v1022 = vld [vmem:[#allocation3 + $0x10] sm:$0x1f]
        %v1023 = vsel %vm1015, %v1011, %v1022
        %1024 = vst [vmem:[#allocation3 + $0x10] sm:$0x1f] %v1023
        %s1025 = scalar_lea.vmem [#allocation2], 1
        %v1026 = vld [vmem:[%s1025] ss:$8 sm:$0x7]
        %v1028 = vlaneseq
        %v1029 = vshrl.u32 %v1028, 7
        %v1030 = vsub.s32 0, %v1029
        %v1031 = vrot.slane %v1026, %v1030
        %v1032 = vlaneseq
        %v1033 = vshrl.u32 %v1032, 7
        %v1034 = vsub.s32 1, %v1033
        %v1035 = vrot.slane %v1026, %v1034
        %v1036 = vlaneseq
        %v1037 = vshrl.u32 %v1036, 7
        %v1038 = vsub.s32 2, %v1037
        %v1039 = vrot.slane %v1026, %v1038
        %v1043 = vpack.c.bf16 %v1031, %v1031
        %v1044 = vpack.c.bf16 %v1035, %v1035
        %v1045 = vpack.c.bf16 %v1039, %v1039
        %1049 = vrot.lane.b32.xlu0 %v1043, 127
        %v1050 = vpop.permute.xlu0 %1049
        %1051 = vrot.lane.b32.xlu0 %v1044, 127
        %v1052 = vpop.permute.xlu0 %1051
        %1053 = vrot.lane.b32.xlu0 %v1045, 127
        %v1054 = vpop.permute.xlu0 %1053
        %v1055 = vsel %vm770, %v1050, %v1052
        %v1056 = vsel %vm770, %v1052, %v1054
        %v1059 = vsel %vm773, %v1054, %v1050
        %1060 = vrot.lane.b32.xlu0 %v1043, 126
        %v1061 = vpop.permute.xlu0 %1060
        %1062 = vrot.lane.b32.xlu0 %v1044, 126
        %v1063 = vpop.permute.xlu0 %1062
        %1064 = vrot.lane.b32.xlu0 %v1045, 126
        %v1065 = vpop.permute.xlu0 %1064
        %v1066 = vsel %vm783, %v1061, %v1063
        %v1067 = vsel %vm783, %v1063, %v1065
        %v1070 = vsel %vm786, %v1065, %v1061
        %1071 = vrot.lane.b32.xlu0 %v1043, 110
        %v1072 = vpop.permute.xlu0 %1071
        %1073 = vrot.lane.b32.xlu0 %v1044, 110
        %v1074 = vpop.permute.xlu0 %1073
        %1075 = vrot.lane.b32.xlu0 %v1045, 110
        %v1076 = vpop.permute.xlu0 %1075
        %v1077 = vsel %vm796, %v1072, %v1074
        %v1078 = vsel %vm796, %v1074, %v1076
        %v1081 = vsel %vm799, %v1076, %v1072
        %1082 = vrot.lane.b32.xlu0 %v1043, 109
        %v1083 = vpop.permute.xlu0 %1082
        %1084 = vrot.lane.b32.xlu0 %v1044, 109
        %v1085 = vpop.permute.xlu0 %1084
        %1086 = vrot.lane.b32.xlu0 %v1045, 109
        %v1087 = vpop.permute.xlu0 %1086
        %v1088 = vsel %vm809, %v1083, %v1085
        %v1089 = vsel %vm809, %v1085, %v1087
        %v1092 = vsel %vm812, %v1087, %v1083
        %1093 = vrot.lane.b32.xlu0 %v1043, 108
        %v1094 = vpop.permute.xlu0 %1093
        %1095 = vrot.lane.b32.xlu0 %v1044, 108
        %v1096 = vpop.permute.xlu0 %1095
        %1097 = vrot.lane.b32.xlu0 %v1045, 108
        %v1098 = vpop.permute.xlu0 %1097
        %v1099 = vsel %vm822, %v1094, %v1096
        %v1100 = vsel %vm822, %v1096, %v1098
        %v1103 = vsel %vm825, %v1098, %v1094
        %1104 = vrot.lane.b32.xlu0 %v1043, 92
        %v1105 = vpop.permute.xlu0 %1104
        %1106 = vrot.lane.b32.xlu0 %v1044, 92
        %v1107 = vpop.permute.xlu0 %1106
        %1108 = vrot.lane.b32.xlu0 %v1045, 92
        %v1109 = vpop.permute.xlu0 %1108
        %v1110 = vsel %vm835, %v1105, %v1107
        %v1111 = vsel %vm835, %v1107, %v1109
        %v1114 = vsel %vm838, %v1109, %v1105
        %1115 = vrot.lane.b32.xlu0 %v1043, 91
        %v1116 = vpop.permute.xlu0 %1115
        %1117 = vrot.lane.b32.xlu0 %v1044, 91
        %v1118 = vpop.permute.xlu0 %1117
        %1119 = vrot.lane.b32.xlu0 %v1045, 91
        %v1120 = vpop.permute.xlu0 %1119
        %v1121 = vsel %vm848, %v1116, %v1118
        %v1122 = vsel %vm848, %v1118, %v1120
        %v1125 = vsel %vm851, %v1120, %v1116
        %1126 = vrot.lane.b32.xlu0 %v1043, 90
        %v1127 = vpop.permute.xlu0 %1126
        %1128 = vrot.lane.b32.xlu0 %v1044, 90
        %v1129 = vpop.permute.xlu0 %1128
        %1130 = vrot.lane.b32.xlu0 %v1045, 90
        %v1131 = vpop.permute.xlu0 %1130
        %v1132 = vsel %vm861, %v1127, %v1129
        %v1133 = vsel %vm861, %v1129, %v1131
        %v1136 = vsel %vm864, %v1131, %v1127
        %v1138 = vshll.u32 %v1055, 16
        %v1141 = vshll.u32 %v1056, 16
        %v1143 = vshll.u32 %v1059, 16
        %v1149 = vrot.slane %v1066, 7
        %v1150 = vrot.slane %v1067, 7
        %v1151 = vrot.slane %v1070, 7
        %v1153 = vshll.u32 %v1077, 16
        %v1155 = vrot.slane %v1153, 7
        %v1157 = vshll.u32 %v1078, 16
        %v1159 = vrot.slane %v1157, 7
        %v1160 = vshll.u32 %v1081, 16
        %v1162 = vrot.slane %v1160, 7
        %v1167 = vrot.slane %v1088, 6
        %v1168 = vrot.slane %v1089, 6
        %v1169 = vrot.slane %v1092, 6
        %v1171 = vshll.u32 %v1099, 16
        %v1173 = vrot.slane %v1171, 6
        %v1175 = vshll.u32 %v1100, 16
        %v1177 = vrot.slane %v1175, 6
        %v1178 = vshll.u32 %v1103, 16
        %v1180 = vrot.slane %v1178, 6
        %v1185 = vrot.slane %v1110, 5
        %v1186 = vrot.slane %v1111, 5
        %v1187 = vrot.slane %v1114, 5
        %v1189 = vshll.u32 %v1121, 16
        %v1191 = vrot.slane %v1189, 5
        %v1193 = vshll.u32 %v1122, 16
        %v1195 = vrot.slane %v1193, 5
        %v1196 = vshll.u32 %v1125, 16
        %v1198 = vrot.slane %v1196, 5
        %v1203 = vrot.slane %v1132, 4
        %v1204 = vrot.slane %v1133, 4
        %v1205 = vrot.slane %v1136, 4
        %v1206 = vsel %vm939, %v1043, %v1138
        %v1207 = vsel %vm939, %v1044, %v1141
        %v1208 = vsel %vm939, %v1045, %v1143
        %v1211 = vsel %vm943, %v1206, %v1149
        %v1215 = vsel %vm943, %v1207, %v1150
        %v1219 = vsel %vm943, %v1208, %v1151
        %v1221 = vsel %vm958, %v1211, %v1155
        %v1222 = vsel %vm958, %v1215, %v1159
        %v1223 = vsel %vm958, %v1219, %v1162
        %v1226 = vsel %vm962, %v1221, %v1167
        %v1230 = vsel %vm962, %v1222, %v1168
        %v1234 = vsel %vm962, %v1223, %v1169
        %v1236 = vsel %vm977, %v1226, %v1173
        %v1237 = vsel %vm977, %v1230, %v1177
        %v1238 = vsel %vm977, %v1234, %v1180
        %v1241 = vsel %vm981, %v1236, %v1185
        %v1245 = vsel %vm981, %v1237, %v1186
        %v1249 = vsel %vm981, %v1238, %v1187
        %v1251 = vsel %vm996, %v1241, %v1191
        %v1252 = vsel %vm996, %v1245, %v1195
        %v1253 = vsel %vm996, %v1249, %v1198
        %v1256 = vsel %vm1000, %v1251, %v1203
        %v1259 = vsel %vm1000, %v1252, %v1204
        %v1262 = vsel %vm1000, %v1253, %v1205
        %v1263 = vshrl.u32 %v1256, 16
        %v1265 = vrot.slane %v1263, 3
        %v1266 = vshll.u32 %v1256, 16
        %v1268 = vrot.slane %v1266, 4
        %v1269 = vor.u32 %v1265, %v1268
        %v1270 = vshrl.u32 %v1259, 16
        %v1272 = vrot.slane %v1270, 3
        %v1273 = vshll.u32 %v1259, 16
        %v1275 = vrot.slane %v1273, 4
        %v1276 = vor.u32 %v1272, %v1275
        %v1277 = vshrl.u32 %v1262, 16
        %v1279 = vrot.slane %v1277, 3
        %v1280 = vshll.u32 %v1262, 16
        %v1282 = vrot.slane %v1280, 4
        %v1283 = vor.u32 %v1279, %v1282
        %vm1287 = vcmask 1047556
        %vm1288 = vsmask.f32 7954
        %vm1289 = vmand %vm1287, %vm1288
        %v1290 = vld [vmem:[#allocation3] sm:$0xf0]
        %v1291 = vsel %vm1289, %v1269, %v1290
        %1292 = vst [vmem:[#allocation3] sm:$0xf0] %v1291
        %v1293 = vld [vmem:[#allocation3 + $0x8] sm:$0xf0]
        %v1294 = vsel %vm1289, %v1276, %v1293
        %1295 = vst [vmem:[#allocation3 + $0x8] sm:$0xf0] %v1294
        %v1296 = vld [vmem:[#allocation3 + $0x10] sm:$0xf0]
        %v1297 = vsel %vm1289, %v1283, %v1296
        %1298 = vst [vmem:[#allocation3 + $0x10] sm:$0xf0] %v1297
        %1299 = vst [vmem:[#allocation3 + $0x18] sm:$0x1] %v1269
        %1300 = vst [vmem:[#allocation3 + $0x20] sm:$0x1] %v1276
        %1301 = vst [vmem:[#allocation3 + $0x28] sm:$0x1] %v1283
        %s1302 = scalar_lea.vmem [#allocation2], 2
        %v1303 = vld [vmem:[%s1302] ss:$8 sm:$0x7]
        %v1305 = vlaneseq
        %v1306 = vshrl.u32 %v1305, 7
        %v1307 = vsub.s32 0, %v1306
        %v1308 = vrot.slane %v1303, %v1307
        %v1309 = vlaneseq
        %v1310 = vshrl.u32 %v1309, 7
        %v1311 = vsub.s32 1, %v1310
        %v1312 = vrot.slane %v1303, %v1311
        %v1313 = vlaneseq
        %v1314 = vshrl.u32 %v1313, 7
        %v1315 = vsub.s32 2, %v1314
        %v1316 = vrot.slane %v1303, %v1315
        %v1320 = vpack.c.bf16 %v1308, %v1308
        %v1321 = vpack.c.bf16 %v1312, %v1312
        %v1322 = vpack.c.bf16 %v1316, %v1316
        %1326 = vrot.lane.b32.xlu0 %v1320, 127
        %v1327 = vpop.permute.xlu0 %1326
        %1328 = vrot.lane.b32.xlu0 %v1321, 127
        %v1329 = vpop.permute.xlu0 %1328
        %1330 = vrot.lane.b32.xlu0 %v1322, 127
        %v1331 = vpop.permute.xlu0 %1330
        %v1332 = vsel %vm770, %v1327, %v1329
        %v1333 = vsel %vm770, %v1329, %v1331
        %v1336 = vsel %vm773, %v1331, %v1327
        %1337 = vrot.lane.b32.xlu0 %v1320, 126
        %v1338 = vpop.permute.xlu0 %1337
        %1339 = vrot.lane.b32.xlu0 %v1321, 126
        %v1340 = vpop.permute.xlu0 %1339
        %1341 = vrot.lane.b32.xlu0 %v1322, 126
        %v1342 = vpop.permute.xlu0 %1341
        %v1343 = vsel %vm783, %v1338, %v1340
        %v1344 = vsel %vm783, %v1340, %v1342
        %v1347 = vsel %vm786, %v1342, %v1338
        %1348 = vrot.lane.b32.xlu0 %v1320, 110
        %v1349 = vpop.permute.xlu0 %1348
        %1350 = vrot.lane.b32.xlu0 %v1321, 110
        %v1351 = vpop.permute.xlu0 %1350
        %1352 = vrot.lane.b32.xlu0 %v1322, 110
        %v1353 = vpop.permute.xlu0 %1352
        %v1354 = vsel %vm796, %v1349, %v1351
        %v1355 = vsel %vm796, %v1351, %v1353
        %v1358 = vsel %vm799, %v1353, %v1349
        %1359 = vrot.lane.b32.xlu0 %v1320, 109
        %v1360 = vpop.permute.xlu0 %1359
        %1361 = vrot.lane.b32.xlu0 %v1321, 109
        %v1362 = vpop.permute.xlu0 %1361
        %1363 = vrot.lane.b32.xlu0 %v1322, 109
        %v1364 = vpop.permute.xlu0 %1363
        %v1365 = vsel %vm809, %v1360, %v1362
        %v1366 = vsel %vm809, %v1362, %v1364
        %v1369 = vsel %vm812, %v1364, %v1360
        %1370 = vrot.lane.b32.xlu0 %v1320, 108
        %v1371 = vpop.permute.xlu0 %1370
        %1372 = vrot.lane.b32.xlu0 %v1321, 108
        %v1373 = vpop.permute.xlu0 %1372
        %1374 = vrot.lane.b32.xlu0 %v1322, 108
        %v1375 = vpop.permute.xlu0 %1374
        %v1376 = vsel %vm822, %v1371, %v1373
        %v1377 = vsel %vm822, %v1373, %v1375
        %v1380 = vsel %vm825, %v1375, %v1371
        %1381 = vrot.lane.b32.xlu0 %v1320, 92
        %v1382 = vpop.permute.xlu0 %1381
        %1383 = vrot.lane.b32.xlu0 %v1321, 92
        %v1384 = vpop.permute.xlu0 %1383
        %1385 = vrot.lane.b32.xlu0 %v1322, 92
        %v1386 = vpop.permute.xlu0 %1385
        %v1387 = vsel %vm835, %v1382, %v1384
        %v1388 = vsel %vm835, %v1384, %v1386
        %v1391 = vsel %vm838, %v1386, %v1382
        %1392 = vrot.lane.b32.xlu0 %v1320, 91
        %v1393 = vpop.permute.xlu0 %1392
        %1394 = vrot.lane.b32.xlu0 %v1321, 91
        %v1395 = vpop.permute.xlu0 %1394
        %1396 = vrot.lane.b32.xlu0 %v1322, 91
        %v1397 = vpop.permute.xlu0 %1396
        %v1398 = vsel %vm848, %v1393, %v1395
        %v1399 = vsel %vm848, %v1395, %v1397
        %v1402 = vsel %vm851, %v1397, %v1393
        %1403 = vrot.lane.b32.xlu0 %v1320, 90
        %v1404 = vpop.permute.xlu0 %1403
        %1405 = vrot.lane.b32.xlu0 %v1321, 90
        %v1406 = vpop.permute.xlu0 %1405
        %1407 = vrot.lane.b32.xlu0 %v1322, 90
        %v1408 = vpop.permute.xlu0 %1407
        %v1409 = vsel %vm861, %v1404, %v1406
        %v1410 = vsel %vm861, %v1406, %v1408
        %v1413 = vsel %vm864, %v1408, %v1404
        %v1415 = vshll.u32 %v1332, 16
        %v1418 = vshll.u32 %v1333, 16
        %v1420 = vshll.u32 %v1336, 16
        %v1426 = vrot.slane %v1343, 7
        %v1427 = vrot.slane %v1344, 7
        %v1428 = vrot.slane %v1347, 7
        %v1430 = vshll.u32 %v1354, 16
        %v1432 = vrot.slane %v1430, 7
        %v1434 = vshll.u32 %v1355, 16
        %v1436 = vrot.slane %v1434, 7
        %v1437 = vshll.u32 %v1358, 16
        %v1439 = vrot.slane %v1437, 7
        %v1444 = vrot.slane %v1365, 6
        %v1445 = vrot.slane %v1366, 6
        %v1446 = vrot.slane %v1369, 6
        %v1448 = vshll.u32 %v1376, 16
        %v1450 = vrot.slane %v1448, 6
        %v1452 = vshll.u32 %v1377, 16
        %v1454 = vrot.slane %v1452, 6
        %v1455 = vshll.u32 %v1380, 16
        %v1457 = vrot.slane %v1455, 6
        %v1462 = vrot.slane %v1387, 5
        %v1463 = vrot.slane %v1388, 5
        %v1464 = vrot.slane %v1391, 5
        %v1466 = vshll.u32 %v1398, 16
        %v1468 = vrot.slane %v1466, 5
        %v1470 = vshll.u32 %v1399, 16
        %v1472 = vrot.slane %v1470, 5
        %v1473 = vshll.u32 %v1402, 16
        %v1475 = vrot.slane %v1473, 5
        %v1480 = vrot.slane %v1409, 4
        %v1481 = vrot.slane %v1410, 4
        %v1482 = vrot.slane %v1413, 4
        %v1483 = vsel %vm939, %v1320, %v1415
        %v1484 = vsel %vm939, %v1321, %v1418
        %v1485 = vsel %vm939, %v1322, %v1420
        %v1488 = vsel %vm943, %v1483, %v1426
        %v1492 = vsel %vm943, %v1484, %v1427
        %v1496 = vsel %vm943, %v1485, %v1428
        %v1498 = vsel %vm958, %v1488, %v1432
        %v1499 = vsel %vm958, %v1492, %v1436
        %v1500 = vsel %vm958, %v1496, %v1439
        %v1503 = vsel %vm962, %v1498, %v1444
        %v1507 = vsel %vm962, %v1499, %v1445
        %v1511 = vsel %vm962, %v1500, %v1446
        %v1513 = vsel %vm977, %v1503, %v1450
        %v1514 = vsel %vm977, %v1507, %v1454
        %v1515 = vsel %vm977, %v1511, %v1457
        %v1518 = vsel %vm981, %v1513, %v1462
        %v1522 = vsel %vm981, %v1514, %v1463
        %v1526 = vsel %vm981, %v1515, %v1464
        %v1528 = vsel %vm996, %v1518, %v1468
        %v1529 = vsel %vm996, %v1522, %v1472
        %v1530 = vsel %vm996, %v1526, %v1475
        %v1533 = vsel %vm1000, %v1528, %v1480
        %v1536 = vsel %vm1000, %v1529, %v1481
        %v1539 = vsel %vm1000, %v1530, %v1482
        %v1543 = vrot.slane %v1533, 7
        %v1544 = vrot.slane %v1536, 7
        %v1545 = vrot.slane %v1539, 7
        %vm1549 = vcmask 1045505
        %vm1550 = vsmask.f32 5376
        %vm1551 = vmand %vm1549, %vm1550
        %v1552 = vld [vmem:[#allocation3 + $0x18] sm:$0x3e]
        %v1553 = vsel %vm1551, %v1543, %v1552
        %1554 = vst [vmem:[#allocation3 + $0x18] sm:$0x3e] %v1553
        %v1555 = vld [vmem:[#allocation3 + $0x20] sm:$0x3e]
        %v1556 = vsel %vm1551, %v1544, %v1555
        %1557 = vst [vmem:[#allocation3 + $0x20] sm:$0x3e] %v1556
        %v1558 = vld [vmem:[#allocation3 + $0x28] sm:$0x3e]
        %v1559 = vsel %vm1551, %v1545, %v1558
        %1560 = vst [vmem:[#allocation3 + $0x28] sm:$0x3e] %v1559
        %v1561 = vld [vmem:[#allocation3] sm:$0xff]
        %v1562 = vld [vmem:[#allocation3 + $0x8] sm:$0xff]
        %v1563 = vld [vmem:[#allocation3 + $0x10] sm:$0xff]
        %v1564 = vld [vmem:[#allocation3 + $0x18] sm:$0x3f]
        %v1565 = vld [vmem:[#allocation3 + $0x20] sm:$0x3f]
        %v1566 = vld [vmem:[#allocation3 + $0x28] sm:$0x3f]
        %v1567 = vld [vmem:[%s2] sm:$0xf]
        %v1568 = vld [vmem:[%s2 + $0x4] sm:$0xf]
        %v1569 = vld [vmem:[%s2 + $0x8] sm:$0xf]
        %v1570 = vld [vmem:[%s2 + $0xc] sm:$0xf]
        %v1571 = vld [vmem:[%s2 + $0x10] sm:$0xf]
        %v1572 = vld [vmem:[%s2 + $0x14] sm:$0xf]
        %v1573 = vld [vmem:[%s2 + $0x18] sm:$0xf]
        %v1574 = vld [vmem:[%s2 + $0x1c] sm:$0xf]
        %v1575 = vld [vmem:[%s2 + $0x20] sm:$0xf]
        %v1576 = vld [vmem:[%s2 + $0x24] sm:$0xf]
        %v1577 = vld [vmem:[%s2 + $0x28] sm:$0xf]
        %v1578 = vld [vmem:[%s2 + $0x2c] sm:$0xf]
        %v1579 = vld [vmem:[%s2 + $0x30] sm:$0xf]
        %v1580 = vld [vmem:[%s2 + $0x34] sm:$0xf]
        %v1581 = vld [vmem:[%s2 + $0x38] sm:$0xf]
        %v1582 = vld [vmem:[%s2 + $0x3c] sm:$0xf]
        %v1583 = vld [vmem:[%s3] sm:$0xff]
        %v1584 = vld [vmem:[%s3 + $0x8] sm:$0xff]
        %v1585 = vld [vmem:[%s3 + $0x10] sm:$0xff]
        %v1586 = vld [vmem:[%s3 + $0x18] sm:$0xff]
        %v1587 = vld [vmem:[%s3 + $0x20] sm:$0xff]
        %v1588 = vld [vmem:[%s3 + $0x28] sm:$0xff]
        %v1589 = vld [vmem:[%s3 + $0x30] sm:$0xff]
        %v1590 = vld [vmem:[%s3 + $0x38] sm:$0xff]
        %v1591 = vld [vmem:[%s3 + $0x40] sm:$0xff]
        %v1592 = vld [vmem:[%s3 + $0x48] sm:$0xff]
        %v1593 = vld [vmem:[%s3 + $0x50] sm:$0xff]
        %v1594 = vld [vmem:[%s3 + $0x58] sm:$0xff]
        %v1595 = vld [vmem:[%s3 + $0x60] sm:$0xff]
        %v1596 = vld [vmem:[%s3 + $0x68] sm:$0xff]
        %v1597 = vld [vmem:[%s3 + $0x70] sm:$0xff]
        %v1598 = vld [vmem:[%s3 + $0x78] sm:$0xff]
        %1600 = vset.pattern.permute.xlu0 0
        %1601 = vperm.xlu0 %1600, %v1583
        %v1602 = vpop.permute.xlu0 %1601
        %1605 = vset.pattern.permute.xlu0 0
        %1606 = vperm.xlu0 %1605, %v1584
        %v1607 = vpop.permute.xlu0 %1606
        %1610 = vset.pattern.permute.xlu0 0
        %1611 = vperm.xlu0 %1610, %v1585
        %v1612 = vpop.permute.xlu0 %1611
        %1615 = vset.pattern.permute.xlu0 0
        %1616 = vperm.xlu0 %1615, %v1586
        %v1617 = vpop.permute.xlu0 %1616
        %1620 = vset.pattern.permute.xlu0 0
        %1621 = vperm.xlu0 %1620, %v1587
        %v1622 = vpop.permute.xlu0 %1621
        %1625 = vset.pattern.permute.xlu0 0
        %1626 = vperm.xlu0 %1625, %v1588
        %v1627 = vpop.permute.xlu0 %1626
        %1630 = vset.pattern.permute.xlu0 0
        %1631 = vperm.xlu0 %1630, %v1589
        %v1632 = vpop.permute.xlu0 %1631
        %1635 = vset.pattern.permute.xlu0 0
        %1636 = vperm.xlu0 %1635, %v1590
        %v1637 = vpop.permute.xlu0 %1636
        %1640 = vset.pattern.permute.xlu0 0
        %1641 = vperm.xlu0 %1640, %v1591
        %v1642 = vpop.permute.xlu0 %1641
        %1645 = vset.pattern.permute.xlu0 0
        %1646 = vperm.xlu0 %1645, %v1592
        %v1647 = vpop.permute.xlu0 %1646
        %1650 = vset.pattern.permute.xlu0 0
        %1651 = vperm.xlu0 %1650, %v1593
        %v1652 = vpop.permute.xlu0 %1651
        %1655 = vset.pattern.permute.xlu0 0
        %1656 = vperm.xlu0 %1655, %v1594
        %v1657 = vpop.permute.xlu0 %1656
        %1660 = vset.pattern.permute.xlu0 0
        %1661 = vperm.xlu0 %1660, %v1595
        %v1662 = vpop.permute.xlu0 %1661
        %1665 = vset.pattern.permute.xlu0 0
        %1666 = vperm.xlu0 %1665, %v1596
        %v1667 = vpop.permute.xlu0 %1666
        %1670 = vset.pattern.permute.xlu0 0
        %1671 = vperm.xlu0 %1670, %v1597
        %v1672 = vpop.permute.xlu0 %1671
        %1675 = vset.pattern.permute.xlu0 0
        %1676 = vperm.xlu0 %1675, %v1598
        %v1677 = vpop.permute.xlu0 %1676
        %v1695 = vunpack.c.l.b16 %v1567
        %v1696 = vunpack.c.l.b16 %v1568
        %v1697 = vunpack.c.l.b16 %v1569
        %v1698 = vunpack.c.l.b16 %v1570
        %v1699 = vunpack.c.l.b16 %v1571
        %v1700 = vunpack.c.l.b16 %v1572
        %v1701 = vunpack.c.l.b16 %v1573
        %v1702 = vunpack.c.l.b16 %v1574
        %v1703 = vunpack.c.l.b16 %v1575
        %v1704 = vunpack.c.l.b16 %v1576
        %v1705 = vunpack.c.l.b16 %v1577
        %v1706 = vunpack.c.l.b16 %v1578
        %v1707 = vunpack.c.l.b16 %v1579
        %v1708 = vunpack.c.l.b16 %v1580
        %v1709 = vunpack.c.l.b16 %v1581
        %v1710 = vunpack.c.l.b16 %v1582
        %v1711 = vpack.c.b16 %v1696, %v1695
        %v1712 = vpack.c.b16 %v1698, %v1697
        %v1713 = vpack.c.b16 %v1700, %v1699
        %v1714 = vpack.c.b16 %v1702, %v1701
        %v1715 = vpack.c.b16 %v1704, %v1703
        %v1716 = vpack.c.b16 %v1706, %v1705
        %v1717 = vpack.c.b16 %v1708, %v1707
        %v1718 = vpack.c.b16 %v1710, %v1709
        %vm1719 = vcmask 220160
        %v1721 = vsel %vm1719, %v1711, 0
        %v1724 = vsel %vm1719, %v1712, 0
        %v1727 = vsel %vm1719, %v1713, 0
        %v1730 = vsel %vm1719, %v1714, 0
        %v1733 = vsel %vm1719, %v1715, 0
        %v1736 = vsel %vm1719, %v1716, 0
        %v1739 = vsel %vm1719, %v1717, 0
        %v1742 = vsel %vm1719, %v1718, 0
        %vm1744 = vcmask 1044480
        %vm1745 = vcmask 1045504
        %v1746 = vsel %vm1744, 4294967295, 65535
        %v1747 = vsel %vm1745, %v1746, 0
        %v1749 = vand.u32 %v1564, %v1747
        %v1752 = vand.u32 %v1565, %v1747
        %v1755 = vand.u32 %v1566, %v1747
        %1757 = vmatprep.subr.bf16.mxu0 %v1562
        %1758 = vmatpush1.bf16.msra.mxu0 %v1561
        %1759 = vmatprep.subr.bf16.mxu0 %v1752
        %1760 = vmatpush1.bf16.msra.mxu0 %v1749
        %1761 = vmatprep.subr.bf16.mxu0 0
        %1762 = vmatpush1.bf16.msra.mxu0 0
        %1763 = vmatprep.subr.bf16.mxu0 0
        %1764 = vmatpush1.bf16.msra.mxu0 0
        %1765 = vmatprep.subr.bf16.mxu0 0
        %1766 = vmatpush1.bf16.msra.mxu0 0
        %1767 = vmatprep.subr.bf16.mxu0 0
        %1768 = vmatpush1.bf16.msra.mxu0 0
        %1769 = vmatprep.subr.bf16.mxu0 0
        %1770 = vmatpush1.bf16.msra.mxu0 0
        %1771 = vmatprep.subr.bf16.mxu0 0
        %1772 = vmatpush1.bf16.msra.mxu0 0
        %1773 = vmatprep.subr.bf16.mxu0 0
        %1774 = vmatpush1.bf16.msra.mxu0 0
        %1775 = vmatprep.subr.bf16.mxu0 0
        %1776 = vmatpush1.bf16.msra.mxu0 0
        %1777 = vmatprep.subr.bf16.mxu0 0
        %1778 = vmatpush1.bf16.msra.mxu0 0
        %1779 = vmatprep.subr.bf16.mxu0 0
        %1780 = vmatpush1.bf16.msra.mxu0 0
        %1781 = vmatprep.subr.bf16.mxu0 0
        %1782 = vmatpush1.bf16.msra.mxu0 0
        %1783 = vmatprep.subr.bf16.mxu0 0
        %1784 = vmatpush1.bf16.msra.mxu0 0
        %1785 = vmatprep.subr.bf16.mxu0 0
        %1786 = vmatpush1.bf16.msra.mxu0 0
        %1787 = vmatprep.subr.bf16.mxu0 0
        %1788 = vmatpush1.bf16.msra.mxu0 0
        %1789 = vmatprep.mubr.bf16.mxu0 0
        %1790 = vmatmul.mubr.bf16.gmra.mrb[0].mxu0 %v1721
        %v1791 = vpop.f32.mrb[0].mxu0
        %v1792 = vadd.f32 %v1602, %v1791
        %v1793 = vpop.f32.mrb[0].mxu0
        %v1794 = vadd.f32 %v1602, %v1793
        %v1795 = vpop.f32.mrb[0].mxu0
        %v1796 = vadd.f32 %v1607, %v1795
        %v1797 = vpop.f32.mrb[0].mxu0
        %v1798 = vadd.f32 %v1607, %v1797
        %1799 = vmatprep.mubr.bf16.mxu0 0
        %1800 = vmatmul.mubr.bf16.gmra.mrb[0].mxu0 %v1724
        %v1801 = vpop.f32.mrb[0].mxu0
        %v1802 = vadd.f32 %v1612, %v1801
        %v1803 = vpop.f32.mrb[0].mxu0
        %v1804 = vadd.f32 %v1612, %v1803
        %v1805 = vpop.f32.mrb[0].mxu0
        %v1806 = vadd.f32 %v1617, %v1805
        %v1807 = vpop.f32.mrb[0].mxu0
        %v1808 = vadd.f32 %v1617, %v1807
        %1809 = vmatprep.mubr.bf16.mxu0 0
        %1810 = vmatmul.mubr.bf16.gmra.mrb[0].mxu0 %v1727
        %v1811 = vpop.f32.mrb[0].mxu0
        %v1812 = vadd.f32 %v1622, %v1811
        %v1813 = vpop.f32.mrb[0].mxu0
        %v1814 = vadd.f32 %v1622, %v1813
        %v1815 = vpop.f32.mrb[0].mxu0
        %v1816 = vadd.f32 %v1627, %v1815
        %v1817 = vpop.f32.mrb[0].mxu0
        %v1818 = vadd.f32 %v1627, %v1817
        %1819 = vmatprep.mubr.bf16.mxu0 0
        %1820 = vmatmul.mubr.bf16.gmra.mrb[0].mxu0 %v1730
        %v1821 = vpop.f32.mrb[0].mxu0
        %v1822 = vadd.f32 %v1632, %v1821
        %v1823 = vpop.f32.mrb[0].mxu0
        %v1824 = vadd.f32 %v1632, %v1823
        %v1825 = vpop.f32.mrb[0].mxu0
        %v1826 = vadd.f32 %v1637, %v1825
        %v1827 = vpop.f32.mrb[0].mxu0
        %v1828 = vadd.f32 %v1637, %v1827
        %1829 = vmatprep.mubr.bf16.mxu0 0
        %1830 = vmatmul.mubr.bf16.gmra.mrb[0].mxu0 %v1733
        %v1831 = vpop.f32.mrb[0].mxu0
        %v1832 = vadd.f32 %v1642, %v1831
        %v1833 = vpop.f32.mrb[0].mxu0
        %v1834 = vadd.f32 %v1642, %v1833
        %v1835 = vpop.f32.mrb[0].mxu0
        %v1836 = vadd.f32 %v1647, %v1835
        %v1837 = vpop.f32.mrb[0].mxu0
        %v1838 = vadd.f32 %v1647, %v1837
        %1839 = vmatprep.mubr.bf16.mxu0 0
        %1840 = vmatmul.mubr.bf16.gmra.mrb[0].mxu0 %v1736
        %v1841 = vpop.f32.mrb[0].mxu0
        %v1842 = vadd.f32 %v1652, %v1841
        %v1843 = vpop.f32.mrb[0].mxu0
        %v1844 = vadd.f32 %v1652, %v1843
        %v1845 = vpop.f32.mrb[0].mxu0
        %v1846 = vadd.f32 %v1657, %v1845
        %v1847 = vpop.f32.mrb[0].mxu0
        %v1848 = vadd.f32 %v1657, %v1847
        %1849 = vmatprep.mubr.bf16.mxu0 0
        %1850 = vmatmul.mubr.bf16.gmra.mrb[0].mxu0 %v1739
        %v1851 = vpop.f32.mrb[0].mxu0
        %v1852 = vadd.f32 %v1662, %v1851
        %v1853 = vpop.f32.mrb[0].mxu0
        %v1854 = vadd.f32 %v1662, %v1853
        %v1855 = vpop.f32.mrb[0].mxu0
        %v1856 = vadd.f32 %v1667, %v1855
        %v1857 = vpop.f32.mrb[0].mxu0
        %v1858 = vadd.f32 %v1667, %v1857
        %1859 = vmatprep.mubr.bf16.mxu0 0
        %1860 = vmatmul.mubr.bf16.gmra.mrb[0].mxu0 %v1742
        %v1861 = vpop.f32.mrb[0].mxu0
        %v1862 = vadd.f32 %v1672, %v1861
        %v1863 = vpop.f32.mrb[0].mxu0
        %v1864 = vadd.f32 %v1672, %v1863
        %v1865 = vpop.f32.mrb[0].mxu0
        %v1866 = vadd.f32 %v1677, %v1865
        %v1867 = vpop.f32.mrb[0].mxu0
        %v1868 = vadd.f32 %v1677, %v1867
        %1869 = vdwg.mxu0
        %1870 = vmatprep.subr.bf16.mxu0 0
        %1871 = vmatpush1.bf16.msra.mxu0 %v1563
        %1872 = vmatprep.subr.bf16.mxu0 0
        %1873 = vmatpush1.bf16.msra.mxu0 %v1755
        %1874 = vmatprep.subr.bf16.mxu0 0
        %1875 = vmatpush1.bf16.msra.mxu0 0
        %1876 = vmatprep.subr.bf16.mxu0 0
        %1877 = vmatpush1.bf16.msra.mxu0 0
        %1878 = vmatprep.subr.bf16.mxu0 0
        %1879 = vmatpush1.bf16.msra.mxu0 0
        %1880 = vmatprep.subr.bf16.mxu0 0
        %1881 = vmatpush1.bf16.msra.mxu0 0
        %1882 = vmatprep.subr.bf16.mxu0 0
        %1883 = vmatpush1.bf16.msra.mxu0 0
        %1884 = vmatprep.subr.bf16.mxu0 0
        %1885 = vmatpush1.bf16.msra.mxu0 0
        %1886 = vmatprep.subr.bf16.mxu0 0
        %1887 = vmatpush1.bf16.msra.mxu0 0
        %1888 = vmatprep.subr.bf16.mxu0 0
        %1889 = vmatpush1.bf16.msra.mxu0 0
        %1890 = vmatprep.subr.bf16.mxu0 0
        %1891 = vmatpush1.bf16.msra.mxu0 0
        %1892 = vmatprep.subr.bf16.mxu0 0
        %1893 = vmatpush1.bf16.msra.mxu0 0
        %1894 = vmatprep.subr.bf16.mxu0 0
        %1895 = vmatpush1.bf16.msra.mxu0 0
        %1896 = vmatprep.subr.bf16.mxu0 0
        %1897 = vmatpush1.bf16.msra.mxu0 0
        %1898 = vmatprep.subr.bf16.mxu0 0
        %1899 = vmatpush1.bf16.msra.mxu0 0
        %1900 = vmatprep.subr.bf16.mxu0 0
        %1901 = vmatpush1.bf16.msra.mxu0 0
        %1902 = vmatprep.mubr.bf16.mxu0 0
        %1903 = vmatmul.mubr.bf16.gmra.mrb[0].mxu0 %v1721
        %v1904 = vpop.f32.mrb[0].mxu0
        %v1905 = vadd.f32 %v1602, %v1904
        %v1906 = vpop.f32.mrb[0].mxu0
        %v1907 = vpop.f32.mrb[0].mxu0
        %v1908 = vadd.f32 %v1607, %v1907
        %v1909 = vpop.f32.mrb[0].mxu0
        %1910 = vmatprep.mubr.bf16.mxu0 0
        %1911 = vmatmul.mubr.bf16.gmra.mrb[0].mxu0 %v1724
        %v1912 = vpop.f32.mrb[0].mxu0
        %v1913 = vadd.f32 %v1612, %v1912
        %v1914 = vpop.f32.mrb[0].mxu0
        %v1915 = vpop.f32.mrb[0].mxu0
        %v1916 = vadd.f32 %v1617, %v1915
        %v1917 = vpop.f32.mrb[0].mxu0
        %1918 = vmatprep.mubr.bf16.mxu0 0
        %1919 = vmatmul.mubr.bf16.gmra.mrb[0].mxu0 %v1727
        %v1920 = vpop.f32.mrb[0].mxu0
        %v1921 = vadd.f32 %v1622, %v1920
        %v1922 = vpop.f32.mrb[0].mxu0
        %v1923 = vpop.f32.mrb[0].mxu0
        %v1924 = vadd.f32 %v1627, %v1923
        %v1925 = vpop.f32.mrb[0].mxu0
        %1926 = vmatprep.mubr.bf16.mxu0 0
        %1927 = vmatmul.mubr.bf16.gmra.mrb[0].mxu0 %v1730
        %v1928 = vpop.f32.mrb[0].mxu0
        %v1929 = vadd.f32 %v1632, %v1928
        %v1930 = vpop.f32.mrb[0].mxu0
        %v1931 = vpop.f32.mrb[0].mxu0
        %v1932 = vadd.f32 %v1637, %v1931
        %v1933 = vpop.f32.mrb[0].mxu0
        %1934 = vmatprep.mubr.bf16.mxu0 0
        %1935 = vmatmul.mubr.bf16.gmra.mrb[0].mxu0 %v1733
        %v1936 = vpop.f32.mrb[0].mxu0
        %v1937 = vadd.f32 %v1642, %v1936
        %v1938 = vpop.f32.mrb[0].mxu0
        %v1939 = vpop.f32.mrb[0].mxu0
        %v1940 = vadd.f32 %v1647, %v1939
        %v1941 = vpop.f32.mrb[0].mxu0
        %1942 = vmatprep.mubr.bf16.mxu0 0
        %1943 = vmatmul.mubr.bf16.gmra.mrb[0].mxu0 %v1736
        %v1944 = vpop.f32.mrb[0].mxu0
        %v1945 = vadd.f32 %v1652, %v1944
        %v1946 = vpop.f32.mrb[0].mxu0
        %v1947 = vpop.f32.mrb[0].mxu0
        %v1948 = vadd.f32 %v1657, %v1947
        %v1949 = vpop.f32.mrb[0].mxu0
        %1950 = vmatprep.mubr.bf16.mxu0 0
        %1951 = vmatmul.mubr.bf16.gmra.mrb[0].mxu0 %v1739
        %v1952 = vpop.f32.mrb[0].mxu0
        %v1953 = vadd.f32 %v1662, %v1952
        %v1954 = vpop.f32.mrb[0].mxu0
        %v1955 = vpop.f32.mrb[0].mxu0
        %v1956 = vadd.f32 %v1667, %v1955
        %v1957 = vpop.f32.mrb[0].mxu0
        %1958 = vmatprep.mubr.bf16.mxu0 0
        %1959 = vmatmul.mubr.bf16.gmra.mrb[0].mxu0 %v1742
        %v1960 = vpop.f32.mrb[0].mxu0
        %v1961 = vadd.f32 %v1672, %v1960
        %v1962 = vpop.f32.mrb[0].mxu0
        %v1963 = vpop.f32.mrb[0].mxu0
        %v1964 = vadd.f32 %v1677, %v1963
        %v1965 = vpop.f32.mrb[0].mxu0
        %1966 = vdwg.mxu0
        %v1967 = vmax.f32 %v1792, 0.0
        %v1968 = vmax.f32 %v1794, 0.0
        %v1969 = vmax.f32 %v1905, 0.0
        %v1970 = vmax.f32 %v1796, 0.0
        %v1971 = vmax.f32 %v1798, 0.0
        %v1972 = vmax.f32 %v1908, 0.0
        %v1973 = vmax.f32 %v1802, 0.0
        %v1974 = vmax.f32 %v1804, 0.0
        %v1975 = vmax.f32 %v1913, 0.0
        %v1976 = vmax.f32 %v1806, 0.0
        %v1977 = vmax.f32 %v1808, 0.0
        %v1978 = vmax.f32 %v1916, 0.0
        %v1979 = vmax.f32 %v1812, 0.0
        %v1980 = vmax.f32 %v1814, 0.0
        %v1981 = vmax.f32 %v1921, 0.0
        %v1982 = vmax.f32 %v1816, 0.0
        %v1983 = vmax.f32 %v1818, 0.0
        %v1984 = vmax.f32 %v1924, 0.0
        %v1985 = vmax.f32 %v1822, 0.0
        %v1986 = vmax.f32 %v1824, 0.0
        %v1987 = vmax.f32 %v1929, 0.0
        %v1988 = vmax.f32 %v1826, 0.0
        %v1989 = vmax.f32 %v1828, 0.0
        %v1990 = vmax.f32 %v1932, 0.0
        %v1991 = vmax.f32 %v1832, 0.0
        %v1992 = vmax.f32 %v1834, 0.0
        %v1993 = vmax.f32 %v1937, 0.0
        %v1994 = vmax.f32 %v1836, 0.0
        %v1995 = vmax.f32 %v1838, 0.0
        %v1996 = vmax.f32 %v1940, 0.0
        %v1997 = vmax.f32 %v1842, 0.0
        %v1998 = vmax.f32 %v1844, 0.0
        %v1999 = vmax.f32 %v1945, 0.0
        %v2000 = vmax.f32 %v1846, 0.0
        %v2001 = vmax.f32 %v1848, 0.0
        %v2002 = vmax.f32 %v1948, 0.0
        %v2003 = vmax.f32 %v1852, 0.0
        %v2004 = vmax.f32 %v1854, 0.0
        %v2005 = vmax.f32 %v1953, 0.0
        %v2006 = vmax.f32 %v1856, 0.0
        %v2007 = vmax.f32 %v1858, 0.0
        %v2008 = vmax.f32 %v1956, 0.0
        %v2009 = vmax.f32 %v1862, 0.0
        %v2010 = vmax.f32 %v1864, 0.0
        %v2011 = vmax.f32 %v1961, 0.0
        %v2012 = vmax.f32 %v1866, 0.0
        %v2013 = vmax.f32 %v1868, 0.0
        %v2014 = vmax.f32 %v1964, 0.0
        %v2015 = vpack.c.bf16 %v1970, %v1967
        %v2016 = vpack.c.bf16 %v1971, %v1968
        %v2017 = vpack.c.bf16 %v1972, %v1969
        %v2018 = vpack.c.bf16 %v1976, %v1973
        %v2019 = vpack.c.bf16 %v1977, %v1974
        %v2020 = vpack.c.bf16 %v1978, %v1975
        %v2021 = vpack.c.bf16 %v1982, %v1979
        %v2022 = vpack.c.bf16 %v1983, %v1980
        %v2023 = vpack.c.bf16 %v1984, %v1981
        %v2024 = vpack.c.bf16 %v1988, %v1985
        %v2025 = vpack.c.bf16 %v1989, %v1986
        %v2026 = vpack.c.bf16 %v1990, %v1987
        %v2027 = vpack.c.bf16 %v1994, %v1991
        %v2028 = vpack.c.bf16 %v1995, %v1992
        %v2029 = vpack.c.bf16 %v1996, %v1993
        %v2030 = vpack.c.bf16 %v2000, %v1997
        %v2031 = vpack.c.bf16 %v2001, %v1998
        %v2032 = vpack.c.bf16 %v2002, %v1999
        %v2033 = vpack.c.bf16 %v2006, %v2003
        %v2034 = vpack.c.bf16 %v2007, %v2004
        %v2035 = vpack.c.bf16 %v2008, %v2005
        %v2036 = vpack.c.bf16 %v2012, %v2009
        %v2037 = vpack.c.bf16 %v2013, %v2010
        %v2038 = vpack.c.bf16 %v2014, %v2011
        %v2039 = vld [vmem:[%s4] sm:$0x3]
        %v2040 = vld [vmem:[%s5] sm:$0x7]
        %2042 = vset.pattern.permute.xlu0 0
        %2043 = vperm.xlu0 %2042, %v2040
        %v2044 = vpop.permute.xlu0 %2043
        %2046 = vmatprep.subr.bf16.mxu0 %v2016
        %2047 = vmatpush1.bf16.msra.mxu0 %v2015
        %2048 = vmatprep.subr.bf16.mxu0 %v2019
        %2049 = vmatpush1.bf16.msra.mxu0 %v2018
        %2050 = vmatprep.subr.bf16.mxu0 %v2022
        %2051 = vmatpush1.bf16.msra.mxu0 %v2021
        %2052 = vmatprep.subr.bf16.mxu0 %v2025
        %2053 = vmatpush1.bf16.msra.mxu0 %v2024
        %2054 = vmatprep.subr.bf16.mxu0 %v2028
        %2055 = vmatpush1.bf16.msra.mxu0 %v2027
        %2056 = vmatprep.subr.bf16.mxu0 %v2031
        %2057 = vmatpush1.bf16.msra.mxu0 %v2030
        %2058 = vmatprep.subr.bf16.mxu0 %v2034
        %2059 = vmatpush1.bf16.msra.mxu0 %v2033
        %2060 = vmatprep.subr.bf16.mxu0 %v2037
        %2061 = vmatpush1.bf16.msra.mxu0 %v2036
        %2062 = vmatprep.subr.bf16.mxu0 0
        %2063 = vmatpush1.bf16.msra.mxu0 0
        %2064 = vmatprep.subr.bf16.mxu0 0
        %2065 = vmatpush1.bf16.msra.mxu0 0
        %2066 = vmatprep.subr.bf16.mxu0 0
        %2067 = vmatpush1.bf16.msra.mxu0 0
        %2068 = vmatprep.subr.bf16.mxu0 0
        %2069 = vmatpush1.bf16.msra.mxu0 0
        %2070 = vmatprep.subr.bf16.mxu0 0
        %2071 = vmatpush1.bf16.msra.mxu0 0
        %2072 = vmatprep.subr.bf16.mxu0 0
        %2073 = vmatpush1.bf16.msra.mxu0 0
        %2074 = vmatprep.subr.bf16.mxu0 0
        %2075 = vmatpush1.bf16.msra.mxu0 0
        %2076 = vmatprep.subr.bf16.mxu0 0
        %2077 = vmatpush1.bf16.msra.mxu0 0
        %2078 = vmatprep.mubr.bf16.mxu0 0
        %2079 = vmatmul.mubr.bf16.gmra.mrb[0].mxu0 %v2039
        %v2080 = vpop.f32.mrb[0].mxu0
        %v2081 = vadd.f32 %v2044, %v2080
        %v2082 = vpop.f32.mrb[0].mxu0
        %v2083 = vadd.f32 %v2044, %v2082
        %v2084 = vpop.f32.mrb[0].mxu0
        %v2085 = vpop.f32.mrb[0].mxu0
        %2086 = vdwg.mxu0
        %2087 = vmatprep.subr.bf16.mxu0 0
        %2088 = vmatpush1.bf16.msra.mxu0 %v2017
        %2089 = vmatprep.subr.bf16.mxu0 0
        %2090 = vmatpush1.bf16.msra.mxu0 %v2020
        %2091 = vmatprep.subr.bf16.mxu0 0
        %2092 = vmatpush1.bf16.msra.mxu0 %v2023
        %2093 = vmatprep.subr.bf16.mxu0 0
        %2094 = vmatpush1.bf16.msra.mxu0 %v2026
        %2095 = vmatprep.subr.bf16.mxu0 0
        %2096 = vmatpush1.bf16.msra.mxu0 %v2029
        %2097 = vmatprep.subr.bf16.mxu0 0
        %2098 = vmatpush1.bf16.msra.mxu0 %v2032
        %2099 = vmatprep.subr.bf16.mxu0 0
        %2100 = vmatpush1.bf16.msra.mxu0 %v2035
        %2101 = vmatprep.subr.bf16.mxu0 0
        %2102 = vmatpush1.bf16.msra.mxu0 %v2038
        %2103 = vmatprep.subr.bf16.mxu0 0
        %2104 = vmatpush1.bf16.msra.mxu0 0
        %2105 = vmatprep.subr.bf16.mxu0 0
        %2106 = vmatpush1.bf16.msra.mxu0 0
        %2107 = vmatprep.subr.bf16.mxu0 0
        %2108 = vmatpush1.bf16.msra.mxu0 0
        %2109 = vmatprep.subr.bf16.mxu0 0
        %2110 = vmatpush1.bf16.msra.mxu0 0
        %2111 = vmatprep.subr.bf16.mxu0 0
        %2112 = vmatpush1.bf16.msra.mxu0 0
        %2113 = vmatprep.subr.bf16.mxu0 0
        %2114 = vmatpush1.bf16.msra.mxu0 0
        %2115 = vmatprep.subr.bf16.mxu0 0
        %2116 = vmatpush1.bf16.msra.mxu0 0
        %2117 = vmatprep.subr.bf16.mxu0 0
        %2118 = vmatpush1.bf16.msra.mxu0 0
        %2119 = vmatprep.mubr.bf16.mxu0 0
        %2120 = vmatmul.mubr.bf16.gmra.mrb[0].mxu0 %v2039
        %v2121 = vpop.f32.mrb[0].mxu0
        %v2122 = vadd.f32 %v2044, %v2121
        %v2123 = vpop.f32.mrb[0].mxu0
        %v2124 = vpop.f32.mrb[0].mxu0
        %v2125 = vpop.f32.mrb[0].mxu0
        %2126 = vdwg.mxu0
        %2127 = vst [vmem:[%s486] sm:$0x7] %v2081
        %2128 = vst [vmem:[%s486 + $0x8] sm:$0x7] %v2083
        %2129 = vst [vmem:[%s486 + $0x10] sm:$0x7] %v2122
        %v2130 = vsel %vm981, %v2081, -inf
        %v2131 = vrot.slane %v2130, 4
        %v2132 = vmax.f32 %v2130, %v2131
        %v2133 = vrot.slane %v2132, 2
        %v2134 = vmax.f32 %v2132, %v2133
        %v2135 = vrot.slane %v2134, 1
        %v2136 = vmax.f32 %v2134, %v2135
        %v2137 = vsel %vm981, %v2083, -inf
        %v2138 = vrot.slane %v2137, 4
        %v2139 = vmax.f32 %v2137, %v2138
        %v2140 = vrot.slane %v2139, 2
        %v2141 = vmax.f32 %v2139, %v2140
        %v2142 = vrot.slane %v2141, 1
        %v2143 = vmax.f32 %v2141, %v2142
        %v2144 = vsel %vm981, %v2122, -inf
        %v2145 = vrot.slane %v2144, 4
        %v2146 = vmax.f32 %v2144, %v2145
        %v2147 = vrot.slane %v2146, 2
        %v2148 = vmax.f32 %v2146, %v2147
        %v2149 = vrot.slane %v2148, 1
        %v2150 = vmax.f32 %v2148, %v2149
        %v2151 = vsub.f32 %v2081, %v2136
        %v2152 = vsub.f32 %v2083, %v2143
        %v2153 = vsub.f32 %v2122, %v2150
        %v2154 = vmul.f32 %v2151, 1.442695
        %v2155 = vpow.pop %v2154
        %v2156 = vmul.f32 %v2152, 1.442695
        %v2157 = vpow.pop %v2156
        %v2158 = vmul.f32 %v2153, 1.442695
        %v2159 = vpow.pop %v2158
        %v2160 = vsel %vm981, %v2155, 0.0
        %v2161 = vrot.slane %v2160, 4
        %v2162 = vadd.f32 %v2160, %v2161
        %v2163 = vrot.slane %v2162, 2
        %v2164 = vadd.f32 %v2162, %v2163
        %v2165 = vrot.slane %v2164, 1
        %v2166 = vadd.f32 %v2164, %v2165
        %v2167 = vsel %vm981, %v2157, 0.0
        %v2168 = vrot.slane %v2167, 4
        %v2169 = vadd.f32 %v2167, %v2168
        %v2170 = vrot.slane %v2169, 2
        %v2171 = vadd.f32 %v2169, %v2170
        %v2172 = vrot.slane %v2171, 1
        %v2173 = vadd.f32 %v2171, %v2172
        %v2174 = vsel %vm981, %v2159, 0.0
        %v2175 = vrot.slane %v2174, 4
        %v2176 = vadd.f32 %v2174, %v2175
        %v2177 = vrot.slane %v2176, 2
        %v2178 = vadd.f32 %v2176, %v2177
        %v2179 = vrot.slane %v2178, 1
        %v2180 = vadd.f32 %v2178, %v2179
        %v2181 = vrcp.pop %v2166
        %v2182 = vrcp.pop %v2173
        %v2183 = vrcp.pop %v2180
        %v2184 = vmul.f32 %v2155, %v2181
        %v2185 = vmul.f32 %v2157, %v2182
        %v2186 = vmul.f32 %v2159, %v2183
        %2188 = vrot.lane.b32.xlu0 %v2186, 19
        %v2189 = vpop.permute.xlu0 %2188
        %2193 = vrot.lane.b32.xlu0 %v2184, 19
        %v2194 = vpop.permute.xlu0 %2193
        %2195 = vrot.lane.b32.xlu0 %v2185, 19
        %v2196 = vpop.permute.xlu0 %2195
        %vm2197 = vcmask 154624
        %v2198 = vsel %vm2197, %v2194, %v2196
        %v2199 = vsel %vm2197, %v2196, %v2189
        %v2203 = vsel %vm2197, %v2189, %v2194
        %v2204 = vld [vmem:[%s1] sm:$0x7]
        %vm2205 = vcmp.eq.f32.partialorder %v2204, 1.0
        %v2206 = vsel %vm2205, 1, 0
        %v2207 = vlaneseq
        %v2208 = vshrl.u32 %v2207, 7
        %v2209 = vsub.s32 0, %v2208
        %v2210 = vrot.slane %v2206, %v2209
        %v2211 = vlaneseq
        %v2212 = vshrl.u32 %v2211, 7
        %v2213 = vsub.s32 1, %v2212
        %v2214 = vrot.slane %v2206, %v2213
        %v2215 = vlaneseq
        %v2216 = vshrl.u32 %v2215, 7
        %v2217 = vsub.s32 2, %v2216
        %v2218 = vrot.slane %v2206, %v2217
        %vm2219 = vcmp.eq.s32.totalorder %v2210, 1
        %vm2220 = vcmp.eq.s32.totalorder %v2214, 1
        %vm2221 = vcmp.eq.s32.totalorder %v2218, 1
        %v2222 = vsel %vm2219, %v2203, 0.0
        %v2223 = vsel %vm2220, %v2198, 0.0
        %v2224 = vsel %vm2221, %v2199, 0.0
        %v2228 = vrot.slane %v2222, 5
        %v2229 = vrot.slane %v2223, 5
        %v2230 = vrot.slane %v2224, 5
        %2234 = vst [vmem:[#allocation2] sm:$0x38] %v2228
        %2235 = vst [vmem:[#allocation2 + $0x8] sm:$0x38] %v2229
        %2236 = vst [vmem:[#allocation2 + $0x10] sm:$0x38] %v2230
        %s2237 = scalar_lea.vmem [#allocation2], 3
        %v2238 = vld [vmem:[%s2237] ss:$8 sm:$0x7]
        %v2240 = vlaneseq
        %v2241 = vshrl.u32 %v2240, 7
        %v2242 = vsub.s32 0, %v2241
        %v2243 = vrot.slane %v2238, %v2242
        %v2244 = vlaneseq
        %v2245 = vshrl.u32 %v2244, 7
        %v2246 = vsub.s32 1, %v2245
        %v2247 = vrot.slane %v2238, %v2246
        %v2248 = vlaneseq
        %v2249 = vshrl.u32 %v2248, 7
        %v2250 = vsub.s32 2, %v2249
        %v2251 = vrot.slane %v2238, %v2250
        %v2255 = vpack.c.bf16 %v2243, %v2243
        %v2256 = vpack.c.bf16 %v2247, %v2247
        %v2257 = vpack.c.bf16 %v2251, %v2251
        %2261 = vrot.lane.b32.xlu0 %v2255, 127
        %v2262 = vpop.permute.xlu0 %2261
        %2263 = vrot.lane.b32.xlu0 %v2256, 127
        %v2264 = vpop.permute.xlu0 %2263
        %2265 = vrot.lane.b32.xlu0 %v2257, 127
        %v2266 = vpop.permute.xlu0 %2265
        %v2267 = vsel %vm770, %v2262, %v2264
        %v2268 = vsel %vm770, %v2264, %v2266
        %v2271 = vsel %vm773, %v2266, %v2262
        %2272 = vrot.lane.b32.xlu0 %v2255, 126
        %v2273 = vpop.permute.xlu0 %2272
        %2274 = vrot.lane.b32.xlu0 %v2256, 126
        %v2275 = vpop.permute.xlu0 %2274
        %2276 = vrot.lane.b32.xlu0 %v2257, 126
        %v2277 = vpop.permute.xlu0 %2276
        %v2278 = vsel %vm783, %v2273, %v2275
        %v2279 = vsel %vm783, %v2275, %v2277
        %v2282 = vsel %vm786, %v2277, %v2273
        %2283 = vrot.lane.b32.xlu0 %v2255, 110
        %v2284 = vpop.permute.xlu0 %2283
        %2285 = vrot.lane.b32.xlu0 %v2256, 110
        %v2286 = vpop.permute.xlu0 %2285
        %2287 = vrot.lane.b32.xlu0 %v2257, 110
        %v2288 = vpop.permute.xlu0 %2287
        %v2289 = vsel %vm796, %v2284, %v2286
        %v2290 = vsel %vm796, %v2286, %v2288
        %v2293 = vsel %vm799, %v2288, %v2284
        %2294 = vrot.lane.b32.xlu0 %v2255, 109
        %v2295 = vpop.permute.xlu0 %2294
        %2296 = vrot.lane.b32.xlu0 %v2256, 109
        %v2297 = vpop.permute.xlu0 %2296
        %2298 = vrot.lane.b32.xlu0 %v2257, 109
        %v2299 = vpop.permute.xlu0 %2298
        %v2300 = vsel %vm809, %v2295, %v2297
        %v2301 = vsel %vm809, %v2297, %v2299
        %v2304 = vsel %vm812, %v2299, %v2295
        %2305 = vrot.lane.b32.xlu0 %v2255, 108
        %v2306 = vpop.permute.xlu0 %2305
        %2307 = vrot.lane.b32.xlu0 %v2256, 108
        %v2308 = vpop.permute.xlu0 %2307
        %2309 = vrot.lane.b32.xlu0 %v2257, 108
        %v2310 = vpop.permute.xlu0 %2309
        %v2311 = vsel %vm822, %v2306, %v2308
        %v2312 = vsel %vm822, %v2308, %v2310
        %v2315 = vsel %vm825, %v2310, %v2306
        %2316 = vrot.lane.b32.xlu0 %v2255, 92
        %v2317 = vpop.permute.xlu0 %2316
        %2318 = vrot.lane.b32.xlu0 %v2256, 92
        %v2319 = vpop.permute.xlu0 %2318
        %2320 = vrot.lane.b32.xlu0 %v2257, 92
        %v2321 = vpop.permute.xlu0 %2320
        %v2322 = vsel %vm835, %v2317, %v2319
        %v2323 = vsel %vm835, %v2319, %v2321
        %v2326 = vsel %vm838, %v2321, %v2317
        %2327 = vrot.lane.b32.xlu0 %v2255, 91
        %v2328 = vpop.permute.xlu0 %2327
        %2329 = vrot.lane.b32.xlu0 %v2256, 91
        %v2330 = vpop.permute.xlu0 %2329
        %2331 = vrot.lane.b32.xlu0 %v2257, 91
        %v2332 = vpop.permute.xlu0 %2331
        %v2333 = vsel %vm848, %v2328, %v2330
        %v2334 = vsel %vm848, %v2330, %v2332
        %v2337 = vsel %vm851, %v2332, %v2328
        %2338 = vrot.lane.b32.xlu0 %v2255, 90
        %v2339 = vpop.permute.xlu0 %2338
        %2340 = vrot.lane.b32.xlu0 %v2256, 90
        %v2341 = vpop.permute.xlu0 %2340
        %2342 = vrot.lane.b32.xlu0 %v2257, 90
        %v2343 = vpop.permute.xlu0 %2342
        %v2344 = vsel %vm861, %v2339, %v2341
        %v2345 = vsel %vm861, %v2341, %v2343
        %v2348 = vsel %vm864, %v2343, %v2339
        %v2350 = vshll.u32 %v2267, 16
        %v2353 = vshll.u32 %v2268, 16
        %v2355 = vshll.u32 %v2271, 16
        %v2361 = vrot.slane %v2278, 7
        %v2362 = vrot.slane %v2279, 7
        %v2363 = vrot.slane %v2282, 7
        %v2365 = vshll.u32 %v2289, 16
        %v2367 = vrot.slane %v2365, 7
        %v2369 = vshll.u32 %v2290, 16
        %v2371 = vrot.slane %v2369, 7
        %v2372 = vshll.u32 %v2293, 16
        %v2374 = vrot.slane %v2372, 7
        %v2379 = vrot.slane %v2300, 6
        %v2380 = vrot.slane %v2301, 6
        %v2381 = vrot.slane %v2304, 6
        %v2383 = vshll.u32 %v2311, 16
        %v2385 = vrot.slane %v2383, 6
        %v2387 = vshll.u32 %v2312, 16
        %v2389 = vrot.slane %v2387, 6
        %v2390 = vshll.u32 %v2315, 16
        %v2392 = vrot.slane %v2390, 6
        %v2397 = vrot.slane %v2322, 5
        %v2398 = vrot.slane %v2323, 5
        %v2399 = vrot.slane %v2326, 5
        %v2401 = vshll.u32 %v2333, 16
        %v2403 = vrot.slane %v2401, 5
        %v2405 = vshll.u32 %v2334, 16
        %v2407 = vrot.slane %v2405, 5
        %v2408 = vshll.u32 %v2337, 16
        %v2410 = vrot.slane %v2408, 5
        %v2415 = vrot.slane %v2344, 4
        %v2416 = vrot.slane %v2345, 4
        %v2417 = vrot.slane %v2348, 4
        %v2418 = vsel %vm939, %v2255, %v2350
        %v2419 = vsel %vm939, %v2256, %v2353
        %v2420 = vsel %vm939, %v2257, %v2355
        %v2423 = vsel %vm943, %v2418, %v2361
        %v2427 = vsel %vm943, %v2419, %v2362
        %v2431 = vsel %vm943, %v2420, %v2363
        %v2433 = vsel %vm958, %v2423, %v2367
        %v2434 = vsel %vm958, %v2427, %v2371
        %v2435 = vsel %vm958, %v2431, %v2374
        %v2438 = vsel %vm962, %v2433, %v2379
        %v2442 = vsel %vm962, %v2434, %v2380
        %v2446 = vsel %vm962, %v2435, %v2381
        %v2448 = vsel %vm977, %v2438, %v2385
        %v2449 = vsel %vm977, %v2442, %v2389
        %v2450 = vsel %vm977, %v2446, %v2392
        %v2453 = vsel %vm981, %v2448, %v2397
        %v2457 = vsel %vm981, %v2449, %v2398
        %v2461 = vsel %vm981, %v2450, %v2399
        %v2463 = vsel %vm996, %v2453, %v2403
        %v2464 = vsel %vm996, %v2457, %v2407
        %v2465 = vsel %vm996, %v2461, %v2410
        %v2468 = vsel %vm1000, %v2463, %v2415
        %v2471 = vsel %vm1000, %v2464, %v2416
        %v2474 = vsel %vm1000, %v2465, %v2417
        %v2475 = vshrl.u32 %v2468, 16
        %v2477 = vrot.slane %v2475, 2
        %v2478 = vshll.u32 %v2468, 16
        %v2480 = vrot.slane %v2478, 3
        %v2481 = vor.u32 %v2477, %v2480
        %v2482 = vshrl.u32 %v2471, 16
        %v2484 = vrot.slane %v2482, 2
        %v2485 = vshll.u32 %v2471, 16
        %v2487 = vrot.slane %v2485, 3
        %v2488 = vor.u32 %v2484, %v2487
        %v2489 = vshrl.u32 %v2474, 16
        %v2491 = vrot.slane %v2489, 2
        %v2492 = vshll.u32 %v2474, 16
        %v2494 = vrot.slane %v2492, 3
        %v2495 = vor.u32 %v2491, %v2494
        %vm2499 = vcmask 1047557
        %vm2500 = vsmask.f32 7958
        %vm2501 = vmand %vm2499, %vm2500
        %v2502 = vld [vmem:[#allocation3 + $0x18] sm:$0xe0]
        %v2503 = vsel %vm2501, %v2481, %v2502
        %2504 = vst [vmem:[#allocation3 + $0x18] sm:$0xe0] %v2503
        %v2505 = vld [vmem:[#allocation3 + $0x20] sm:$0xe0]
        %v2506 = vsel %vm2501, %v2488, %v2505
        %2507 = vst [vmem:[#allocation3 + $0x20] sm:$0xe0] %v2506
        %v2508 = vld [vmem:[#allocation3 + $0x28] sm:$0xe0]
        %v2509 = vsel %vm2501, %v2495, %v2508
        %2510 = vst [vmem:[#allocation3 + $0x28] sm:$0xe0] %v2509
        %2511 = vst [vmem:[#allocation3 + $0x30] sm:$0x3] %v2481
        %2512 = vst [vmem:[#allocation3 + $0x38] sm:$0x3] %v2488
        %2513 = vst [vmem:[#allocation3 + $0x40] sm:$0x3] %v2495
        %s2514 = scalar_lea.vmem [#allocation2], 4
        %v2515 = vld [vmem:[%s2514] ss:$8 sm:$0x7]
        %v2517 = vlaneseq
        %v2518 = vshrl.u32 %v2517, 7
        %v2519 = vsub.s32 0, %v2518
        %v2520 = vrot.slane %v2515, %v2519
        %v2521 = vlaneseq
        %v2522 = vshrl.u32 %v2521, 7
        %v2523 = vsub.s32 1, %v2522
        %v2524 = vrot.slane %v2515, %v2523
        %v2525 = vlaneseq
        %v2526 = vshrl.u32 %v2525, 7
        %v2527 = vsub.s32 2, %v2526
        %v2528 = vrot.slane %v2515, %v2527
        %v2532 = vpack.c.bf16 %v2520, %v2520
        %v2533 = vpack.c.bf16 %v2524, %v2524
        %v2534 = vpack.c.bf16 %v2528, %v2528
        %2538 = vrot.lane.b32.xlu0 %v2532, 127
        %v2539 = vpop.permute.xlu0 %2538
        %2540 = vrot.lane.b32.xlu0 %v2533, 127
        %v2541 = vpop.permute.xlu0 %2540
        %2542 = vrot.lane.b32.xlu0 %v2534, 127
        %v2543 = vpop.permute.xlu0 %2542
        %v2544 = vsel %vm770, %v2539, %v2541
        %v2545 = vsel %vm770, %v2541, %v2543
        %v2548 = vsel %vm773, %v2543, %v2539
        %2549 = vrot.lane.b32.xlu0 %v2532, 126
        %v2550 = vpop.permute.xlu0 %2549
        %2551 = vrot.lane.b32.xlu0 %v2533, 126
        %v2552 = vpop.permute.xlu0 %2551
        %2553 = vrot.lane.b32.xlu0 %v2534, 126
        %v2554 = vpop.permute.xlu0 %2553
        %v2555 = vsel %vm783, %v2550, %v2552
        %v2556 = vsel %vm783, %v2552, %v2554
        %v2559 = vsel %vm786, %v2554, %v2550
        %2560 = vrot.lane.b32.xlu0 %v2532, 110
        %v2561 = vpop.permute.xlu0 %2560
        %2562 = vrot.lane.b32.xlu0 %v2533, 110
        %v2563 = vpop.permute.xlu0 %2562
        %2564 = vrot.lane.b32.xlu0 %v2534, 110
        %v2565 = vpop.permute.xlu0 %2564
        %v2566 = vsel %vm796, %v2561, %v2563
        %v2567 = vsel %vm796, %v2563, %v2565
        %v2570 = vsel %vm799, %v2565, %v2561
        %2571 = vrot.lane.b32.xlu0 %v2532, 109
        %v2572 = vpop.permute.xlu0 %2571
        %2573 = vrot.lane.b32.xlu0 %v2533, 109
        %v2574 = vpop.permute.xlu0 %2573
        %2575 = vrot.lane.b32.xlu0 %v2534, 109
        %v2576 = vpop.permute.xlu0 %2575
        %v2577 = vsel %vm809, %v2572, %v2574
        %v2578 = vsel %vm809, %v2574, %v2576
        %v2581 = vsel %vm812, %v2576, %v2572
        %2582 = vrot.lane.b32.xlu0 %v2532, 108
        %v2583 = vpop.permute.xlu0 %2582
        %2584 = vrot.lane.b32.xlu0 %v2533, 108
        %v2585 = vpop.permute.xlu0 %2584
        %2586 = vrot.lane.b32.xlu0 %v2534, 108
        %v2587 = vpop.permute.xlu0 %2586
        %v2588 = vsel %vm822, %v2583, %v2585
        %v2589 = vsel %vm822, %v2585, %v2587
        %v2592 = vsel %vm825, %v2587, %v2583
        %2593 = vrot.lane.b32.xlu0 %v2532, 92
        %v2594 = vpop.permute.xlu0 %2593
        %2595 = vrot.lane.b32.xlu0 %v2533, 92
        %v2596 = vpop.permute.xlu0 %2595
        %2597 = vrot.lane.b32.xlu0 %v2534, 92
        %v2598 = vpop.permute.xlu0 %2597
        %v2599 = vsel %vm835, %v2594, %v2596
        %v2600 = vsel %vm835, %v2596, %v2598
        %v2603 = vsel %vm838, %v2598, %v2594
        %2604 = vrot.lane.b32.xlu0 %v2532, 91
        %v2605 = vpop.permute.xlu0 %2604
        %2606 = vrot.lane.b32.xlu0 %v2533, 91
        %v2607 = vpop.permute.xlu0 %2606
        %2608 = vrot.lane.b32.xlu0 %v2534, 91
        %v2609 = vpop.permute.xlu0 %2608
        %v2610 = vsel %vm848, %v2605, %v2607
        %v2611 = vsel %vm848, %v2607, %v2609
        %v2614 = vsel %vm851, %v2609, %v2605
        %2615 = vrot.lane.b32.xlu0 %v2532, 90
        %v2616 = vpop.permute.xlu0 %2615
        %2617 = vrot.lane.b32.xlu0 %v2533, 90
        %v2618 = vpop.permute.xlu0 %2617
        %2619 = vrot.lane.b32.xlu0 %v2534, 90
        %v2620 = vpop.permute.xlu0 %2619
        %v2621 = vsel %vm861, %v2616, %v2618
        %v2622 = vsel %vm861, %v2618, %v2620
        %v2625 = vsel %vm864, %v2620, %v2616
        %v2627 = vshll.u32 %v2544, 16
        %v2630 = vshll.u32 %v2545, 16
        %v2632 = vshll.u32 %v2548, 16
        %v2638 = vrot.slane %v2555, 7
        %v2639 = vrot.slane %v2556, 7
        %v2640 = vrot.slane %v2559, 7
        %v2642 = vshll.u32 %v2566, 16
        %v2644 = vrot.slane %v2642, 7
        %v2646 = vshll.u32 %v2567, 16
        %v2648 = vrot.slane %v2646, 7
        %v2649 = vshll.u32 %v2570, 16
        %v2651 = vrot.slane %v2649, 7
        %v2656 = vrot.slane %v2577, 6
        %v2657 = vrot.slane %v2578, 6
        %v2658 = vrot.slane %v2581, 6
        %v2660 = vshll.u32 %v2588, 16
        %v2662 = vrot.slane %v2660, 6
        %v2664 = vshll.u32 %v2589, 16
        %v2666 = vrot.slane %v2664, 6
        %v2667 = vshll.u32 %v2592, 16
        %v2669 = vrot.slane %v2667, 6
        %v2674 = vrot.slane %v2599, 5
        %v2675 = vrot.slane %v2600, 5
        %v2676 = vrot.slane %v2603, 5
        %v2678 = vshll.u32 %v2610, 16
        %v2680 = vrot.slane %v2678, 5
        %v2682 = vshll.u32 %v2611, 16
        %v2684 = vrot.slane %v2682, 5
        %v2685 = vshll.u32 %v2614, 16
        %v2687 = vrot.slane %v2685, 5
        %v2692 = vrot.slane %v2621, 4
        %v2693 = vrot.slane %v2622, 4
        %v2694 = vrot.slane %v2625, 4
        %v2695 = vsel %vm939, %v2532, %v2627
        %v2696 = vsel %vm939, %v2533, %v2630
        %v2697 = vsel %vm939, %v2534, %v2632
        %v2700 = vsel %vm943, %v2695, %v2638
        %v2704 = vsel %vm943, %v2696, %v2639
        %v2708 = vsel %vm943, %v2697, %v2640
        %v2710 = vsel %vm958, %v2700, %v2644
        %v2711 = vsel %vm958, %v2704, %v2648
        %v2712 = vsel %vm958, %v2708, %v2651
        %v2715 = vsel %vm962, %v2710, %v2656
        %v2719 = vsel %vm962, %v2711, %v2657
        %v2723 = vsel %vm962, %v2712, %v2658
        %v2725 = vsel %vm977, %v2715, %v2662
        %v2726 = vsel %vm977, %v2719, %v2666
        %v2727 = vsel %vm977, %v2723, %v2669
        %v2730 = vsel %vm981, %v2725, %v2674
        %v2734 = vsel %vm981, %v2726, %v2675
        %v2738 = vsel %vm981, %v2727, %v2676
        %v2740 = vsel %vm996, %v2730, %v2680
        %v2741 = vsel %vm996, %v2734, %v2684
        %v2742 = vsel %vm996, %v2738, %v2687
        %v2745 = vsel %vm1000, %v2740, %v2692
        %v2748 = vsel %vm1000, %v2741, %v2693
        %v2751 = vsel %vm1000, %v2742, %v2694
        %v2755 = vrot.slane %v2745, 6
        %v2756 = vrot.slane %v2748, 6
        %v2757 = vrot.slane %v2751, 6
        %vm2761 = vcmask 1046530
        %vm2762 = vsmask.f32 6400
        %vm2763 = vmand %vm2761, %vm2762
        %v2764 = vld [vmem:[#allocation3 + $0x30] sm:$0x7c]
        %v2765 = vsel %vm2763, %v2755, %v2764
        %2766 = vst [vmem:[#allocation3 + $0x30] sm:$0x7c] %v2765
        %v2767 = vld [vmem:[#allocation3 + $0x38] sm:$0x7c]
        %v2768 = vsel %vm2763, %v2756, %v2767
        %2769 = vst [vmem:[#allocation3 + $0x38] sm:$0x7c] %v2768
        %v2770 = vld [vmem:[#allocation3 + $0x40] sm:$0x7c]
        %v2771 = vsel %vm2763, %v2757, %v2770
        %2772 = vst [vmem:[#allocation3 + $0x40] sm:$0x7c] %v2771
        %s2773 = scalar_lea.vmem [#allocation2], 5
        %v2774 = vld [vmem:[%s2773] ss:$8 sm:$0x7]
        %v2776 = vlaneseq
        %v2777 = vshrl.u32 %v2776, 7
        %v2778 = vsub.s32 0, %v2777
        %v2779 = vrot.slane %v2774, %v2778
        %v2780 = vlaneseq
        %v2781 = vshrl.u32 %v2780, 7
        %v2782 = vsub.s32 1, %v2781
        %v2783 = vrot.slane %v2774, %v2782
        %v2784 = vlaneseq
        %v2785 = vshrl.u32 %v2784, 7
        %v2786 = vsub.s32 2, %v2785
        %v2787 = vrot.slane %v2774, %v2786
        %v2791 = vpack.c.bf16 %v2779, %v2779
        %v2792 = vpack.c.bf16 %v2783, %v2783
        %v2793 = vpack.c.bf16 %v2787, %v2787
        %2797 = vrot.lane.b32.xlu0 %v2791, 127
        %v2798 = vpop.permute.xlu0 %2797
        %2799 = vrot.lane.b32.xlu0 %v2792, 127
        %v2800 = vpop.permute.xlu0 %2799
        %2801 = vrot.lane.b32.xlu0 %v2793, 127
        %v2802 = vpop.permute.xlu0 %2801
        %v2803 = vsel %vm770, %v2798, %v2800
        %v2804 = vsel %vm770, %v2800, %v2802
        %v2807 = vsel %vm773, %v2802, %v2798
        %2808 = vrot.lane.b32.xlu0 %v2791, 126
        %v2809 = vpop.permute.xlu0 %2808
        %2810 = vrot.lane.b32.xlu0 %v2792, 126
        %v2811 = vpop.permute.xlu0 %2810
        %2812 = vrot.lane.b32.xlu0 %v2793, 126
        %v2813 = vpop.permute.xlu0 %2812
        %v2814 = vsel %vm783, %v2809, %v2811
        %v2815 = vsel %vm783, %v2811, %v2813
        %v2818 = vsel %vm786, %v2813, %v2809
        %2819 = vrot.lane.b32.xlu0 %v2791, 110
        %v2820 = vpop.permute.xlu0 %2819
        %2821 = vrot.lane.b32.xlu0 %v2792, 110
        %v2822 = vpop.permute.xlu0 %2821
        %2823 = vrot.lane.b32.xlu0 %v2793, 110
        %v2824 = vpop.permute.xlu0 %2823
        %v2825 = vsel %vm796, %v2820, %v2822
        %v2826 = vsel %vm796, %v2822, %v2824
        %v2829 = vsel %vm799, %v2824, %v2820
        %2830 = vrot.lane.b32.xlu0 %v2791, 109
        %v2831 = vpop.permute.xlu0 %2830
        %2832 = vrot.lane.b32.xlu0 %v2792, 109
        %v2833 = vpop.permute.xlu0 %2832
        %2834 = vrot.lane.b32.xlu0 %v2793, 109
        %v2835 = vpop.permute.xlu0 %2834
        %v2836 = vsel %vm809, %v2831, %v2833
        %v2837 = vsel %vm809, %v2833, %v2835
        %v2840 = vsel %vm812, %v2835, %v2831
        %2841 = vrot.lane.b32.xlu0 %v2791, 108
        %v2842 = vpop.permute.xlu0 %2841
        %2843 = vrot.lane.b32.xlu0 %v2792, 108
        %v2844 = vpop.permute.xlu0 %2843
        %2845 = vrot.lane.b32.xlu0 %v2793, 108
        %v2846 = vpop.permute.xlu0 %2845
        %v2847 = vsel %vm822, %v2842, %v2844
        %v2848 = vsel %vm822, %v2844, %v2846
        %v2851 = vsel %vm825, %v2846, %v2842
        %2852 = vrot.lane.b32.xlu0 %v2791, 92
        %v2853 = vpop.permute.xlu0 %2852
        %2854 = vrot.lane.b32.xlu0 %v2792, 92
        %v2855 = vpop.permute.xlu0 %2854
        %2856 = vrot.lane.b32.xlu0 %v2793, 92
        %v2857 = vpop.permute.xlu0 %2856
        %v2858 = vsel %vm835, %v2853, %v2855
        %v2859 = vsel %vm835, %v2855, %v2857
        %v2862 = vsel %vm838, %v2857, %v2853
        %2863 = vrot.lane.b32.xlu0 %v2791, 91
        %v2864 = vpop.permute.xlu0 %2863
        %2865 = vrot.lane.b32.xlu0 %v2792, 91
        %v2866 = vpop.permute.xlu0 %2865
        %2867 = vrot.lane.b32.xlu0 %v2793, 91
        %v2868 = vpop.permute.xlu0 %2867
        %v2869 = vsel %vm848, %v2864, %v2866
        %v2870 = vsel %vm848, %v2866, %v2868
        %v2873 = vsel %vm851, %v2868, %v2864
        %2874 = vrot.lane.b32.xlu0 %v2791, 90
        %v2875 = vpop.permute.xlu0 %2874
        %2876 = vrot.lane.b32.xlu0 %v2792, 90
        %v2877 = vpop.permute.xlu0 %2876
        %2878 = vrot.lane.b32.xlu0 %v2793, 90
        %v2879 = vpop.permute.xlu0 %2878
        %v2880 = vsel %vm861, %v2875, %v2877
        %v2881 = vsel %vm861, %v2877, %v2879
        %v2884 = vsel %vm864, %v2879, %v2875
        %v2886 = vshll.u32 %v2803, 16
        %v2889 = vshll.u32 %v2804, 16
        %v2891 = vshll.u32 %v2807, 16
        %v2897 = vrot.slane %v2814, 7
        %v2898 = vrot.slane %v2815, 7
        %v2899 = vrot.slane %v2818, 7
        %v2901 = vshll.u32 %v2825, 16
        %v2903 = vrot.slane %v2901, 7
        %v2905 = vshll.u32 %v2826, 16
        %v2907 = vrot.slane %v2905, 7
        %v2908 = vshll.u32 %v2829, 16
        %v2910 = vrot.slane %v2908, 7
        %v2915 = vrot.slane %v2836, 6
        %v2916 = vrot.slane %v2837, 6
        %v2917 = vrot.slane %v2840, 6
        %v2919 = vshll.u32 %v2847, 16
        %v2921 = vrot.slane %v2919, 6
        %v2923 = vshll.u32 %v2848, 16
        %v2925 = vrot.slane %v2923, 6
        %v2926 = vshll.u32 %v2851, 16
        %v2928 = vrot.slane %v2926, 6
        %v2933 = vrot.slane %v2858, 5
        %v2934 = vrot.slane %v2859, 5
        %v2935 = vrot.slane %v2862, 5
        %v2937 = vshll.u32 %v2869, 16
        %v2939 = vrot.slane %v2937, 5
        %v2941 = vshll.u32 %v2870, 16
        %v2943 = vrot.slane %v2941, 5
        %v2944 = vshll.u32 %v2873, 16
        %v2946 = vrot.slane %v2944, 5
        %v2951 = vrot.slane %v2880, 4
        %v2952 = vrot.slane %v2881, 4
        %v2953 = vrot.slane %v2884, 4
        %v2954 = vsel %vm939, %v2791, %v2886
        %v2955 = vsel %vm939, %v2792, %v2889
        %v2956 = vsel %vm939, %v2793, %v2891
        %v2959 = vsel %vm943, %v2954, %v2897
        %v2963 = vsel %vm943, %v2955, %v2898
        %v2967 = vsel %vm943, %v2956, %v2899
        %v2969 = vsel %vm958, %v2959, %v2903
        %v2970 = vsel %vm958, %v2963, %v2907
        %v2971 = vsel %vm958, %v2967, %v2910
        %v2974 = vsel %vm962, %v2969, %v2915
        %v2978 = vsel %vm962, %v2970, %v2916
        %v2982 = vsel %vm962, %v2971, %v2917
        %v2984 = vsel %vm977, %v2974, %v2921
        %v2985 = vsel %vm977, %v2978, %v2925
        %v2986 = vsel %vm977, %v2982, %v2928
        %v2989 = vsel %vm981, %v2984, %v2933
        %v2993 = vsel %vm981, %v2985, %v2934
        %v2997 = vsel %vm981, %v2986, %v2935
        %v2999 = vsel %vm996, %v2989, %v2939
        %v3000 = vsel %vm996, %v2993, %v2943
        %v3001 = vsel %vm996, %v2997, %v2946
        %v3004 = vsel %vm1000, %v2999, %v2951
        %v3007 = vsel %vm1000, %v3000, %v2952
        %v3010 = vsel %vm1000, %v3001, %v2953
        %v3011 = vshrl.u32 %v3004, 16
        %v3013 = vrot.slane %v3011, 1
        %v3014 = vshll.u32 %v3004, 16
        %v3016 = vrot.slane %v3014, 2
        %v3017 = vor.u32 %v3013, %v3016
        %v3018 = vshrl.u32 %v3007, 16
        %v3020 = vrot.slane %v3018, 1
        %v3021 = vshll.u32 %v3007, 16
        %v3023 = vrot.slane %v3021, 2
        %v3024 = vor.u32 %v3020, %v3023
        %v3025 = vshrl.u32 %v3010, 16
        %v3027 = vrot.slane %v3025, 1
        %v3028 = vshll.u32 %v3010, 16
        %v3030 = vrot.slane %v3028, 2
        %v3031 = vor.u32 %v3027, %v3030
        %vm3035 = vcmask 1047558
        %vm3036 = vsmask.f32 7962
        %vm3037 = vmand %vm3035, %vm3036
        %v3038 = vld [vmem:[#allocation3 + $0x30] sm:$0xc0]
        %v3039 = vsel %vm3037, %v3017, %v3038
        %3040 = vst [vmem:[#allocation3 + $0x30] sm:$0xc0] %v3039
        %v3041 = vld [vmem:[#allocation3 + $0x38] sm:$0xc0]
        %v3042 = vsel %vm3037, %v3024, %v3041
        %3043 = vst [vmem:[#allocation3 + $0x38] sm:$0xc0] %v3042
        %v3044 = vld [vmem:[#allocation3 + $0x40] sm:$0xc0]
        %v3045 = vsel %vm3037, %v3031, %v3044
        %3046 = vst [vmem:[#allocation3 + $0x40] sm:$0xc0] %v3045
        %3047 = vst [vmem:[#allocation3 + $0x48] sm:$0x7] %v3017
        %3048 = vst [vmem:[#allocation3 + $0x50] sm:$0x7] %v3024
        %3049 = vst [vmem:[#allocation3 + $0x58] sm:$0x7] %v3031
        %v3050 = vld [vmem:[#allocation3] sm:$0xff]
        %v3051 = vld [vmem:[#allocation3 + $0x8] sm:$0xff]
        %v3052 = vld [vmem:[#allocation3 + $0x10] sm:$0xff]
        %v3053 = vld [vmem:[#allocation3 + $0x18] sm:$0xff]
        %v3054 = vld [vmem:[#allocation3 + $0x20] sm:$0xff]
        %v3055 = vld [vmem:[#allocation3 + $0x28] sm:$0xff]
        %v3056 = vld [vmem:[#allocation3 + $0x30] sm:$0xff]
        %v3057 = vld [vmem:[#allocation3 + $0x38] sm:$0xff]
        %v3058 = vld [vmem:[#allocation3 + $0x40] sm:$0xff]
        %v3059 = vld [vmem:[#allocation3 + $0x48] sm:$0x7]
        %v3060 = vld [vmem:[#allocation3 + $0x50] sm:$0x7]
        %v3061 = vld [vmem:[#allocation3 + $0x58] sm:$0x7]
        %v3062 = vld [vmem:[%s6] sm:$0xf]
        %v3063 = vld [vmem:[%s6 + $0x4] sm:$0xf]
        %v3064 = vld [vmem:[%s6 + $0x8] sm:$0xf]
        %v3065 = vld [vmem:[%s6 + $0xc] sm:$0xf]
        %v3066 = vld [vmem:[%s6 + $0x10] sm:$0xf]
        %v3067 = vld [vmem:[%s6 + $0x14] sm:$0xf]
        %v3068 = vld [vmem:[%s6 + $0x18] sm:$0xf]
        %v3069 = vld [vmem:[%s6 + $0x1c] sm:$0xf]
        %v3070 = vld [vmem:[%s6 + $0x20] sm:$0xf]
        %v3071 = vld [vmem:[%s6 + $0x24] sm:$0xf]
        %v3072 = vld [vmem:[%s6 + $0x28] sm:$0xf]
        %v3073 = vld [vmem:[%s6 + $0x2c] sm:$0xf]
        %v3074 = vld [vmem:[%s6 + $0x30] sm:$0xf]
        %v3075 = vld [vmem:[%s6 + $0x34] sm:$0xf]
        %v3076 = vld [vmem:[%s6 + $0x38] sm:$0xf]
        %v3077 = vld [vmem:[%s6 + $0x3c] sm:$0xf]
        %v3078 = vld [vmem:[%s7] sm:$0xff]
        %v3079 = vld [vmem:[%s7 + $0x8] sm:$0xff]
        %v3080 = vld [vmem:[%s7 + $0x10] sm:$0xff]
        %v3081 = vld [vmem:[%s7 + $0x18] sm:$0xff]
        %v3082 = vld [vmem:[%s7 + $0x20] sm:$0xff]
        %v3083 = vld [vmem:[%s7 + $0x28] sm:$0xff]
        %v3084 = vld [vmem:[%s7 + $0x30] sm:$0xff]
        %v3085 = vld [vmem:[%s7 + $0x38] sm:$0xff]
        %v3086 = vld [vmem:[%s7 + $0x40] sm:$0xff]
        %v3087 = vld [vmem:[%s7 + $0x48] sm:$0xff]
        %v3088 = vld [vmem:[%s7 + $0x50] sm:$0xff]
        %v3089 = vld [vmem:[%s7 + $0x58] sm:$0xff]
        %v3090 = vld [vmem:[%s7 + $0x60] sm:$0xff]
        %v3091 = vld [vmem:[%s7 + $0x68] sm:$0xff]
        %v3092 = vld [vmem:[%s7 + $0x70] sm:$0xff]
        %v3093 = vld [vmem:[%s7 + $0x78] sm:$0xff]
        %3095 = vset.pattern.permute.xlu0 0
        %3096 = vperm.xlu0 %3095, %v3078
        %v3097 = vpop.permute.xlu0 %3096
        %3100 = vset.pattern.permute.xlu0 0
        %3101 = vperm.xlu0 %3100, %v3079
        %v3102 = vpop.permute.xlu0 %3101
        %3105 = vset.pattern.permute.xlu0 0
        %3106 = vperm.xlu0 %3105, %v3080
        %v3107 = vpop.permute.xlu0 %3106
        %3110 = vset.pattern.permute.xlu0 0
        %3111 = vperm.xlu0 %3110, %v3081
        %v3112 = vpop.permute.xlu0 %3111
        %3115 = vset.pattern.permute.xlu0 0
        %3116 = vperm.xlu0 %3115, %v3082
        %v3117 = vpop.permute.xlu0 %3116
        %3120 = vset.pattern.permute.xlu0 0
        %3121 = vperm.xlu0 %3120, %v3083
        %v3122 = vpop.permute.xlu0 %3121
        %3125 = vset.pattern.permute.xlu0 0
        %3126 = vperm.xlu0 %3125, %v3084
        %v3127 = vpop.permute.xlu0 %3126
        %3130 = vset.pattern.permute.xlu0 0
        %3131 = vperm.xlu0 %3130, %v3085
        %v3132 = vpop.permute.xlu0 %3131
        %3135 = vset.pattern.permute.xlu0 0
        %3136 = vperm.xlu0 %3135, %v3086
        %v3137 = vpop.permute.xlu0 %3136
        %3140 = vset.pattern.permute.xlu0 0
        %3141 = vperm.xlu0 %3140, %v3087
        %v3142 = vpop.permute.xlu0 %3141
        %3145 = vset.pattern.permute.xlu0 0
        %3146 = vperm.xlu0 %3145, %v3088
        %v3147 = vpop.permute.xlu0 %3146
        %3150 = vset.pattern.permute.xlu0 0
        %3151 = vperm.xlu0 %3150, %v3089
        %v3152 = vpop.permute.xlu0 %3151
        %3155 = vset.pattern.permute.xlu0 0
        %3156 = vperm.xlu0 %3155, %v3090
        %v3157 = vpop.permute.xlu0 %3156
        %3160 = vset.pattern.permute.xlu0 0
        %3161 = vperm.xlu0 %3160, %v3091
        %v3162 = vpop.permute.xlu0 %3161
        %3165 = vset.pattern.permute.xlu0 0
        %3166 = vperm.xlu0 %3165, %v3092
        %v3167 = vpop.permute.xlu0 %3166
        %3170 = vset.pattern.permute.xlu0 0
        %3171 = vperm.xlu0 %3170, %v3093
        %v3172 = vpop.permute.xlu0 %3171
        %v3190 = vunpack.c.l.b16 %v3062
        %v3191 = vunpack.c.l.b16 %v3063
        %v3192 = vunpack.c.l.b16 %v3064
        %v3193 = vunpack.c.l.b16 %v3065
        %v3194 = vunpack.c.l.b16 %v3066
        %v3195 = vunpack.c.l.b16 %v3067
        %v3196 = vunpack.c.l.b16 %v3068
        %v3197 = vunpack.c.l.b16 %v3069
        %v3198 = vunpack.c.l.b16 %v3070
        %v3199 = vunpack.c.l.b16 %v3071
        %v3200 = vunpack.c.l.b16 %v3072
        %v3201 = vunpack.c.l.b16 %v3073
        %v3202 = vunpack.c.l.b16 %v3074
        %v3203 = vunpack.c.l.b16 %v3075
        %v3204 = vunpack.c.l.b16 %v3076
        %v3205 = vunpack.c.l.b16 %v3077
        %v3206 = vpack.c.b16 %v3191, %v3190
        %v3207 = vpack.c.b16 %v3193, %v3192
        %v3208 = vpack.c.b16 %v3195, %v3194
        %v3209 = vpack.c.b16 %v3197, %v3196
        %v3210 = vpack.c.b16 %v3199, %v3198
        %v3211 = vpack.c.b16 %v3201, %v3200
        %v3212 = vpack.c.b16 %v3203, %v3202
        %v3213 = vpack.c.b16 %v3205, %v3204
        %vm3214 = vcmask 441344
        %v3216 = vsel %vm3214, %v3206, 0
        %v3219 = vsel %vm3214, %v3207, 0
        %v3222 = vsel %vm3214, %v3208, 0
        %v3225 = vsel %vm3214, %v3209, 0
        %v3228 = vsel %vm3214, %v3210, 0
        %v3231 = vsel %vm3214, %v3211, 0
        %v3234 = vsel %vm3214, %v3212, 0
        %v3237 = vsel %vm3214, %v3213, 0
        %v3240 = vsel %vm981, %v3059, 0
        %v3243 = vsel %vm981, %v3060, 0
        %v3246 = vsel %vm981, %v3061, 0
        %3248 = vmatprep.subr.bf16.mxu0 %v3051
        %3249 = vmatpush1.bf16.msra.mxu0 %v3050
        %3250 = vmatprep.subr.bf16.mxu0 %v3054
        %3251 = vmatpush1.bf16.msra.mxu0 %v3053
        %3252 = vmatprep.subr.bf16.mxu0 %v3057
        %3253 = vmatpush1.bf16.msra.mxu0 %v3056
        %3254 = vmatprep.subr.bf16.mxu0 %v3243
        %3255 = vmatpush1.bf16.msra.mxu0 %v3240
        %3256 = vmatprep.subr.bf16.mxu0 0
        %3257 = vmatpush1.bf16.msra.mxu0 0
        %3258 = vmatprep.subr.bf16.mxu0 0
        %3259 = vmatpush1.bf16.msra.mxu0 0
        %3260 = vmatprep.subr.bf16.mxu0 0
        %3261 = vmatpush1.bf16.msra.mxu0 0
        %3262 = vmatprep.subr.bf16.mxu0 0
        %3263 = vmatpush1.bf16.msra.mxu0 0
        %3264 = vmatprep.subr.bf16.mxu0 0
        %3265 = vmatpush1.bf16.msra.mxu0 0
        %3266 = vmatprep.subr.bf16.mxu0 0
        %3267 = vmatpush1.bf16.msra.mxu0 0
        %3268 = vmatprep.subr.bf16.mxu0 0
        %3269 = vmatpush1.bf16.msra.mxu0 0
        %3270 = vmatprep.subr.bf16.mxu0 0
        %3271 = vmatpush1.bf16.msra.mxu0 0
        %3272 = vmatprep.subr.bf16.mxu0 0
        %3273 = vmatpush1.bf16.msra.mxu0 0
        %3274 = vmatprep.subr.bf16.mxu0 0
        %3275 = vmatpush1.bf16.msra.mxu0 0
        %3276 = vmatprep.subr.bf16.mxu0 0
        %3277 = vmatpush1.bf16.msra.mxu0 0
        %3278 = vmatprep.subr.bf16.mxu0 0
        %3279 = vmatpush1.bf16.msra.mxu0 0
        %3280 = vmatprep.mubr.bf16.mxu0 0
        %3281 = vmatmul.mubr.bf16.gmra.mrb[0].mxu0 %v3216
        %v3282 = vpop.f32.mrb[0].mxu0
        %v3283 = vadd.f32 %v3097, %v3282
        %v3284 = vpop.f32.mrb[0].mxu0
        %v3285 = vadd.f32 %v3097, %v3284
        %v3286 = vpop.f32.mrb[0].mxu0
        %v3287 = vadd.f32 %v3102, %v3286
        %v3288 = vpop.f32.mrb[0].mxu0
        %v3289 = vadd.f32 %v3102, %v3288
        %3290 = vmatprep.mubr.bf16.mxu0 0
        %3291 = vmatmul.mubr.bf16.gmra.mrb[0].mxu0 %v3219
        %v3292 = vpop.f32.mrb[0].mxu0
        %v3293 = vadd.f32 %v3107, %v3292
        %v3294 = vpop.f32.mrb[0].mxu0
        %v3295 = vadd.f32 %v3107, %v3294
        %v3296 = vpop.f32.mrb[0].mxu0
        %v3297 = vadd.f32 %v3112, %v3296
        %v3298 = vpop.f32.mrb[0].mxu0
        %v3299 = vadd.f32 %v3112, %v3298
        %3300 = vmatprep.mubr.bf16.mxu0 0
        %3301 = vmatmul.mubr.bf16.gmra.mrb[0].mxu0 %v3222
        %v3302 = vpop.f32.mrb[0].mxu0
        %v3303 = vadd.f32 %v3117, %v3302
        %v3304 = vpop.f32.mrb[0].mxu0
        %v3305 = vadd.f32 %v3117, %v3304
        %v3306 = vpop.f32.mrb[0].mxu0
        %v3307 = vadd.f32 %v3122, %v3306
        %v3308 = vpop.f32.mrb[0].mxu0
        %v3309 = vadd.f32 %v3122, %v3308
        %3310 = vmatprep.mubr.bf16.mxu0 0
        %3311 = vmatmul.mubr.bf16.gmra.mrb[0].mxu0 %v3225
        %v3312 = vpop.f32.mrb[0].mxu0
        %v3313 = vadd.f32 %v3127, %v3312
        %v3314 = vpop.f32.mrb[0].mxu0
        %v3315 = vadd.f32 %v3127, %v3314
        %v3316 = vpop.f32.mrb[0].mxu0
        %v3317 = vadd.f32 %v3132, %v3316
        %v3318 = vpop.f32.mrb[0].mxu0
        %v3319 = vadd.f32 %v3132, %v3318
        %3320 = vmatprep.mubr.bf16.mxu0 0
        %3321 = vmatmul.mubr.bf16.gmra.mrb[0].mxu0 %v3228
        %v3322 = vpop.f32.mrb[0].mxu0
        %v3323 = vadd.f32 %v3137, %v3322
        %v3324 = vpop.f32.mrb[0].mxu0
        %v3325 = vadd.f32 %v3137, %v3324
        %v3326 = vpop.f32.mrb[0].mxu0
        %v3327 = vadd.f32 %v3142, %v3326
        %v3328 = vpop.f32.mrb[0].mxu0
        %v3329 = vadd.f32 %v3142, %v3328
        %3330 = vmatprep.mubr.bf16.mxu0 0
        %3331 = vmatmul.mubr.bf16.gmra.mrb[0].mxu0 %v3231
        %v3332 = vpop.f32.mrb[0].mxu0
        %v3333 = vadd.f32 %v3147, %v3332
        %v3334 = vpop.f32.mrb[0].mxu0
        %v3335 = vadd.f32 %v3147, %v3334
        %v3336 = vpop.f32.mrb[0].mxu0
        %v3337 = vadd.f32 %v3152, %v3336
        %v3338 = vpop.f32.mrb[0].mxu0
        %v3339 = vadd.f32 %v3152, %v3338
        %3340 = vmatprep.mubr.bf16.mxu0 0
        %3341 = vmatmul.mubr.bf16.gmra.mrb[0].mxu0 %v3234
        %v3342 = vpop.f32.mrb[0].mxu0
        %v3343 = vadd.f32 %v3157, %v3342
        %v3344 = vpop.f32.mrb[0].mxu0
        %v3345 = vadd.f32 %v3157, %v3344
        %v3346 = vpop.f32.mrb[0].mxu0
        %v3347 = vadd.f32 %v3162, %v3346
        %v3348 = vpop.f32.mrb[0].mxu0
        %v3349 = vadd.f32 %v3162, %v3348
        %3350 = vmatprep.mubr.bf16.mxu0 0
        %3351 = vmatmul.mubr.bf16.gmra.mrb[0].mxu0 %v3237
        %v3352 = vpop.f32.mrb[0].mxu0
        %v3353 = vadd.f32 %v3167, %v3352
        %v3354 = vpop.f32.mrb[0].mxu0
        %v3355 = vadd.f32 %v3167, %v3354
        %v3356 = vpop.f32.mrb[0].mxu0
        %v3357 = vadd.f32 %v3172, %v3356
        %v3358 = vpop.f32.mrb[0].mxu0
        %v3359 = vadd.f32 %v3172, %v3358
        %3360 = vdwg.mxu0
        %3361 = vmatprep.subr.bf16.mxu0 0
        %3362 = vmatpush1.bf16.msra.mxu0 %v3052
        %3363 = vmatprep.subr.bf16.mxu0 0
        %3364 = vmatpush1.bf16.msra.mxu0 %v3055
        %3365 = vmatprep.subr.bf16.mxu0 0
        %3366 = vmatpush1.bf16.msra.mxu0 %v3058
        %3367 = vmatprep.subr.bf16.mxu0 0
        %3368 = vmatpush1.bf16.msra.mxu0 %v3246
        %3369 = vmatprep.subr.bf16.mxu0 0
        %3370 = vmatpush1.bf16.msra.mxu0 0
        %3371 = vmatprep.subr.bf16.mxu0 0
        %3372 = vmatpush1.bf16.msra.mxu0 0
        %3373 = vmatprep.subr.bf16.mxu0 0
        %3374 = vmatpush1.bf16.msra.mxu0 0
        %3375 = vmatprep.subr.bf16.mxu0 0
        %3376 = vmatpush1.bf16.msra.mxu0 0
        %3377 = vmatprep.subr.bf16.mxu0 0
        %3378 = vmatpush1.bf16.msra.mxu0 0
        %3379 = vmatprep.subr.bf16.mxu0 0
        %3380 = vmatpush1.bf16.msra.mxu0 0
        %3381 = vmatprep.subr.bf16.mxu0 0
        %3382 = vmatpush1.bf16.msra.mxu0 0
        %3383 = vmatprep.subr.bf16.mxu0 0
        %3384 = vmatpush1.bf16.msra.mxu0 0
        %3385 = vmatprep.subr.bf16.mxu0 0
        %3386 = vmatpush1.bf16.msra.mxu0 0
        %3387 = vmatprep.subr.bf16.mxu0 0
        %3388 = vmatpush1.bf16.msra.mxu0 0
        %3389 = vmatprep.subr.bf16.mxu0 0
        %3390 = vmatpush1.bf16.msra.mxu0 0
        %3391 = vmatprep.subr.bf16.mxu0 0
        %3392 = vmatpush1.bf16.msra.mxu0 0
        %3393 = vmatprep.mubr.bf16.mxu0 0
        %3394 = vmatmul.mubr.bf16.gmra.mrb[0].mxu0 %v3216
        %v3395 = vpop.f32.mrb[0].mxu0
        %v3396 = vadd.f32 %v3097, %v3395
        %v3397 = vpop.f32.mrb[0].mxu0
        %v3398 = vpop.f32.mrb[0].mxu0
        %v3399 = vadd.f32 %v3102, %v3398
        %v3400 = vpop.f32.mrb[0].mxu0
        %3401 = vmatprep.mubr.bf16.mxu0 0
        %3402 = vmatmul.mubr.bf16.gmra.mrb[0].mxu0 %v3219
        %v3403 = vpop.f32.mrb[0].mxu0
        %v3404 = vadd.f32 %v3107, %v3403
        %v3405 = vpop.f32.mrb[0].mxu0
        %v3406 = vpop.f32.mrb[0].mxu0
        %v3407 = vadd.f32 %v3112, %v3406
        %v3408 = vpop.f32.mrb[0].mxu0
        %3409 = vmatprep.mubr.bf16.mxu0 0
        %3410 = vmatmul.mubr.bf16.gmra.mrb[0].mxu0 %v3222
        %v3411 = vpop.f32.mrb[0].mxu0
        %v3412 = vadd.f32 %v3117, %v3411
        %v3413 = vpop.f32.mrb[0].mxu0
        %v3414 = vpop.f32.mrb[0].mxu0
        %v3415 = vadd.f32 %v3122, %v3414
        %v3416 = vpop.f32.mrb[0].mxu0
        %3417 = vmatprep.mubr.bf16.mxu0 0
        %3418 = vmatmul.mubr.bf16.gmra.mrb[0].mxu0 %v3225
        %v3419 = vpop.f32.mrb[0].mxu0
        %v3420 = vadd.f32 %v3127, %v3419
        %v3421 = vpop.f32.mrb[0].mxu0
        %v3422 = vpop.f32.mrb[0].mxu0
        %v3423 = vadd.f32 %v3132, %v3422
        %v3424 = vpop.f32.mrb[0].mxu0
        %3425 = vmatprep.mubr.bf16.mxu0 0
        %3426 = vmatmul.mubr.bf16.gmra.mrb[0].mxu0 %v3228
        %v3427 = vpop.f32.mrb[0].mxu0
        %v3428 = vadd.f32 %v3137, %v3427
        %v3429 = vpop.f32.mrb[0].mxu0
        %v3430 = vpop.f32.mrb[0].mxu0
        %v3431 = vadd.f32 %v3142, %v3430
        %v3432 = vpop.f32.mrb[0].mxu0
        %3433 = vmatprep.mubr.bf16.mxu0 0
        %3434 = vmatmul.mubr.bf16.gmra.mrb[0].mxu0 %v3231
        %v3435 = vpop.f32.mrb[0].mxu0
        %v3436 = vadd.f32 %v3147, %v3435
        %v3437 = vpop.f32.mrb[0].mxu0
        %v3438 = vpop.f32.mrb[0].mxu0
        %v3439 = vadd.f32 %v3152, %v3438
        %v3440 = vpop.f32.mrb[0].mxu0
        %3441 = vmatprep.mubr.bf16.mxu0 0
        %3442 = vmatmul.mubr.bf16.gmra.mrb[0].mxu0 %v3234
        %v3443 = vpop.f32.mrb[0].mxu0
        %v3444 = vadd.f32 %v3157, %v3443
        %v3445 = vpop.f32.mrb[0].mxu0
        %v3446 = vpop.f32.mrb[0].mxu0
        %v3447 = vadd.f32 %v3162, %v3446
        %v3448 = vpop.f32.mrb[0].mxu0
        %3449 = vmatprep.mubr.bf16.mxu0 0
        %3450 = vmatmul.mubr.bf16.gmra.mrb[0].mxu0 %v3237
        %v3451 = vpop.f32.mrb[0].mxu0
        %v3452 = vadd.f32 %v3167, %v3451
        %v3453 = vpop.f32.mrb[0].mxu0
        %v3454 = vpop.f32.mrb[0].mxu0
        %v3455 = vadd.f32 %v3172, %v3454
        %v3456 = vpop.f32.mrb[0].mxu0
        %3457 = vdwg.mxu0
        %v3458 = vmax.f32 %v3283, 0.0
        %v3459 = vmax.f32 %v3285, 0.0
        %v3460 = vmax.f32 %v3396, 0.0
        %v3461 = vmax.f32 %v3287, 0.0
        %v3462 = vmax.f32 %v3289, 0.0
        %v3463 = vmax.f32 %v3399, 0.0
        %v3464 = vmax.f32 %v3293, 0.0
        %v3465 = vmax.f32 %v3295, 0.0
        %v3466 = vmax.f32 %v3404, 0.0
        %v3467 = vmax.f32 %v3297, 0.0
        %v3468 = vmax.f32 %v3299, 0.0
        %v3469 = vmax.f32 %v3407, 0.0
        %v3470 = vmax.f32 %v3303, 0.0
        %v3471 = vmax.f32 %v3305, 0.0
        %v3472 = vmax.f32 %v3412, 0.0
        %v3473 = vmax.f32 %v3307, 0.0
        %v3474 = vmax.f32 %v3309, 0.0
        %v3475 = vmax.f32 %v3415, 0.0
        %v3476 = vmax.f32 %v3313, 0.0
        %v3477 = vmax.f32 %v3315, 0.0
        %v3478 = vmax.f32 %v3420, 0.0
        %v3479 = vmax.f32 %v3317, 0.0
        %v3480 = vmax.f32 %v3319, 0.0
        %v3481 = vmax.f32 %v3423, 0.0
        %v3482 = vmax.f32 %v3323, 0.0
        %v3483 = vmax.f32 %v3325, 0.0
        %v3484 = vmax.f32 %v3428, 0.0
        %v3485 = vmax.f32 %v3327, 0.0
        %v3486 = vmax.f32 %v3329, 0.0
        %v3487 = vmax.f32 %v3431, 0.0
        %v3488 = vmax.f32 %v3333, 0.0
        %v3489 = vmax.f32 %v3335, 0.0
        %v3490 = vmax.f32 %v3436, 0.0
        %v3491 = vmax.f32 %v3337, 0.0
        %v3492 = vmax.f32 %v3339, 0.0
        %v3493 = vmax.f32 %v3439, 0.0
        %v3494 = vmax.f32 %v3343, 0.0
        %v3495 = vmax.f32 %v3345, 0.0
        %v3496 = vmax.f32 %v3444, 0.0
        %v3497 = vmax.f32 %v3347, 0.0
        %v3498 = vmax.f32 %v3349, 0.0
        %v3499 = vmax.f32 %v3447, 0.0
        %v3500 = vmax.f32 %v3353, 0.0
        %v3501 = vmax.f32 %v3355, 0.0
        %v3502 = vmax.f32 %v3452, 0.0
        %v3503 = vmax.f32 %v3357, 0.0
        %v3504 = vmax.f32 %v3359, 0.0
        %v3505 = vmax.f32 %v3455, 0.0
        %v3506 = vpack.c.bf16 %v3461, %v3458
        %v3507 = vpack.c.bf16 %v3462, %v3459
        %v3508 = vpack.c.bf16 %v3463, %v3460
        %v3509 = vpack.c.bf16 %v3467, %v3464
        %v3510 = vpack.c.bf16 %v3468, %v3465
        %v3511 = vpack.c.bf16 %v3469, %v3466
        %v3512 = vpack.c.bf16 %v3473, %v3470
        %v3513 = vpack.c.bf16 %v3474, %v3471
        %v3514 = vpack.c.bf16 %v3475, %v3472
        %v3515 = vpack.c.bf16 %v3479, %v3476
        %v3516 = vpack.c.bf16 %v3480, %v3477
        %v3517 = vpack.c.bf16 %v3481, %v3478
        %v3518 = vpack.c.bf16 %v3485, %v3482
        %v3519 = vpack.c.bf16 %v3486, %v3483
        %v3520 = vpack.c.bf16 %v3487, %v3484
        %v3521 = vpack.c.bf16 %v3491, %v3488
        %v3522 = vpack.c.bf16 %v3492, %v3489
        %v3523 = vpack.c.bf16 %v3493, %v3490
        %v3524 = vpack.c.bf16 %v3497, %v3494
        %v3525 = vpack.c.bf16 %v3498, %v3495
        %v3526 = vpack.c.bf16 %v3499, %v3496
        %v3527 = vpack.c.bf16 %v3503, %v3500
        %v3528 = vpack.c.bf16 %v3504, %v3501
        %v3529 = vpack.c.bf16 %v3505, %v3502
        %v3530 = vld [vmem:[%s8] sm:$0x1]
        %v3531 = vld [vmem:[#allocation4] sm:$0x1]
        %3533 = vset.pattern.permute.xlu0 0
        %3534 = vperm.xlu0 %3533, %v3531
        %v3535 = vpop.permute.xlu0 %3534
        %v3537 = vlaneseq
        %v3538 = vshrl.u32 %v3537, 7
        %v3539 = vsub.s32 0, %v3538
        %v3540 = vrot.slane %v3535, %v3539
        %3541 = vmatprep.subr.bf16.mxu0 %v3507
        %3542 = vmatpush1.bf16.msra.mxu0 %v3506
        %3543 = vmatprep.subr.bf16.mxu0 %v3510
        %3544 = vmatpush1.bf16.msra.mxu0 %v3509
        %3545 = vmatprep.subr.bf16.mxu0 %v3513
        %3546 = vmatpush1.bf16.msra.mxu0 %v3512
        %3547 = vmatprep.subr.bf16.mxu0 %v3516
        %3548 = vmatpush1.bf16.msra.mxu0 %v3515
        %3549 = vmatprep.subr.bf16.mxu0 %v3519
        %3550 = vmatpush1.bf16.msra.mxu0 %v3518
        %3551 = vmatprep.subr.bf16.mxu0 %v3522
        %3552 = vmatpush1.bf16.msra.mxu0 %v3521
        %3553 = vmatprep.subr.bf16.mxu0 %v3525
        %3554 = vmatpush1.bf16.msra.mxu0 %v3524
        %3555 = vmatprep.subr.bf16.mxu0 %v3528
        %3556 = vmatpush1.bf16.msra.mxu0 %v3527
        %3557 = vmatprep.subr.bf16.mxu0 0
        %3558 = vmatpush1.bf16.msra.mxu0 0
        %3559 = vmatprep.subr.bf16.mxu0 0
        %3560 = vmatpush1.bf16.msra.mxu0 0
        %3561 = vmatprep.subr.bf16.mxu0 0
        %3562 = vmatpush1.bf16.msra.mxu0 0
        %3563 = vmatprep.subr.bf16.mxu0 0
        %3564 = vmatpush1.bf16.msra.mxu0 0
        %3565 = vmatprep.subr.bf16.mxu0 0
        %3566 = vmatpush1.bf16.msra.mxu0 0
        %3567 = vmatprep.subr.bf16.mxu0 0
        %3568 = vmatpush1.bf16.msra.mxu0 0
        %3569 = vmatprep.subr.bf16.mxu0 0
        %3570 = vmatpush1.bf16.msra.mxu0 0
        %3571 = vmatprep.subr.bf16.mxu0 0
        %3572 = vmatpush1.bf16.msra.mxu0 0
        %3573 = vmatprep.mubr.bf16.mxu0 0
        %3574 = vmatmul.mubr.bf16.gmra.mrb[0].mxu0 %v3530
        %v3575 = vpop.f32.mrb[0].mxu0
        %v3576 = vadd.f32 %v3540, %v3575
        %v3577 = vpop.f32.mrb[0].mxu0
        %v3578 = vadd.f32 %v3540, %v3577
        %v3579 = vpop.f32.mrb[0].mxu0
        %v3580 = vpop.f32.mrb[0].mxu0
        %3581 = vdwg.mxu0
        %3582 = vmatprep.subr.bf16.mxu0 0
        %3583 = vmatpush1.bf16.msra.mxu0 %v3508
        %3584 = vmatprep.subr.bf16.mxu0 0
        %3585 = vmatpush1.bf16.msra.mxu0 %v3511
        %3586 = vmatprep.subr.bf16.mxu0 0
        %3587 = vmatpush1.bf16.msra.mxu0 %v3514
        %3588 = vmatprep.subr.bf16.mxu0 0
        %3589 = vmatpush1.bf16.msra.mxu0 %v3517
        %3590 = vmatprep.subr.bf16.mxu0 0
        %3591 = vmatpush1.bf16.msra.mxu0 %v3520
        %3592 = vmatprep.subr.bf16.mxu0 0
        %3593 = vmatpush1.bf16.msra.mxu0 %v3523
        %3594 = vmatprep.subr.bf16.mxu0 0
        %3595 = vmatpush1.bf16.msra.mxu0 %v3526
        %3596 = vmatprep.subr.bf16.mxu0 0
        %3597 = vmatpush1.bf16.msra.mxu0 %v3529
        %3598 = vmatprep.subr.bf16.mxu0 0
        %3599 = vmatpush1.bf16.msra.mxu0 0
        %3600 = vmatprep.subr.bf16.mxu0 0
        %3601 = vmatpush1.bf16.msra.mxu0 0
        %3602 = vmatprep.subr.bf16.mxu0 0
        %3603 = vmatpush1.bf16.msra.mxu0 0
        %3604 = vmatprep.subr.bf16.mxu0 0
        %3605 = vmatpush1.bf16.msra.mxu0 0
        %3606 = vmatprep.subr.bf16.mxu0 0
        %3607 = vmatpush1.bf16.msra.mxu0 0
        %3608 = vmatprep.subr.bf16.mxu0 0
        %3609 = vmatpush1.bf16.msra.mxu0 0
        %3610 = vmatprep.subr.bf16.mxu0 0
        %3611 = vmatpush1.bf16.msra.mxu0 0
        %3612 = vmatprep.subr.bf16.mxu0 0
        %3613 = vmatpush1.bf16.msra.mxu0 0
        %3614 = vmatprep.mubr.bf16.mxu0 0
        %3615 = vmatmul.mubr.bf16.gmra.mrb[0].mxu0 %v3530
        %v3616 = vpop.f32.mrb[0].mxu0
        %v3617 = vadd.f32 %v3540, %v3616
        %v3618 = vpop.f32.mrb[0].mxu0
        %v3619 = vpop.f32.mrb[0].mxu0
        %v3620 = vpop.f32.mrb[0].mxu0
        %3621 = vdwg.mxu0
        %v3622 = vsub.f32 0.0, %v3576
        %v3623 = vsub.f32 0.0, %v3578
        %v3624 = vsub.f32 0.0, %v3617
        %v3625 = vmul.f32 %v3622, 1.442695
        %v3626 = vpow.pop %v3625
        %v3627 = vmul.f32 %v3623, 1.442695
        %v3628 = vpow.pop %v3627
        %v3629 = vmul.f32 %v3624, 1.442695
        %v3630 = vpow.pop %v3629
        %v3631 = vadd.f32 %v3626, 1.0
        %v3632 = vadd.f32 %v3628, 1.0
        %v3633 = vadd.f32 %v3630, 1.0
        %v3634 = vrcp.pop %v3631
        %v3635 = vrcp.pop %v3632
        %v3636 = vrcp.pop %v3633
        %v3640 = vcombine.low %v3634, %v3635
        %v3642 = vunpack.c.l.s4 1966171168
        %v3643 = vunpack.c.0.s8 %v3642
        %v3644 = vlaneseq
        %v3645 = vshrl.u32 %v3644, 7
        %v3646 = vsub.s32 %v3643, %v3645
        %v3647 = vrot.slane %v3640, %v3646
        %v3649 = vunpack.c.l.s4 1966171168
        %v3650 = vunpack.c.0.s8 %v3649
        %v3651 = vlaneseq
        %v3652 = vshrl.u32 %v3651, 7
        %v3653 = vsub.s32 %v3650, %v3652
        %v3654 = vrot.slane %v3636, %v3653
        %v3655 = vcombine.low %v3647, %v3654
        %v3657 = vunpack.c.l.s4 1966171168
        %v3658 = vunpack.c.0.s8 %v3657
        %v3659 = vlaneseq
        %v3660 = vshrl.u32 %v3659, 7
        %v3661 = vsub.s32 %v3658, %v3660
        %v3662 = vrot.slane %v3655, %v3661
        %v3664 = vlaneseq
        %vm3665 = vcmp.ge.s32.totalorder %v3664, 0
        %vm3666 = vcmp.lt.s32.totalorder %v3664, 384
        %vm3667 = vmand %vm3665, %vm3666
        %s3668 = scalar_lea.vmem %s486, 3
        %3669 = vst.msk [vmem:[%s3668] ss:$8 sm:$0x7] %vm3667, %v3662
        %3670 = vst.msk [vmem:[%s3668] ss:$8 sm:$0x0] %vm3667, %v3662
        %3671 = vrot.lane.b32.xlu0 %v3636, 19
        %v3672 = vpop.permute.xlu0 %3671
        %3674 = vrot.lane.b32.xlu0 %v3634, 19
        %v3675 = vpop.permute.xlu0 %3674
        %3676 = vrot.lane.b32.xlu0 %v3635, 19
        %v3677 = vpop.permute.xlu0 %3676
        %v3678 = vsel %vm2197, %v3675, %v3677
        %v3679 = vsel %vm2197, %v3677, %v3672
        %v3681 = vsel %vm2197, %v3672, %v3675
        %v3682 = vld [vmem:[%s1] sm:$0x7]
        %vm3683 = vcmp.eq.f32.partialorder %v3682, 1.0
        %v3685 = vcombine.low %v3681, %v3678
        %v3687 = vunpack.c.l.s4 1966171168
        %v3688 = vunpack.c.0.s8 %v3687
        %v3689 = vlaneseq
        %v3690 = vshrl.u32 %v3689, 7
        %v3691 = vsub.s32 %v3688, %v3690
        %v3692 = vrot.slane %v3685, %v3691
        %v3694 = vunpack.c.l.s4 1966171168
        %v3695 = vunpack.c.0.s8 %v3694
        %v3696 = vlaneseq
        %v3697 = vshrl.u32 %v3696, 7
        %v3698 = vsub.s32 %v3695, %v3697
        %v3699 = vrot.slane %v3679, %v3698
        %v3700 = vcombine.low %v3692, %v3699
        %v3702 = vunpack.c.l.s4 1966171168
        %v3703 = vunpack.c.0.s8 %v3702
        %v3704 = vlaneseq
        %v3705 = vshrl.u32 %v3704, 7
        %v3706 = vsub.s32 %v3703, %v3705
        %v3707 = vrot.slane %v3700, %v3706
        %v3709 = vsel %vm3683, %v3707, 0.0
        %s3710 = scalar_lea.vmem [#allocation2], 6
        %3711 = vst.msk [vmem:[%s3710] ss:$8 sm:$0x7] %vm3667, %v3709
        %3712 = vst.msk [vmem:[%s3710] ss:$8 sm:$0x0] %vm3667, %v3709
        %v3713 = vld [vmem:[%s3710] ss:$8 sm:$0x7]
        %v3715 = vlaneseq
        %v3716 = vshrl.u32 %v3715, 7
        %v3717 = vsub.s32 0, %v3716
        %v3718 = vrot.slane %v3713, %v3717
        %v3719 = vlaneseq
        %v3720 = vshrl.u32 %v3719, 7
        %v3721 = vsub.s32 1, %v3720
        %v3722 = vrot.slane %v3713, %v3721
        %v3723 = vlaneseq
        %v3724 = vshrl.u32 %v3723, 7
        %v3725 = vsub.s32 2, %v3724
        %v3726 = vrot.slane %v3713, %v3725
        %v3730 = vpack.c.bf16 %v3718, %v3718
        %v3731 = vpack.c.bf16 %v3722, %v3722
        %v3732 = vpack.c.bf16 %v3726, %v3726
        %3736 = vrot.lane.b32.xlu0 %v3730, 127
        %v3737 = vpop.permute.xlu0 %3736
        %3738 = vrot.lane.b32.xlu0 %v3731, 127
        %v3739 = vpop.permute.xlu0 %3738
        %3740 = vrot.lane.b32.xlu0 %v3732, 127
        %v3741 = vpop.permute.xlu0 %3740
        %v3742 = vsel %vm770, %v3737, %v3739
        %v3743 = vsel %vm770, %v3739, %v3741
        %v3746 = vsel %vm773, %v3741, %v3737
        %3747 = vrot.lane.b32.xlu0 %v3730, 126
        %v3748 = vpop.permute.xlu0 %3747
        %3749 = vrot.lane.b32.xlu0 %v3731, 126
        %v3750 = vpop.permute.xlu0 %3749
        %3751 = vrot.lane.b32.xlu0 %v3732, 126
        %v3752 = vpop.permute.xlu0 %3751
        %v3753 = vsel %vm783, %v3748, %v3750
        %v3754 = vsel %vm783, %v3750, %v3752
        %v3757 = vsel %vm786, %v3752, %v3748
        %3758 = vrot.lane.b32.xlu0 %v3730, 110
        %v3759 = vpop.permute.xlu0 %3758
        %3760 = vrot.lane.b32.xlu0 %v3731, 110
        %v3761 = vpop.permute.xlu0 %3760
        %3762 = vrot.lane.b32.xlu0 %v3732, 110
        %v3763 = vpop.permute.xlu0 %3762
        %v3764 = vsel %vm796, %v3759, %v3761
        %v3765 = vsel %vm796, %v3761, %v3763
        %v3768 = vsel %vm799, %v3763, %v3759
        %3769 = vrot.lane.b32.xlu0 %v3730, 109
        %v3770 = vpop.permute.xlu0 %3769
        %3771 = vrot.lane.b32.xlu0 %v3731, 109
        %v3772 = vpop.permute.xlu0 %3771
        %3773 = vrot.lane.b32.xlu0 %v3732, 109
        %v3774 = vpop.permute.xlu0 %3773
        %v3775 = vsel %vm809, %v3770, %v3772
        %v3776 = vsel %vm809, %v3772, %v3774
        %v3779 = vsel %vm812, %v3774, %v3770
        %3780 = vrot.lane.b32.xlu0 %v3730, 108
        %v3781 = vpop.permute.xlu0 %3780
        %3782 = vrot.lane.b32.xlu0 %v3731, 108
        %v3783 = vpop.permute.xlu0 %3782
        %3784 = vrot.lane.b32.xlu0 %v3732, 108
        %v3785 = vpop.permute.xlu0 %3784
        %v3786 = vsel %vm822, %v3781, %v3783
        %v3787 = vsel %vm822, %v3783, %v3785
        %v3790 = vsel %vm825, %v3785, %v3781
        %3791 = vrot.lane.b32.xlu0 %v3730, 92
        %v3792 = vpop.permute.xlu0 %3791
        %3793 = vrot.lane.b32.xlu0 %v3731, 92
        %v3794 = vpop.permute.xlu0 %3793
        %3795 = vrot.lane.b32.xlu0 %v3732, 92
        %v3796 = vpop.permute.xlu0 %3795
        %v3797 = vsel %vm835, %v3792, %v3794
        %v3798 = vsel %vm835, %v3794, %v3796
        %v3801 = vsel %vm838, %v3796, %v3792
        %3802 = vrot.lane.b32.xlu0 %v3730, 91
        %v3803 = vpop.permute.xlu0 %3802
        %3804 = vrot.lane.b32.xlu0 %v3731, 91
        %v3805 = vpop.permute.xlu0 %3804
        %3806 = vrot.lane.b32.xlu0 %v3732, 91
        %v3807 = vpop.permute.xlu0 %3806
        %v3808 = vsel %vm848, %v3803, %v3805
        %v3809 = vsel %vm848, %v3805, %v3807
        %v3812 = vsel %vm851, %v3807, %v3803
        %3813 = vrot.lane.b32.xlu0 %v3730, 90
        %v3814 = vpop.permute.xlu0 %3813
        %3815 = vrot.lane.b32.xlu0 %v3731, 90
        %v3816 = vpop.permute.xlu0 %3815
        %3817 = vrot.lane.b32.xlu0 %v3732, 90
        %v3818 = vpop.permute.xlu0 %3817
        %v3819 = vsel %vm861, %v3814, %v3816
        %v3820 = vsel %vm861, %v3816, %v3818
        %v3823 = vsel %vm864, %v3818, %v3814
        %v3825 = vshll.u32 %v3742, 16
        %v3828 = vshll.u32 %v3743, 16
        %v3830 = vshll.u32 %v3746, 16
        %v3836 = vrot.slane %v3753, 7
        %v3837 = vrot.slane %v3754, 7
        %v3838 = vrot.slane %v3757, 7
        %v3840 = vshll.u32 %v3764, 16
        %v3842 = vrot.slane %v3840, 7
        %v3844 = vshll.u32 %v3765, 16
        %v3846 = vrot.slane %v3844, 7
        %v3847 = vshll.u32 %v3768, 16
        %v3849 = vrot.slane %v3847, 7
        %v3854 = vrot.slane %v3775, 6
        %v3855 = vrot.slane %v3776, 6
        %v3856 = vrot.slane %v3779, 6
        %v3858 = vshll.u32 %v3786, 16
        %v3860 = vrot.slane %v3858, 6
        %v3862 = vshll.u32 %v3787, 16
        %v3864 = vrot.slane %v3862, 6
        %v3865 = vshll.u32 %v3790, 16
        %v3867 = vrot.slane %v3865, 6
        %v3872 = vrot.slane %v3797, 5
        %v3873 = vrot.slane %v3798, 5
        %v3874 = vrot.slane %v3801, 5
        %v3876 = vshll.u32 %v3808, 16
        %v3878 = vrot.slane %v3876, 5
        %v3880 = vshll.u32 %v3809, 16
        %v3882 = vrot.slane %v3880, 5
        %v3883 = vshll.u32 %v3812, 16
        %v3885 = vrot.slane %v3883, 5
        %v3890 = vrot.slane %v3819, 4
        %v3891 = vrot.slane %v3820, 4
        %v3892 = vrot.slane %v3823, 4
        %v3893 = vsel %vm939, %v3730, %v3825
        %v3894 = vsel %vm939, %v3731, %v3828
        %v3895 = vsel %vm939, %v3732, %v3830
        %v3898 = vsel %vm943, %v3893, %v3836
        %v3902 = vsel %vm943, %v3894, %v3837
        %v3906 = vsel %vm943, %v3895, %v3838
        %v3908 = vsel %vm958, %v3898, %v3842
        %v3909 = vsel %vm958, %v3902, %v3846
        %v3910 = vsel %vm958, %v3906, %v3849
        %v3913 = vsel %vm962, %v3908, %v3854
        %v3917 = vsel %vm962, %v3909, %v3855
        %v3921 = vsel %vm962, %v3910, %v3856
        %v3923 = vsel %vm977, %v3913, %v3860
        %v3924 = vsel %vm977, %v3917, %v3864
        %v3925 = vsel %vm977, %v3921, %v3867
        %v3928 = vsel %vm981, %v3923, %v3872
        %v3932 = vsel %vm981, %v3924, %v3873
        %v3936 = vsel %vm981, %v3925, %v3874
        %v3938 = vsel %vm996, %v3928, %v3878
        %v3939 = vsel %vm996, %v3932, %v3882
        %v3940 = vsel %vm996, %v3936, %v3885
        %v3943 = vsel %vm1000, %v3938, %v3890
        %v3946 = vsel %vm1000, %v3939, %v3891
        %v3949 = vsel %vm1000, %v3940, %v3892
        %v3953 = vrot.slane %v3943, 5
        %v3954 = vrot.slane %v3946, 5
        %v3955 = vrot.slane %v3949, 5
        %vm3959 = vcmask 1047555
        %vm3960 = vsmask.f32 7424
        %vm3961 = vmand %vm3959, %vm3960
        %v3962 = vld [vmem:[#allocation3 + $0x48] sm:$0xf8]
        %v3963 = vsel %vm3961, %v3953, %v3962
        %3964 = vst [vmem:[#allocation3 + $0x48] sm:$0xf8] %v3963
        %v3965 = vld [vmem:[#allocation3 + $0x50] sm:$0xf8]
        %v3966 = vsel %vm3961, %v3954, %v3965
        %3967 = vst [vmem:[#allocation3 + $0x50] sm:$0xf8] %v3966
        %v3968 = vld [vmem:[#allocation3 + $0x58] sm:$0xf8]
        %v3969 = vsel %vm3961, %v3955, %v3968
        %3970 = vst [vmem:[#allocation3 + $0x58] sm:$0xf8] %v3969
        %v3971 = vld [vmem:[#allocation3] sm:$0xff]
        %v3972 = vld [vmem:[#allocation3 + $0x8] sm:$0xff]
        %v3973 = vld [vmem:[#allocation3 + $0x10] sm:$0xff]
        %v3974 = vld [vmem:[#allocation3 + $0x18] sm:$0xff]
        %v3975 = vld [vmem:[#allocation3 + $0x20] sm:$0xff]
        %v3976 = vld [vmem:[#allocation3 + $0x28] sm:$0xff]
        %v3977 = vld [vmem:[#allocation3 + $0x30] sm:$0xff]
        %v3978 = vld [vmem:[#allocation3 + $0x38] sm:$0xff]
        %v3979 = vld [vmem:[#allocation3 + $0x40] sm:$0xff]
        %v3980 = vld [vmem:[#allocation3 + $0x48] sm:$0xff]
        %v3981 = vld [vmem:[#allocation3 + $0x50] sm:$0xff]
        %v3982 = vld [vmem:[#allocation3 + $0x58] sm:$0xff]
        %v3983 = vld [vmem:[#allocation6] sm:$0xf]
        %v3984 = vld [vmem:[#allocation6 + $0x4] sm:$0xf]
        %v3985 = vld [vmem:[#allocation6 + $0x8] sm:$0xf]
        %v3986 = vld [vmem:[#allocation6 + $0xc] sm:$0xf]
        %v3987 = vld [vmem:[#allocation6 + $0x10] sm:$0xf]
        %v3988 = vld [vmem:[#allocation6 + $0x14] sm:$0xf]
        %v3989 = vld [vmem:[#allocation6 + $0x18] sm:$0xf]
        %v3990 = vld [vmem:[#allocation6 + $0x1c] sm:$0xf]
        %v3991 = vld [vmem:[#allocation6 + $0x20] sm:$0xf]
        %v3992 = vld [vmem:[#allocation6 + $0x24] sm:$0xf]
        %v3993 = vld [vmem:[#allocation6 + $0x28] sm:$0xf]
        %v3994 = vld [vmem:[#allocation6 + $0x2c] sm:$0xf]
        %v3995 = vld [vmem:[#allocation6 + $0x30] sm:$0xf]
        %v3996 = vld [vmem:[#allocation6 + $0x34] sm:$0xf]
        %v3997 = vld [vmem:[#allocation6 + $0x38] sm:$0xf]
        %v3998 = vld [vmem:[#allocation6 + $0x3c] sm:$0xf]
        %v3999 = vld [vmem:[%s11] sm:$0xff]
        %v4000 = vld [vmem:[%s11 + $0x8] sm:$0xff]
        %v4001 = vld [vmem:[%s11 + $0x10] sm:$0xff]
        %v4002 = vld [vmem:[%s11 + $0x18] sm:$0xff]
        %v4003 = vld [vmem:[%s11 + $0x20] sm:$0xff]
        %v4004 = vld [vmem:[%s11 + $0x28] sm:$0xff]
        %v4005 = vld [vmem:[%s11 + $0x30] sm:$0xff]
        %v4006 = vld [vmem:[%s11 + $0x38] sm:$0xff]
        %v4007 = vld [vmem:[%s11 + $0x40] sm:$0xff]
        %v4008 = vld [vmem:[%s11 + $0x48] sm:$0xff]
        %v4009 = vld [vmem:[%s11 + $0x50] sm:$0xff]
        %v4010 = vld [vmem:[%s11 + $0x58] sm:$0xff]
        %v4011 = vld [vmem:[%s11 + $0x60] sm:$0xff]
        %v4012 = vld [vmem:[%s11 + $0x68] sm:$0xff]
        %v4013 = vld [vmem:[%s11 + $0x70] sm:$0xff]
        %v4014 = vld [vmem:[%s11 + $0x78] sm:$0xff]
        %4016 = vset.pattern.permute.xlu0 0
        %4017 = vperm.xlu0 %4016, %v3999
        %v4018 = vpop.permute.xlu0 %4017
        %4021 = vset.pattern.permute.xlu0 0
        %4022 = vperm.xlu0 %4021, %v4000
        %v4023 = vpop.permute.xlu0 %4022
        %4026 = vset.pattern.permute.xlu0 0
        %4027 = vperm.xlu0 %4026, %v4001
        %v4028 = vpop.permute.xlu0 %4027
        %4031 = vset.pattern.permute.xlu0 0
        %4032 = vperm.xlu0 %4031, %v4002
        %v4033 = vpop.permute.xlu0 %4032
        %4036 = vset.pattern.permute.xlu0 0
        %4037 = vperm.xlu0 %4036, %v4003
        %v4038 = vpop.permute.xlu0 %4037
        %4041 = vset.pattern.permute.xlu0 0
        %4042 = vperm.xlu0 %4041, %v4004
        %v4043 = vpop.permute.xlu0 %4042
        %4046 = vset.pattern.permute.xlu0 0
        %4047 = vperm.xlu0 %4046, %v4005
        %v4048 = vpop.permute.xlu0 %4047
        %4051 = vset.pattern.permute.xlu0 0
        %4052 = vperm.xlu0 %4051, %v4006
        %v4053 = vpop.permute.xlu0 %4052
        %4056 = vset.pattern.permute.xlu0 0
        %4057 = vperm.xlu0 %4056, %v4007
        %v4058 = vpop.permute.xlu0 %4057
        %4061 = vset.pattern.permute.xlu0 0
        %4062 = vperm.xlu0 %4061, %v4008
        %v4063 = vpop.permute.xlu0 %4062
        %4066 = vset.pattern.permute.xlu0 0
        %4067 = vperm.xlu0 %4066, %v4009
        %v4068 = vpop.permute.xlu0 %4067
        %4071 = vset.pattern.permute.xlu0 0
        %4072 = vperm.xlu0 %4071, %v4010
        %v4073 = vpop.permute.xlu0 %4072
        %4076 = vset.pattern.permute.xlu0 0
        %4077 = vperm.xlu0 %4076, %v4011
        %v4078 = vpop.permute.xlu0 %4077
        %4081 = vset.pattern.permute.xlu0 0
        %4082 = vperm.xlu0 %4081, %v4012
        %v4083 = vpop.permute.xlu0 %4082
        %4086 = vset.pattern.permute.xlu0 0
        %4087 = vperm.xlu0 %4086, %v4013
        %v4088 = vpop.permute.xlu0 %4087
        %4091 = vset.pattern.permute.xlu0 0
        %4092 = vperm.xlu0 %4091, %v4014
        %v4093 = vpop.permute.xlu0 %4092
        %v4111 = vunpack.c.l.b16 %v3983
        %v4112 = vunpack.c.l.b16 %v3984
        %v4113 = vunpack.c.l.b16 %v3985
        %v4114 = vunpack.c.l.b16 %v3986
        %v4115 = vunpack.c.l.b16 %v3987
        %v4116 = vunpack.c.l.b16 %v3988
        %v4117 = vunpack.c.l.b16 %v3989
        %v4118 = vunpack.c.l.b16 %v3990
        %v4119 = vunpack.c.l.b16 %v3991
        %v4120 = vunpack.c.l.b16 %v3992
        %v4121 = vunpack.c.l.b16 %v3993
        %v4122 = vunpack.c.l.b16 %v3994
        %v4123 = vunpack.c.l.b16 %v3995
        %v4124 = vunpack.c.l.b16 %v3996
        %v4125 = vunpack.c.l.b16 %v3997
        %v4126 = vunpack.c.l.b16 %v3998
        %v4127 = vpack.c.b16 %v4112, %v4111
        %v4128 = vpack.c.b16 %v4114, %v4113
        %v4129 = vpack.c.b16 %v4116, %v4115
        %v4130 = vpack.c.b16 %v4118, %v4117
        %v4131 = vpack.c.b16 %v4120, %v4119
        %v4132 = vpack.c.b16 %v4122, %v4121
        %v4133 = vpack.c.b16 %v4124, %v4123
        %v4134 = vpack.c.b16 %v4126, %v4125
        %vm4135 = vcmask 515072
        %v4137 = vsel %vm4135, %v4127, 0
        %v4140 = vsel %vm4135, %v4128, 0
        %v4143 = vsel %vm4135, %v4129, 0
        %v4146 = vsel %vm4135, %v4130, 0
        %v4149 = vsel %vm4135, %v4131, 0
        %v4152 = vsel %vm4135, %v4132, 0
        %v4155 = vsel %vm4135, %v4133, 0
        %v4158 = vsel %vm4135, %v4134, 0
        %vm4160 = vcmask 1046528
        %vm4161 = vcmask 1047552
        %v4162 = vsel %vm4160, 4294967295, 65535
        %v4163 = vsel %vm4161, %v4162, 0
        %v4165 = vand.u32 %v3980, %v4163
        %v4168 = vand.u32 %v3981, %v4163
        %v4171 = vand.u32 %v3982, %v4163
        %4173 = vmatprep.subr.bf16.mxu0 %v3972
        %4174 = vmatpush1.bf16.msra.mxu0 %v3971
        %4175 = vmatprep.subr.bf16.mxu0 %v3975
        %4176 = vmatpush1.bf16.msra.mxu0 %v3974
        %4177 = vmatprep.subr.bf16.mxu0 %v3978
        %4178 = vmatpush1.bf16.msra.mxu0 %v3977
        %4179 = vmatprep.subr.bf16.mxu0 %v4168
        %4180 = vmatpush1.bf16.msra.mxu0 %v4165
        %4181 = vmatprep.subr.bf16.mxu0 0
        %4182 = vmatpush1.bf16.msra.mxu0 0
        %4183 = vmatprep.subr.bf16.mxu0 0
        %4184 = vmatpush1.bf16.msra.mxu0 0
        %4185 = vmatprep.subr.bf16.mxu0 0
        %4186 = vmatpush1.bf16.msra.mxu0 0
        %4187 = vmatprep.subr.bf16.mxu0 0
        %4188 = vmatpush1.bf16.msra.mxu0 0
        %4189 = vmatprep.subr.bf16.mxu0 0
        %4190 = vmatpush1.bf16.msra.mxu0 0
        %4191 = vmatprep.subr.bf16.mxu0 0
        %4192 = vmatpush1.bf16.msra.mxu0 0
        %4193 = vmatprep.subr.bf16.mxu0 0
        %4194 = vmatpush1.bf16.msra.mxu0 0
        %4195 = vmatprep.subr.bf16.mxu0 0
        %4196 = vmatpush1.bf16.msra.mxu0 0
        %4197 = vmatprep.subr.bf16.mxu0 0
        %4198 = vmatpush1.bf16.msra.mxu0 0
        %4199 = vmatprep.subr.bf16.mxu0 0
        %4200 = vmatpush1.bf16.msra.mxu0 0
        %4201 = vmatprep.subr.bf16.mxu0 0
        %4202 = vmatpush1.bf16.msra.mxu0 0
        %4203 = vmatprep.subr.bf16.mxu0 0
        %4204 = vmatpush1.bf16.msra.mxu0 0
        %4205 = vmatprep.mubr.bf16.mxu0 0
        %4206 = vmatmul.mubr.bf16.gmra.mrb[0].mxu0 %v4137
        %v4207 = vpop.f32.mrb[0].mxu0
        %v4208 = vadd.f32 %v4018, %v4207
        %v4209 = vpop.f32.mrb[0].mxu0
        %v4210 = vadd.f32 %v4018, %v4209
        %v4211 = vpop.f32.mrb[0].mxu0
        %v4212 = vadd.f32 %v4023, %v4211
        %v4213 = vpop.f32.mrb[0].mxu0
        %v4214 = vadd.f32 %v4023, %v4213
        %4215 = vmatprep.mubr.bf16.mxu0 0
        %4216 = vmatmul.mubr.bf16.gmra.mrb[0].mxu0 %v4140
        %v4217 = vpop.f32.mrb[0].mxu0
        %v4218 = vadd.f32 %v4028, %v4217
        %v4219 = vpop.f32.mrb[0].mxu0
        %v4220 = vadd.f32 %v4028, %v4219
        %v4221 = vpop.f32.mrb[0].mxu0
        %v4222 = vadd.f32 %v4033, %v4221
        %v4223 = vpop.f32.mrb[0].mxu0
        %v4224 = vadd.f32 %v4033, %v4223
        %4225 = vmatprep.mubr.bf16.mxu0 0
        %4226 = vmatmul.mubr.bf16.gmra.mrb[0].mxu0 %v4143
        %v4227 = vpop.f32.mrb[0].mxu0
        %v4228 = vadd.f32 %v4038, %v4227
        %v4229 = vpop.f32.mrb[0].mxu0
        %v4230 = vadd.f32 %v4038, %v4229
        %v4231 = vpop.f32.mrb[0].mxu0
        %v4232 = vadd.f32 %v4043, %v4231
        %v4233 = vpop.f32.mrb[0].mxu0
        %v4234 = vadd.f32 %v4043, %v4233
        %4235 = vmatprep.mubr.bf16.mxu0 0
        %4236 = vmatmul.mubr.bf16.gmra.mrb[0].mxu0 %v4146
        %v4237 = vpop.f32.mrb[0].mxu0
        %v4238 = vadd.f32 %v4048, %v4237
        %v4239 = vpop.f32.mrb[0].mxu0
        %v4240 = vadd.f32 %v4048, %v4239
        %v4241 = vpop.f32.mrb[0].mxu0
        %v4242 = vadd.f32 %v4053, %v4241
        %v4243 = vpop.f32.mrb[0].mxu0
        %v4244 = vadd.f32 %v4053, %v4243
        %4245 = vmatprep.mubr.bf16.mxu0 0
        %4246 = vmatmul.mubr.bf16.gmra.mrb[0].mxu0 %v4149
        %v4247 = vpop.f32.mrb[0].mxu0
        %v4248 = vadd.f32 %v4058, %v4247
        %v4249 = vpop.f32.mrb[0].mxu0
        %v4250 = vadd.f32 %v4058, %v4249
        %v4251 = vpop.f32.mrb[0].mxu0
        %v4252 = vadd.f32 %v4063, %v4251
        %v4253 = vpop.f32.mrb[0].mxu0
        %v4254 = vadd.f32 %v4063, %v4253
        %4255 = vmatprep.mubr.bf16.mxu0 0
        %4256 = vmatmul.mubr.bf16.gmra.mrb[0].mxu0 %v4152
        %v4257 = vpop.f32.mrb[0].mxu0
        %v4258 = vadd.f32 %v4068, %v4257
        %v4259 = vpop.f32.mrb[0].mxu0
        %v4260 = vadd.f32 %v4068, %v4259
        %v4261 = vpop.f32.mrb[0].mxu0
        %v4262 = vadd.f32 %v4073, %v4261
        %v4263 = vpop.f32.mrb[0].mxu0
        %v4264 = vadd.f32 %v4073, %v4263
        %4265 = vmatprep.mubr.bf16.mxu0 0
        %4266 = vmatmul.mubr.bf16.gmra.mrb[0].mxu0 %v4155
        %v4267 = vpop.f32.mrb[0].mxu0
        %v4268 = vadd.f32 %v4078, %v4267
        %v4269 = vpop.f32.mrb[0].mxu0
        %v4270 = vadd.f32 %v4078, %v4269
        %v4271 = vpop.f32.mrb[0].mxu0
        %v4272 = vadd.f32 %v4083, %v4271
        %v4273 = vpop.f32.mrb[0].mxu0
        %v4274 = vadd.f32 %v4083, %v4273
        %4275 = vmatprep.mubr.bf16.mxu0 0
        %4276 = vmatmul.mubr.bf16.gmra.mrb[0].mxu0 %v4158
        %v4277 = vpop.f32.mrb[0].mxu0
        %v4278 = vadd.f32 %v4088, %v4277
        %v4279 = vpop.f32.mrb[0].mxu0
        %v4280 = vadd.f32 %v4088, %v4279
        %v4281 = vpop.f32.mrb[0].mxu0
        %v4282 = vadd.f32 %v4093, %v4281
        %v4283 = vpop.f32.mrb[0].mxu0
        %v4284 = vadd.f32 %v4093, %v4283
        %4285 = vdwg.mxu0
        %4286 = vmatprep.subr.bf16.mxu0 0
        %4287 = vmatpush1.bf16.msra.mxu0 %v3973
        %4288 = vmatprep.subr.bf16.mxu0 0
        %4289 = vmatpush1.bf16.msra.mxu0 %v3976
        %4290 = vmatprep.subr.bf16.mxu0 0
        %4291 = vmatpush1.bf16.msra.mxu0 %v3979
        %4292 = vmatprep.subr.bf16.mxu0 0
        %4293 = vmatpush1.bf16.msra.mxu0 %v4171
        %4294 = vmatprep.subr.bf16.mxu0 0
        %4295 = vmatpush1.bf16.msra.mxu0 0
        %4296 = vmatprep.subr.bf16.mxu0 0
        %4297 = vmatpush1.bf16.msra.mxu0 0
        %4298 = vmatprep.subr.bf16.mxu0 0
        %4299 = vmatpush1.bf16.msra.mxu0 0
        %4300 = vmatprep.subr.bf16.mxu0 0
        %4301 = vmatpush1.bf16.msra.mxu0 0
        %4302 = vmatprep.subr.bf16.mxu0 0
        %4303 = vmatpush1.bf16.msra.mxu0 0
        %4304 = vmatprep.subr.bf16.mxu0 0
        %4305 = vmatpush1.bf16.msra.mxu0 0
        %4306 = vmatprep.subr.bf16.mxu0 0
        %4307 = vmatpush1.bf16.msra.mxu0 0
        %4308 = vmatprep.subr.bf16.mxu0 0
        %4309 = vmatpush1.bf16.msra.mxu0 0
        %4310 = vmatprep.subr.bf16.mxu0 0
        %4311 = vmatpush1.bf16.msra.mxu0 0
        %4312 = vmatprep.subr.bf16.mxu0 0
        %4313 = vmatpush1.bf16.msra.mxu0 0
        %4314 = vmatprep.subr.bf16.mxu0 0
        %4315 = vmatpush1.bf16.msra.mxu0 0
        %4316 = vmatprep.subr.bf16.mxu0 0
        %4317 = vmatpush1.bf16.msra.mxu0 0
        %4318 = vmatprep.mubr.bf16.mxu0 0
        %4319 = vmatmul.mubr.bf16.gmra.mrb[0].mxu0 %v4137
        %v4320 = vpop.f32.mrb[0].mxu0
        %v4321 = vadd.f32 %v4018, %v4320
        %v4322 = vpop.f32.mrb[0].mxu0
        %v4323 = vpop.f32.mrb[0].mxu0
        %v4324 = vadd.f32 %v4023, %v4323
        %v4325 = vpop.f32.mrb[0].mxu0
        %4326 = vmatprep.mubr.bf16.mxu0 0
        %4327 = vmatmul.mubr.bf16.gmra.mrb[0].mxu0 %v4140
        %v4328 = vpop.f32.mrb[0].mxu0
        %v4329 = vadd.f32 %v4028, %v4328
        %v4330 = vpop.f32.mrb[0].mxu0
        %v4331 = vpop.f32.mrb[0].mxu0
        %v4332 = vadd.f32 %v4033, %v4331
        %v4333 = vpop.f32.mrb[0].mxu0
        %4334 = vmatprep.mubr.bf16.mxu0 0
        %4335 = vmatmul.mubr.bf16.gmra.mrb[0].mxu0 %v4143
        %v4336 = vpop.f32.mrb[0].mxu0
        %v4337 = vadd.f32 %v4038, %v4336
        %v4338 = vpop.f32.mrb[0].mxu0
        %v4339 = vpop.f32.mrb[0].mxu0
        %v4340 = vadd.f32 %v4043, %v4339
        %v4341 = vpop.f32.mrb[0].mxu0
        %4342 = vmatprep.mubr.bf16.mxu0 0
        %4343 = vmatmul.mubr.bf16.gmra.mrb[0].mxu0 %v4146
        %v4344 = vpop.f32.mrb[0].mxu0
        %v4345 = vadd.f32 %v4048, %v4344
        %v4346 = vpop.f32.mrb[0].mxu0
        %v4347 = vpop.f32.mrb[0].mxu0
        %v4348 = vadd.f32 %v4053, %v4347
        %v4349 = vpop.f32.mrb[0].mxu0
        %4350 = vmatprep.mubr.bf16.mxu0 0
        %4351 = vmatmul.mubr.bf16.gmra.mrb[0].mxu0 %v4149
        %v4352 = vpop.f32.mrb[0].mxu0
        %v4353 = vadd.f32 %v4058, %v4352
        %v4354 = vpop.f32.mrb[0].mxu0
        %v4355 = vpop.f32.mrb[0].mxu0
        %v4356 = vadd.f32 %v4063, %v4355
        %v4357 = vpop.f32.mrb[0].mxu0
        %4358 = vmatprep.mubr.bf16.mxu0 0
        %4359 = vmatmul.mubr.bf16.gmra.mrb[0].mxu0 %v4152
        %v4360 = vpop.f32.mrb[0].mxu0
        %v4361 = vadd.f32 %v4068, %v4360
        %v4362 = vpop.f32.mrb[0].mxu0
        %v4363 = vpop.f32.mrb[0].mxu0
        %v4364 = vadd.f32 %v4073, %v4363
        %v4365 = vpop.f32.mrb[0].mxu0
        %4366 = vmatprep.mubr.bf16.mxu0 0
        %4367 = vmatmul.mubr.bf16.gmra.mrb[0].mxu0 %v4155
        %v4368 = vpop.f32.mrb[0].mxu0
        %v4369 = vadd.f32 %v4078, %v4368
        %v4370 = vpop.f32.mrb[0].mxu0
        %v4371 = vpop.f32.mrb[0].mxu0
        %v4372 = vadd.f32 %v4083, %v4371
        %v4373 = vpop.f32.mrb[0].mxu0
        %4374 = vmatprep.mubr.bf16.mxu0 0
        %4375 = vmatmul.mubr.bf16.gmra.mrb[0].mxu0 %v4158
        %v4376 = vpop.f32.mrb[0].mxu0
        %v4377 = vadd.f32 %v4088, %v4376
        %v4378 = vpop.f32.mrb[0].mxu0
        %v4379 = vpop.f32.mrb[0].mxu0
        %v4380 = vadd.f32 %v4093, %v4379
        %v4381 = vpop.f32.mrb[0].mxu0
        %4382 = vdwg.mxu0
        %v4383 = vmax.f32 %v4208, 0.0
        %v4384 = vmax.f32 %v4210, 0.0
        %v4385 = vmax.f32 %v4321, 0.0
        %v4386 = vmax.f32 %v4212, 0.0
        %v4387 = vmax.f32 %v4214, 0.0
        %v4388 = vmax.f32 %v4324, 0.0
        %v4389 = vmax.f32 %v4218, 0.0
        %v4390 = vmax.f32 %v4220, 0.0
        %v4391 = vmax.f32 %v4329, 0.0
        %v4392 = vmax.f32 %v4222, 0.0
        %v4393 = vmax.f32 %v4224, 0.0
        %v4394 = vmax.f32 %v4332, 0.0
        %v4395 = vmax.f32 %v4228, 0.0
        %v4396 = vmax.f32 %v4230, 0.0
        %v4397 = vmax.f32 %v4337, 0.0
        %v4398 = vmax.f32 %v4232, 0.0
        %v4399 = vmax.f32 %v4234, 0.0
        %v4400 = vmax.f32 %v4340, 0.0
        %v4401 = vmax.f32 %v4238, 0.0
        %v4402 = vmax.f32 %v4240, 0.0
        %v4403 = vmax.f32 %v4345, 0.0
        %v4404 = vmax.f32 %v4242, 0.0
        %v4405 = vmax.f32 %v4244, 0.0
        %v4406 = vmax.f32 %v4348, 0.0
        %v4407 = vmax.f32 %v4248, 0.0
        %v4408 = vmax.f32 %v4250, 0.0
        %v4409 = vmax.f32 %v4353, 0.0
        %v4410 = vmax.f32 %v4252, 0.0
        %v4411 = vmax.f32 %v4254, 0.0
        %v4412 = vmax.f32 %v4356, 0.0
        %v4413 = vmax.f32 %v4258, 0.0
        %v4414 = vmax.f32 %v4260, 0.0
        %v4415 = vmax.f32 %v4361, 0.0
        %v4416 = vmax.f32 %v4262, 0.0
        %v4417 = vmax.f32 %v4264, 0.0
        %v4418 = vmax.f32 %v4364, 0.0
        %v4419 = vmax.f32 %v4268, 0.0
        %v4420 = vmax.f32 %v4270, 0.0
        %v4421 = vmax.f32 %v4369, 0.0
        %v4422 = vmax.f32 %v4272, 0.0
        %v4423 = vmax.f32 %v4274, 0.0
        %v4424 = vmax.f32 %v4372, 0.0
        %v4425 = vmax.f32 %v4278, 0.0
        %v4426 = vmax.f32 %v4280, 0.0
        %v4427 = vmax.f32 %v4377, 0.0
        %v4428 = vmax.f32 %v4282, 0.0
        %v4429 = vmax.f32 %v4284, 0.0
        %v4430 = vmax.f32 %v4380, 0.0
        %v4431 = vpack.c.bf16 %v4386, %v4383
        %v4432 = vpack.c.bf16 %v4387, %v4384
        %v4433 = vpack.c.bf16 %v4388, %v4385
        %v4434 = vpack.c.bf16 %v4392, %v4389
        %v4435 = vpack.c.bf16 %v4393, %v4390
        %v4436 = vpack.c.bf16 %v4394, %v4391
        %v4437 = vpack.c.bf16 %v4398, %v4395
        %v4438 = vpack.c.bf16 %v4399, %v4396
        %v4439 = vpack.c.bf16 %v4400, %v4397
        %v4440 = vpack.c.bf16 %v4404, %v4401
        %v4441 = vpack.c.bf16 %v4405, %v4402
        %v4442 = vpack.c.bf16 %v4406, %v4403
        %v4443 = vpack.c.bf16 %v4410, %v4407
        %v4444 = vpack.c.bf16 %v4411, %v4408
        %v4445 = vpack.c.bf16 %v4412, %v4409
        %v4446 = vpack.c.bf16 %v4416, %v4413
        %v4447 = vpack.c.bf16 %v4417, %v4414
        %v4448 = vpack.c.bf16 %v4418, %v4415
        %v4449 = vpack.c.bf16 %v4422, %v4419
        %v4450 = vpack.c.bf16 %v4423, %v4420
        %v4451 = vpack.c.bf16 %v4424, %v4421
        %v4452 = vpack.c.bf16 %v4428, %v4425
        %v4453 = vpack.c.bf16 %v4429, %v4426
        %v4454 = vpack.c.bf16 %v4430, %v4427
        %v4455 = vld [vmem:[%s12] sm:$0x1]
        %v4456 = vld [vmem:[#allocation5] sm:$0x1]
        %4458 = vset.pattern.permute.xlu0 0
        %4459 = vperm.xlu0 %4458, %v4456
        %v4460 = vpop.permute.xlu0 %4459
        %v4462 = vlaneseq
        %v4463 = vshrl.u32 %v4462, 7
        %v4464 = vsub.s32 0, %v4463
        %v4465 = vrot.slane %v4460, %v4464
        %4466 = vmatprep.subr.bf16.mxu0 %v4432
        %4467 = vmatpush1.bf16.msra.mxu0 %v4431
        %4468 = vmatprep.subr.bf16.mxu0 %v4435
        %4469 = vmatpush1.bf16.msra.mxu0 %v4434
        %4470 = vmatprep.subr.bf16.mxu0 %v4438
        %4471 = vmatpush1.bf16.msra.mxu0 %v4437
        %4472 = vmatprep.subr.bf16.mxu0 %v4441
        %4473 = vmatpush1.bf16.msra.mxu0 %v4440
        %4474 = vmatprep.subr.bf16.mxu0 %v4444
        %4475 = vmatpush1.bf16.msra.mxu0 %v4443
        %4476 = vmatprep.subr.bf16.mxu0 %v4447
        %4477 = vmatpush1.bf16.msra.mxu0 %v4446
        %4478 = vmatprep.subr.bf16.mxu0 %v4450
        %4479 = vmatpush1.bf16.msra.mxu0 %v4449
        %4480 = vmatprep.subr.bf16.mxu0 %v4453
        %4481 = vmatpush1.bf16.msra.mxu0 %v4452
        %4482 = vmatprep.subr.bf16.mxu0 0
        %4483 = vmatpush1.bf16.msra.mxu0 0
        %4484 = vmatprep.subr.bf16.mxu0 0
        %4485 = vmatpush1.bf16.msra.mxu0 0
        %4486 = vmatprep.subr.bf16.mxu0 0
        %4487 = vmatpush1.bf16.msra.mxu0 0
        %4488 = vmatprep.subr.bf16.mxu0 0
        %4489 = vmatpush1.bf16.msra.mxu0 0
        %4490 = vmatprep.subr.bf16.mxu0 0
        %4491 = vmatpush1.bf16.msra.mxu0 0
        %4492 = vmatprep.subr.bf16.mxu0 0
        %4493 = vmatpush1.bf16.msra.mxu0 0
        %4494 = vmatprep.subr.bf16.mxu0 0
        %4495 = vmatpush1.bf16.msra.mxu0 0
        %4496 = vmatprep.subr.bf16.mxu0 0
        %4497 = vmatpush1.bf16.msra.mxu0 0
        %4498 = vmatprep.mubr.bf16.mxu0 0
        %4499 = vmatmul.mubr.bf16.gmra.mrb[0].mxu0 %v4455
        %v4500 = vpop.f32.mrb[0].mxu0
        %v4501 = vadd.f32 %v4465, %v4500
        %v4502 = vpop.f32.mrb[0].mxu0
        %v4503 = vadd.f32 %v4465, %v4502
        %v4504 = vpop.f32.mrb[0].mxu0
        %v4505 = vpop.f32.mrb[0].mxu0
        %4506 = vdwg.mxu0
        %4507 = vmatprep.subr.bf16.mxu0 0
        %4508 = vmatpush1.bf16.msra.mxu0 %v4433
        %4509 = vmatprep.subr.bf16.mxu0 0
        %4510 = vmatpush1.bf16.msra.mxu0 %v4436
        %4511 = vmatprep.subr.bf16.mxu0 0
        %4512 = vmatpush1.bf16.msra.mxu0 %v4439
        %4513 = vmatprep.subr.bf16.mxu0 0
        %4514 = vmatpush1.bf16.msra.mxu0 %v4442
        %4515 = vmatprep.subr.bf16.mxu0 0
        %4516 = vmatpush1.bf16.msra.mxu0 %v4445
        %4517 = vmatprep.subr.bf16.mxu0 0
        %4518 = vmatpush1.bf16.msra.mxu0 %v4448
        %4519 = vmatprep.subr.bf16.mxu0 0
        %4520 = vmatpush1.bf16.msra.mxu0 %v4451
        %4521 = vmatprep.subr.bf16.mxu0 0
        %4522 = vmatpush1.bf16.msra.mxu0 %v4454
        %4523 = vmatprep.subr.bf16.mxu0 0
        %4524 = vmatpush1.bf16.msra.mxu0 0
        %4525 = vmatprep.subr.bf16.mxu0 0
        %4526 = vmatpush1.bf16.msra.mxu0 0
        %4527 = vmatprep.subr.bf16.mxu0 0
        %4528 = vmatpush1.bf16.msra.mxu0 0
        %4529 = vmatprep.subr.bf16.mxu0 0
        %4530 = vmatpush1.bf16.msra.mxu0 0
        %4531 = vmatprep.subr.bf16.mxu0 0
        %4532 = vmatpush1.bf16.msra.mxu0 0
        %4533 = vmatprep.subr.bf16.mxu0 0
        %4534 = vmatpush1.bf16.msra.mxu0 0
        %4535 = vmatprep.subr.bf16.mxu0 0
        %4536 = vmatpush1.bf16.msra.mxu0 0
        %4537 = vmatprep.subr.bf16.mxu0 0
        %4538 = vmatpush1.bf16.msra.mxu0 0
        %4539 = vmatprep.mubr.bf16.mxu0 0
        %4540 = vmatmul.mubr.bf16.gmra.mrb[0].mxu0 %v4455
        %v4541 = vpop.f32.mrb[0].mxu0
        %v4542 = vadd.f32 %v4465, %v4541
        %v4543 = vpop.f32.mrb[0].mxu0
        %v4544 = vpop.f32.mrb[0].mxu0
        %v4545 = vpop.f32.mrb[0].mxu0
        %4546 = vdwg.mxu0
        %v4547 = vsub.f32 0.0, %v4501
        %v4548 = vsub.f32 0.0, %v4503
        %v4549 = vsub.f32 0.0, %v4542
        %v4550 = vmul.f32 %v4547, 1.442695
        %v4551 = vpow.pop %v4550
        %v4552 = vmul.f32 %v4548, 1.442695
        %v4553 = vpow.pop %v4552
        %v4554 = vmul.f32 %v4549, 1.442695
        %v4555 = vpow.pop %v4554
        %v4556 = vadd.f32 %v4551, 1.0
        %v4557 = vadd.f32 %v4553, 1.0
        %v4558 = vadd.f32 %v4555, 1.0
        %v4559 = vrcp.pop %v4556
        %v4560 = vrcp.pop %v4557
        %v4561 = vrcp.pop %v4558
        %v4565 = vcombine.low %v4559, %v4560
        %v4567 = vunpack.c.l.s4 1966171168
        %v4568 = vunpack.c.0.s8 %v4567
        %v4569 = vlaneseq
        %v4570 = vshrl.u32 %v4569, 7
        %v4571 = vsub.s32 %v4568, %v4570
        %v4572 = vrot.slane %v4565, %v4571
        %v4574 = vunpack.c.l.s4 1966171168
        %v4575 = vunpack.c.0.s8 %v4574
        %v4576 = vlaneseq
        %v4577 = vshrl.u32 %v4576, 7
        %v4578 = vsub.s32 %v4575, %v4577
        %v4579 = vrot.slane %v4561, %v4578
        %v4580 = vcombine.low %v4572, %v4579
        %v4582 = vunpack.c.l.s4 1966171168
        %v4583 = vunpack.c.0.s8 %v4582
        %v4584 = vlaneseq
        %v4585 = vshrl.u32 %v4584, 7
        %v4586 = vsub.s32 %v4583, %v4585
        %v4587 = vrot.slane %v4580, %v4586
        %s4589 = scalar_lea.vmem %s486, 4
        %4590 = vst.msk [vmem:[%s4589] ss:$8 sm:$0x7] %vm3667, %v4587
        %4591 = vst.msk [vmem:[%s4589] ss:$8 sm:$0x0] %vm3667, %v4587
        %p4592 = scmp.lt.s32.totalorder %s30, 1
        %s4593 = scalar_select %p4592, %s30, 1
        %s4594 = smul.addr %s4593, 3
        %s4595 = smul.addr %s4594, 8
        %s4596 = scalar_lea.vmem %s14, %s4595
        // Predicated region
        $region85: #{_lambda_.1} parent=75 // pred_check
          %p4597 = pneg %p347
        $region86: #{_lambda_.1} parent=75 // pred_check_branch
          %4599 = sbr.rel (%p4597) target = $region88
        $region87: #{_lambda_.1} parent=75 // pred_region
          _
        $region88: #{_lambda_.1} parent=75 // pred_fallthru
          _
      $region76: #{_lambda_.1} parent=5 // pred_fallthru
        _
      %p4600 = scmp.le.s32.totalorder 2, %s25
      // Predicated region
      $region89: #{_lambda_.1} parent=5 // pred_check
        %p4601 = pneg %p4600
      $region90: #{_lambda_.1} parent=5 // pred_check_branch
        %4603 = sbr.rel (%p4601) target = $region92
      $region91: #{_lambda_.1} parent=5 // pred_region
        %s4604 = ssub.s32 %s25, 2
        // Predicated region
        $region93: #{_lambda_.1} parent=91 // pred_check
          %p4605 = pneg %p353
        $region94: #{_lambda_.1} parent=91 // pred_check_branch
          %4607 = sbr.rel (%p4605) target = $region96
        $region95: #{_lambda_.1} parent=91 // pred_region
          %p4608 = scmp.lt.s32.totalorder %s31, 1
          %s4609 = scalar_select %p4608, %s31, 1
          %s4610 = smul.addr %s4609, 3
          %s4611 = smul.addr %s4610, 8
          %s4612 = scalar_lea.vmem %s14, %s4611
        $region96: #{_lambda_.1} parent=91 // pred_fallthru
          _
      $region92: #{_lambda_.1} parent=5 // pred_fallthru
        _
    $region6: #{_lambda_.1} parent=1 // loop_footer
      %s29 = sadd.s32 1, %s25
    $region7: #{_lambda_.1} parent=1 // loop_footer_branch
      %24 = sbr.rel target = $region3
    $region8: #{_lambda_.1} parent=1 // loop_exit
      _
    %4613 = vsyncpa [#allocation7], 1
    %s4614 = scalar_lea.sflag [#allocation7], 1
    %4615 = vsyncpa %s4614, 1

</llo_original>
